<compile_context>
chip_gen: v5e
topology: v5e:2x2
jax: 0.10.0
libtpu: 0.0.40
codegen_flags: <defaults>
</compile_context>

<pallas_src>
import functools
import math

import jax
import jax.numpy as jnp
from jax.experimental import pallas as pl
from jax.experimental.pallas import tpu as pltpu

# ---- hyperparameters implied by StackedTransformers.__init__ ----
D_MODEL = 256
N_HEADS = 8
HEAD_DIM = D_MODEL // N_HEADS      # 32
FF_DIM = 4 * D_MODEL               # 1024
N_LAYERS = 6
N_CLASSES = 2
N_TOWERS = 2                       # model1 (embedding) + model2 (no embedding)
MAX_LEN = 200
LN_EPS = 1e-5


# ---------------------------------------------------------------------------
# In-kernel helpers (all f32 VPU math)
# ---------------------------------------------------------------------------
def _layer_norm(x, gamma, beta):
    # x: (S, D); gamma/beta: (1, D). PyTorch LayerNorm (biased variance, eps=1e-5)
    mu = jnp.mean(x, axis=-1, keepdims=True)
    xc = x - mu
    var = jnp.mean(xc * xc, axis=-1, keepdims=True)
    return xc * jax.lax.rsqrt(var + LN_EPS) * gamma + beta


def _gelu_exact(x):
    # Exact (erf-based) GELU, matching PyTorch activation='gelu'.
    return 0.5 * x * (1.0 + jax.lax.erf(x * (1.0 / math.sqrt(2.0))))


# ---------------------------------------------------------------------------
# Fused encoder-stack kernel: grid = (tower, batch, layer)
#   - activation carried in VMEM scratch across the layer axis
#   - fused QKV / out-proj / FFN matmuls in bf16, f32 accumulation
#   - at the last layer, write the mean-over-seq pooled vector
# ---------------------------------------------------------------------------
def _encoder_stack_kernel(x_ref, wqkv_ref, bqkv_ref, wo_ref, bo_ref,
                          g1_ref, be1_ref, w1_ref, b1_ref, w2_ref, b2_ref,
                          g2_ref, be2_ref, pooled_ref, h_scratch):
    l = pl.program_id(2)

    @pl.when(l == 0)
    def _():
        h_scratch[...] = x_ref[0, 0]                  # (S, D) f32

    x = h_scratch[...]                                # (S, D) f32
    x_bf = x.astype(jnp.bfloat16)
    scale = 1.0 / math.sqrt(HEAD_DIM)

    # --- fused QKV projection: (S, D) @ (D, 3D) -> (S, 3D) ---
    qkv = jnp.dot(x_bf, wqkv_ref[0, 0],
                  preferred_element_type=jnp.float32) + bqkv_ref[0, 0]
    q = qkv[:, 0:D_MODEL] * scale
    k = qkv[:, D_MODEL:2 * D_MODEL]
    v = qkv[:, 2 * D_MODEL:3 * D_MODEL]

    # --- per-head attention (softmax over keys), heads concatenated ---
    heads = []
    for h in range(N_HEADS):                          # static unroll
        sl = slice(h * HEAD_DIM, (h + 1) * HEAD_DIM)
        qh, kh, vh = q[:, sl], k[:, sl], v[:, sl]
        s = jax.lax.dot_general(qh, kh, (((1,), (1,)), ((), ())),
                                preferred_element_type=jnp.float32)   # (S, S)
        s = s - jnp.max(s, axis=-1, keepdims=True)
        p = jnp.exp(s)
        p = p * pl.reciprocal(jnp.sum(p, axis=-1, keepdims=True), approx=True)
        heads.append(jnp.dot(p, vh, preferred_element_type=jnp.float32))
    ctx = jnp.concatenate(heads, axis=-1)             # (S, D)

    # --- fused output projection: (S, D) @ (D, D) ---
    attn = jnp.dot(ctx.astype(jnp.bfloat16), wo_ref[0, 0],
                   preferred_element_type=jnp.float32) + bo_ref[0, 0]

    x1 = _layer_norm(x + attn, g1_ref[0, 0], be1_ref[0, 0])

    # --- feed-forward (bf16 matmuls, f32 accumulation / activation) ---
    hdn = jnp.dot(x1.astype(jnp.bfloat16), w1_ref[0, 0],
                  preferred_element_type=jnp.float32) + b1_ref[0, 0]
    hdn = _gelu_exact(hdn)
    ff = jnp.dot(hdn.astype(jnp.bfloat16), w2_ref[0, 0],
                 preferred_element_type=jnp.float32) + b2_ref[0, 0]

    x2 = _layer_norm(x1 + ff, g2_ref[0, 0], be2_ref[0, 0])
    h_scratch[...] = x2

    @pl.when(l == pl.num_programs(2) - 1)
    def _():
        # fused mean-pool over the sequence -> (1, D)
        pooled_ref[0, 0] = jnp.mean(x2, axis=0, keepdims=True)


def _weight_map(nrest, m, b, l):
    # stacked weight arrays have shape (tower, layer, *rest)
    return (m, l) + (0,) * nrest


def encoder_stack(xin, enc_params):
    """xin: (2, B, S, D) f32 stacked tower inputs; enc_params: stacked weights."""
    M, B, S, D = xin.shape
    in_specs = [pl.BlockSpec((1, 1, S, D), lambda m, b, l: (m, b, 0, 0))]
    args = [xin]
    for p in enc_params:
        rest = p.shape[2:]
        in_specs.append(pl.BlockSpec((1, 1) + rest,
                                     functools.partial(_weight_map, len(rest))))
        args.append(p)
    return pl.pallas_call(
        _encoder_stack_kernel,
        out_shape=jax.ShapeDtypeStruct((M, B, 1, D), jnp.float32),
        grid=(M, B, N_LAYERS),
        in_specs=in_specs,
        out_specs=pl.BlockSpec((1, 1, 1, D), lambda m, b, l: (m, b, 0, 0)),
        scratch_shapes=[pltpu.VMEM((S, D), jnp.float32)],
        compiler_params=pltpu.CompilerParams(
            dimension_semantics=("parallel", "parallel", "arbitrary")),
    )(*args)


# ---------------------------------------------------------------------------
# Head kernel: per-model fc on pooled vectors, concat + final fc, softmax
# ---------------------------------------------------------------------------
def _zero_map(ndim, *_):
    return (0,) * ndim


def _head_kernel(p1_ref, p2_ref, w_fc1_ref, b_fc1_ref, w_fc2_ref, b_fc2_ref,
                 wfa_ref, wfb_ref, bf_ref, o_ref):
    x1 = jnp.dot(p1_ref[...], w_fc1_ref[...],
                 preferred_element_type=jnp.float32) + b_fc1_ref[...]
    x2 = jnp.dot(p2_ref[...], w_fc2_ref[...],
                 preferred_element_type=jnp.float32) + b_fc2_ref[...]
    # cat([x1, x2]) @ Wf  ==  x1 @ Wf[:2] + x2 @ Wf[2:]
    z = (jnp.dot(x1, wfa_ref[...], preferred_element_type=jnp.float32)
         + jnp.dot(x2, wfb_ref[...], preferred_element_type=jnp.float32)
         + bf_ref[...])
    z = z - jnp.max(z, axis=1, keepdims=True)
    ez = jnp.exp(z)
    o_ref[...] = ez / jnp.sum(ez, axis=1, keepdims=True)


def head(pooled1, pooled2, head_params):
    B = pooled1.shape[0]
    args = (pooled1, pooled2) + tuple(head_params)
    in_specs = [pl.BlockSpec(a.shape, functools.partial(_zero_map, a.ndim))
                for a in args]
    return pl.pallas_call(
        _head_kernel,
        out_shape=jax.ShapeDtypeStruct((B, N_CLASSES), jnp.float32),
        grid=(1,),
        in_specs=in_specs,
        out_specs=pl.BlockSpec((B, N_CLASSES), lambda i: (0, 0)),
    )(*args)


# ---------------------------------------------------------------------------
# Parameters (deterministic synthetic init) and glue
# ---------------------------------------------------------------------------
def _init_params(key):
    keys = iter(jax.random.split(key, 64))

    def nrm(shape, dtype=jnp.float32, scale=0.02):
        return (scale * jax.random.normal(next(keys), shape)).astype(dtype)

    def zeros(shape):
        return jnp.zeros(shape, jnp.float32)

    def ones(shape):
        return jnp.ones(shape, jnp.float32)

    T, L = N_TOWERS, N_LAYERS
    # Stacked per-tower, per-layer weights. Matmul slabs are stored bf16
    # (MXU-native); biases and LayerNorm params stay f32.
    enc = (
        nrm((T, L, D_MODEL, 3 * D_MODEL), jnp.bfloat16),   # wqkv  [Wq^T|Wk^T|Wv^T]
        nrm((T, L, 1, 3 * D_MODEL)),                       # bqkv
        nrm((T, L, D_MODEL, D_MODEL), jnp.bfloat16),       # wo (out_proj^T)
        nrm((T, L, 1, D_MODEL)),                           # bo
        ones((T, L, 1, D_MODEL)), zeros((T, L, 1, D_MODEL)),   # LayerNorm1 g/b
        nrm((T, L, D_MODEL, FF_DIM), jnp.bfloat16),        # linear1 w
        nrm((T, L, 1, FF_DIM)),                            # linear1 b
        nrm((T, L, FF_DIM, D_MODEL), jnp.bfloat16),        # linear2 w
        nrm((T, L, 1, D_MODEL)),                           # linear2 b
        ones((T, L, 1, D_MODEL)), zeros((T, L, 1, D_MODEL)),   # LayerNorm2 g/b
    )
    return {
        "emb_w": nrm((D_MODEL,)),                  # nn.Linear(1, 256) weight[:, 0]
        "emb_b": nrm((D_MODEL,)),
        "enc": enc,
        "fc1_w": nrm((D_MODEL, N_CLASSES)), "fc1_b": nrm((1, N_CLASSES)),
        "fc2_w": nrm((D_MODEL, N_CLASSES)), "fc2_b": nrm((1, N_CLASSES)),
        "fcf_wa": nrm((N_CLASSES, N_CLASSES)),     # final Linear(4,2): rows for x1
        "fcf_wb": nrm((N_CLASSES, N_CLASSES)),     # final Linear(4,2): rows for x2
        "fcf_b": nrm((1, N_CLASSES)),
    }


def _positional_encoding(seq_len, d_model):
    position = jnp.arange(MAX_LEN, dtype=jnp.float32)[:, None]
    div_term = jnp.exp(jnp.arange(0, d_model, 2, dtype=jnp.float32)
                       * (-math.log(10000.0) / d_model))
    pe = jnp.zeros((MAX_LEN, d_model), jnp.float32)
    pe = pe.at[:, 0::2].set(jnp.sin(position * div_term))
    pe = pe.at[:, 1::2].set(jnp.cos(position * div_term))
    return pe[:seq_len]                            # (S, D)


def stacked_transformers_forward(params, x):
    """x: (B, S) float32 (input_dim == 1). Returns softmax probs (B, 2)."""
    B, S = x.shape
    pe = _positional_encoding(S, D_MODEL)          # (S, D)

    # tower 1: Linear(1,256) embedding (scale+bias broadcast) + PE
    h1 = (x[..., None] * params["emb_w"][None, None, :]
          + params["emb_b"][None, None, :] + pe[None, :, :])
    # tower 2: no embedding; (B,S,1) broadcast-added to PE
    h2 = x[..., None] + pe[None, :, :]
    xin = jnp.stack([h1, h2], axis=0)              # (2, B, S, D)

    pooled = encoder_stack(xin, params["enc"])     # (2, B, 1, D) mean-pooled
    p1 = pooled[0, :, 0, :]                        # (B, D)
    p2 = pooled[1, :, 0, :]                        # (B, D)

    head_params = (params["fc1_w"], params["fc1_b"],
                   params["fc2_w"], params["fc2_b"],
                   params["fcf_wa"], params["fcf_wb"], params["fcf_b"])
    return head(p1, p2, head_params)               # (B, 2) softmax probabilities


if __name__ == "__main__":
    key = jax.random.PRNGKey(0)
    pkey, xkey = jax.random.split(key)
    params = _init_params(pkey)

    B, S = 2, 8                                    # small shapes (S <= max_len=200)
    x = jax.random.normal(xkey, (B, S), dtype=jnp.float32)

    fwd = jax.jit(stacked_transformers_forward)
    out = fwd(params, x)
    jax.block_until_ready(out)

    assert out.shape == (B, N_CLASSES)
    assert bool(jnp.all(jnp.isfinite(out)))
    # rows of a softmax sum to 1
    assert bool(jnp.allclose(jnp.sum(out, axis=1), 1.0, atol=1e-5))
    print("KERNEL_OK")
</pallas_src>

<mosaic_0001>
module attributes {stable_mosaic.version = 11 : i64} {
  func.func @_encoder_stack_kernel(%arg0: i32, %arg1: i32, %arg2: i32, %arg3: memref<1x1x8x256xf32, #tpu.memory_space<vmem>>, %arg4: memref<1x1x256x768xbf16, #tpu.memory_space<vmem>>, %arg5: memref<1x1x1x768xf32, #tpu.memory_space<vmem>>, %arg6: memref<1x1x256x256xbf16, #tpu.memory_space<vmem>>, %arg7: memref<1x1x1x256xf32, #tpu.memory_space<vmem>>, %arg8: memref<1x1x1x256xf32, #tpu.memory_space<vmem>>, %arg9: memref<1x1x1x256xf32, #tpu.memory_space<vmem>>, %arg10: memref<1x1x256x1024xbf16, #tpu.memory_space<vmem>>, %arg11: memref<1x1x1x1024xf32, #tpu.memory_space<vmem>>, %arg12: memref<1x1x1024x256xbf16, #tpu.memory_space<vmem>>, %arg13: memref<1x1x1x256xf32, #tpu.memory_space<vmem>>, %arg14: memref<1x1x1x256xf32, #tpu.memory_space<vmem>>, %arg15: memref<1x1x1x256xf32, #tpu.memory_space<vmem>>, %arg16: memref<1x1x1x256xf32, #tpu.memory_space<vmem>>, %arg17: memref<8x256xf32, #tpu.memory_space<vmem>>) attributes {dimension_semantics = [#tpu.dimension_semantics<parallel>, #tpu.dimension_semantics<parallel>, #tpu.dimension_semantics<arbitrary>], iteration_bounds = array<i64: 2, 2, 6>, scalar_prefetch = 0 : i64, scratch_operands = 1 : i64, tpu.core_type = #tpu.core_type<tc>, window_params = [{transform_indices = @transform_0, window_bounds = array<i64: 1, 1, 8, 256>}, {transform_indices = @transform_1, window_bounds = array<i64: 1, 1, 256, 768>}, {transform_indices = @transform_2, window_bounds = array<i64: 1, 1, 1, 768>}, {transform_indices = @transform_3, window_bounds = array<i64: 1, 1, 256, 256>}, {transform_indices = @transform_4, window_bounds = array<i64: 1, 1, 1, 256>}, {transform_indices = @transform_5, window_bounds = array<i64: 1, 1, 1, 256>}, {transform_indices = @transform_6, window_bounds = array<i64: 1, 1, 1, 256>}, {transform_indices = @transform_7, window_bounds = array<i64: 1, 1, 256, 1024>}, {transform_indices = @transform_8, window_bounds = array<i64: 1, 1, 1, 1024>}, {transform_indices = @transform_9, window_bounds = array<i64: 1, 1, 1024, 256>}, {transform_indices = @transform_10, window_bounds = array<i64: 1, 1, 1, 256>}, {transform_indices = @transform_11, window_bounds = array<i64: 1, 1, 1, 256>}, {transform_indices = @transform_12, window_bounds = array<i64: 1, 1, 1, 256>}, {transform_indices = @transform_13, window_bounds = array<i64: 1, 1, 1, 256>}]} {
    %c0_i32 = arith.constant 0 : i32
    %0 = arith.cmpi eq, %arg2, %c0_i32 : i32
    %1 = arith.extui %0 : i1 to i32
    %c0_i32_0 = arith.constant 0 : i32
    %2 = arith.cmpi ne, %1, %c0_i32_0 : i32
    scf.if %2 {
      %c0_102 = arith.constant 0 : index
      %c0_103 = arith.constant 0 : index
      %c0_104 = arith.constant 0 : index
      %c0_105 = arith.constant 0 : index
      %224 = vector.load %arg3[%c0_102, %c0_103, %c0_104, %c0_105] : memref<1x1x8x256xf32, #tpu.memory_space<vmem>>, vector<1x1x8x256xf32>
      %225 = vector.shape_cast %224 : vector<1x1x8x256xf32> to vector<8x256xf32>
      %c0_106 = arith.constant 0 : index
      %c0_107 = arith.constant 0 : index
      %226 = vector.load %arg17[%c0_106, %c0_107] : memref<8x256xf32, #tpu.memory_space<vmem>>, vector<8x256xf32>
      tpu.vector_store %arg17[%c0_106, %c0_107], %225 {strides = array<i32>} : memref<8x256xf32, #tpu.memory_space<vmem>>, vector<8x256xf32>,
    } else {
    }
    %c0 = arith.constant 0 : index
    %c0_1 = arith.constant 0 : index
    %3 = vector.load %arg17[%c0, %c0_1] : memref<8x256xf32, #tpu.memory_space<vmem>>, vector<8x256xf32>
    %4 = arith.truncf %3 : vector<8x256xf32> to vector<8x256xbf16>
    %c0_2 = arith.constant 0 : index
    %c0_3 = arith.constant 0 : index
    %c0_4 = arith.constant 0 : index
    %c0_5 = arith.constant 0 : index
    %5 = vector.load %arg4[%c0_2, %c0_3, %c0_4, %c0_5] : memref<1x1x256x768xbf16, #tpu.memory_space<vmem>>, vector<1x1x256x768xbf16>
    %6 = vector.shape_cast %5 : vector<1x1x256x768xbf16> to vector<256x768xbf16>
    %cst = arith.constant dense<0.000000e+00> : vector<8x768xf32>
    %7 = tpu.matmul %4, %6, %cst {dimension_numbers = #tpu.dot_dimension_numbers<[1], [0], [0], [1], [0, 0, 1, 1], [], []>} : vector<8x256xbf16>, vector<256x768xbf16>, vector<8x768xf32> -> vector<8x768xf32>
    %c0_6 = arith.constant 0 : index
    %c0_7 = arith.constant 0 : index
    %c0_8 = arith.constant 0 : index
    %c0_9 = arith.constant 0 : index
    %8 = vector.load %arg5[%c0_6, %c0_7, %c0_8, %c0_9] : memref<1x1x1x768xf32, #tpu.memory_space<vmem>>, vector<1x1x1x768xf32>
    %9 = vector.shape_cast %8 : vector<1x1x1x768xf32> to vector<1x768xf32>
    %10 = vector.broadcast %9 : vector<1x768xf32> to vector<8x768xf32>
    %11 = arith.addf %7, %10 : vector<8x768xf32>
    %12 = vector.extract_strided_slice %11 {offsets = [0, 0], sizes = [8, 256], strides = [1, 1]} : vector<8x768xf32> to vector<8x256xf32>
    %cst_10 = arith.constant 0.176776692 : f32
    %13 = vector.broadcast %cst_10 : f32 to vector<8x256xf32>
    %14 = arith.mulf %12, %13 : vector<8x256xf32>
    %15 = vector.extract_strided_slice %11 {offsets = [0, 256], sizes = [8, 256], strides = [1, 1]} : vector<8x768xf32> to vector<8x256xf32>
    %16 = vector.extract_strided_slice %11 {offsets = [0, 512], sizes = [8, 256], strides = [1, 1]} : vector<8x768xf32> to vector<8x256xf32>
    %17 = vector.extract_strided_slice %14 {offsets = [0, 0], sizes = [8, 32], strides = [1, 1]} : vector<8x256xf32> to vector<8x32xf32>
    %18 = vector.extract_strided_slice %15 {offsets = [0, 0], sizes = [8, 32], strides = [1, 1]} : vector<8x256xf32> to vector<8x32xf32>
    %19 = vector.extract_strided_slice %16 {offsets = [0, 0], sizes = [8, 32], strides = [1, 1]} : vector<8x256xf32> to vector<8x32xf32>
    %cst_11 = arith.constant dense<0.000000e+00> : vector<8x8xf32>
    %20 = tpu.matmul %17, %18, %cst_11 {dimension_numbers = #tpu.dot_dimension_numbers<[1], [1], [0], [0], [0, 0, 1, 0], [], []>} : vector<8x32xf32>, vector<8x32xf32>, vector<8x8xf32> -> vector<8x8xf32>
    %cst_12 = arith.constant dense<0xFF800000> : vector<8xf32>
    %21 = vector.multi_reduction <maximumf>, %20, %cst_12 [1] : vector<8x8xf32> to vector<8xf32>
    %22 = vector.shape_cast %21 : vector<8xf32> to vector<8x1xf32>
    %23 = vector.broadcast %22 : vector<8x1xf32> to vector<8x8xf32>
    %24 = arith.subf %20, %23 : vector<8x8xf32>
    %25 = math.exp %24 : vector<8x8xf32>
    %cst_13 = arith.constant dense<0.000000e+00> : vector<8xf32>
    %26 = vector.multi_reduction <add>, %25, %cst_13 [1] : vector<8x8xf32> to vector<8xf32>
    %27 = vector.shape_cast %26 : vector<8xf32> to vector<8x1xf32>
    %28 = tpu.reciprocal %27 {approx = true} : vector<8x1xf32> -> vector<8x1xf32>
    %29 = vector.broadcast %28 : vector<8x1xf32> to vector<8x8xf32>
    %30 = arith.mulf %25, %29 : vector<8x8xf32>
    %cst_14 = arith.constant dense<0.000000e+00> : vector<8x32xf32>
    %31 = tpu.matmul %30, %19, %cst_14 {dimension_numbers = #tpu.dot_dimension_numbers<[1], [0], [0], [1], [0, 0, 1, 1], [], []>} : vector<8x8xf32>, vector<8x32xf32>, vector<8x32xf32> -> vector<8x32xf32>
    %32 = vector.extract_strided_slice %14 {offsets = [0, 32], sizes = [8, 32], strides = [1, 1]} : vector<8x256xf32> to vector<8x32xf32>
    %33 = vector.extract_strided_slice %15 {offsets = [0, 32], sizes = [8, 32], strides = [1, 1]} : vector<8x256xf32> to vector<8x32xf32>
    %34 = vector.extract_strided_slice %16 {offsets = [0, 32], sizes = [8, 32], strides = [1, 1]} : vector<8x256xf32> to vector<8x32xf32>
    %cst_15 = arith.constant dense<0.000000e+00> : vector<8x8xf32>
    %35 = tpu.matmul %32, %33, %cst_15 {dimension_numbers = #tpu.dot_dimension_numbers<[1], [1], [0], [0], [0, 0, 1, 0], [], []>} : vector<8x32xf32>, vector<8x32xf32>, vector<8x8xf32> -> vector<8x8xf32>
    %cst_16 = arith.constant dense<0xFF800000> : vector<8xf32>
    %36 = vector.multi_reduction <maximumf>, %35, %cst_16 [1] : vector<8x8xf32> to vector<8xf32>
    %37 = vector.shape_cast %36 : vector<8xf32> to vector<8x1xf32>
    %38 = vector.broadcast %37 : vector<8x1xf32> to vector<8x8xf32>
    %39 = arith.subf %35, %38 : vector<8x8xf32>
    %40 = math.exp %39 : vector<8x8xf32>
    %cst_17 = arith.constant dense<0.000000e+00> : vector<8xf32>
    %41 = vector.multi_reduction <add>, %40, %cst_17 [1] : vector<8x8xf32> to vector<8xf32>
    %42 = vector.shape_cast %41 : vector<8xf32> to vector<8x1xf32>
    %43 = tpu.reciprocal %42 {approx = true} : vector<8x1xf32> -> vector<8x1xf32>
    %44 = vector.broadcast %43 : vector<8x1xf32> to vector<8x8xf32>
    %45 = arith.mulf %40, %44 : vector<8x8xf32>
    %cst_18 = arith.constant dense<0.000000e+00> : vector<8x32xf32>
    %46 = tpu.matmul %45, %34, %cst_18 {dimension_numbers = #tpu.dot_dimension_numbers<[1], [0], [0], [1], [0, 0, 1, 1], [], []>} : vector<8x8xf32>, vector<8x32xf32>, vector<8x32xf32> -> vector<8x32xf32>
    %47 = vector.extract_strided_slice %14 {offsets = [0, 64], sizes = [8, 32], strides = [1, 1]} : vector<8x256xf32> to vector<8x32xf32>
    %48 = vector.extract_strided_slice %15 {offsets = [0, 64], sizes = [8, 32], strides = [1, 1]} : vector<8x256xf32> to vector<8x32xf32>
    %49 = vector.extract_strided_slice %16 {offsets = [0, 64], sizes = [8, 32], strides = [1, 1]} : vector<8x256xf32> to vector<8x32xf32>
    %cst_19 = arith.constant dense<0.000000e+00> : vector<8x8xf32>
    %50 = tpu.matmul %47, %48, %cst_19 {dimension_numbers = #tpu.dot_dimension_numbers<[1], [1], [0], [0], [0, 0, 1, 0], [], []>} : vector<8x32xf32>, vector<8x32xf32>, vector<8x8xf32> -> vector<8x8xf32>
    %cst_20 = arith.constant dense<0xFF800000> : vector<8xf32>
    %51 = vector.multi_reduction <maximumf>, %50, %cst_20 [1] : vector<8x8xf32> to vector<8xf32>
    %52 = vector.shape_cast %51 : vector<8xf32> to vector<8x1xf32>
    %53 = vector.broadcast %52 : vector<8x1xf32> to vector<8x8xf32>
    %54 = arith.subf %50, %53 : vector<8x8xf32>
    %55 = math.exp %54 : vector<8x8xf32>
    %cst_21 = arith.constant dense<0.000000e+00> : vector<8xf32>
    %56 = vector.multi_reduction <add>, %55, %cst_21 [1] : vector<8x8xf32> to vector<8xf32>
    %57 = vector.shape_cast %56 : vector<8xf32> to vector<8x1xf32>
    %58 = tpu.reciprocal %57 {approx = true} : vector<8x1xf32> -> vector<8x1xf32>
    %59 = vector.broadcast %58 : vector<8x1xf32> to vector<8x8xf32>
    %60 = arith.mulf %55, %59 : vector<8x8xf32>
    %cst_22 = arith.constant dense<0.000000e+00> : vector<8x32xf32>
    %61 = tpu.matmul %60, %49, %cst_22 {dimension_numbers = #tpu.dot_dimension_numbers<[1], [0], [0], [1], [0, 0, 1, 1], [], []>} : vector<8x8xf32>, vector<8x32xf32>, vector<8x32xf32> -> vector<8x32xf32>
    %62 = vector.extract_strided_slice %14 {offsets = [0, 96], sizes = [8, 32], strides = [1, 1]} : vector<8x256xf32> to vector<8x32xf32>
    %63 = vector.extract_strided_slice %15 {offsets = [0, 96], sizes = [8, 32], strides = [1, 1]} : vector<8x256xf32> to vector<8x32xf32>
    %64 = vector.extract_strided_slice %16 {offsets = [0, 96], sizes = [8, 32], strides = [1, 1]} : vector<8x256xf32> to vector<8x32xf32>
    %cst_23 = arith.constant dense<0.000000e+00> : vector<8x8xf32>
    %65 = tpu.matmul %62, %63, %cst_23 {dimension_numbers = #tpu.dot_dimension_numbers<[1], [1], [0], [0], [0, 0, 1, 0], [], []>} : vector<8x32xf32>, vector<8x32xf32>, vector<8x8xf32> -> vector<8x8xf32>
    %cst_24 = arith.constant dense<0xFF800000> : vector<8xf32>
    %66 = vector.multi_reduction <maximumf>, %65, %cst_24 [1] : vector<8x8xf32> to vector<8xf32>
    %67 = vector.shape_cast %66 : vector<8xf32> to vector<8x1xf32>
    %68 = vector.broadcast %67 : vector<8x1xf32> to vector<8x8xf32>
    %69 = arith.subf %65, %68 : vector<8x8xf32>
    %70 = math.exp %69 : vector<8x8xf32>
    %cst_25 = arith.constant dense<0.000000e+00> : vector<8xf32>
    %71 = vector.multi_reduction <add>, %70, %cst_25 [1] : vector<8x8xf32> to vector<8xf32>
    %72 = vector.shape_cast %71 : vector<8xf32> to vector<8x1xf32>
    %73 = tpu.reciprocal %72 {approx = true} : vector<8x1xf32> -> vector<8x1xf32>
    %74 = vector.broadcast %73 : vector<8x1xf32> to vector<8x8xf32>
    %75 = arith.mulf %70, %74 : vector<8x8xf32>
    %cst_26 = arith.constant dense<0.000000e+00> : vector<8x32xf32>
    %76 = tpu.matmul %75, %64, %cst_26 {dimension_numbers = #tpu.dot_dimension_numbers<[1], [0], [0], [1], [0, 0, 1, 1], [], []>} : vector<8x8xf32>, vector<8x32xf32>, vector<8x32xf32> -> vector<8x32xf32>
    %77 = vector.extract_strided_slice %14 {offsets = [0, 128], sizes = [8, 32], strides = [1, 1]} : vector<8x256xf32> to vector<8x32xf32>
    %78 = vector.extract_strided_slice %15 {offsets = [0, 128], sizes = [8, 32], strides = [1, 1]} : vector<8x256xf32> to vector<8x32xf32>
    %79 = vector.extract_strided_slice %16 {offsets = [0, 128], sizes = [8, 32], strides = [1, 1]} : vector<8x256xf32> to vector<8x32xf32>
    %cst_27 = arith.constant dense<0.000000e+00> : vector<8x8xf32>
    %80 = tpu.matmul %77, %78, %cst_27 {dimension_numbers = #tpu.dot_dimension_numbers<[1], [1], [0], [0], [0, 0, 1, 0], [], []>} : vector<8x32xf32>, vector<8x32xf32>, vector<8x8xf32> -> vector<8x8xf32>
    %cst_28 = arith.constant dense<0xFF800000> : vector<8xf32>
    %81 = vector.multi_reduction <maximumf>, %80, %cst_28 [1] : vector<8x8xf32> to vector<8xf32>
    %82 = vector.shape_cast %81 : vector<8xf32> to vector<8x1xf32>
    %83 = vector.broadcast %82 : vector<8x1xf32> to vector<8x8xf32>
    %84 = arith.subf %80, %83 : vector<8x8xf32>
    %85 = math.exp %84 : vector<8x8xf32>
    %cst_29 = arith.constant dense<0.000000e+00> : vector<8xf32>
    %86 = vector.multi_reduction <add>, %85, %cst_29 [1] : vector<8x8xf32> to vector<8xf32>
    %87 = vector.shape_cast %86 : vector<8xf32> to vector<8x1xf32>
    %88 = tpu.reciprocal %87 {approx = true} : vector<8x1xf32> -> vector<8x1xf32>
    %89 = vector.broadcast %88 : vector<8x1xf32> to vector<8x8xf32>
    %90 = arith.mulf %85, %89 : vector<8x8xf32>
    %cst_30 = arith.constant dense<0.000000e+00> : vector<8x32xf32>
    %91 = tpu.matmul %90, %79, %cst_30 {dimension_numbers = #tpu.dot_dimension_numbers<[1], [0], [0], [1], [0, 0, 1, 1], [], []>} : vector<8x8xf32>, vector<8x32xf32>, vector<8x32xf32> -> vector<8x32xf32>
    %92 = vector.extract_strided_slice %14 {offsets = [0, 160], sizes = [8, 32], strides = [1, 1]} : vector<8x256xf32> to vector<8x32xf32>
    %93 = vector.extract_strided_slice %15 {offsets = [0, 160], sizes = [8, 32], strides = [1, 1]} : vector<8x256xf32> to vector<8x32xf32>
    %94 = vector.extract_strided_slice %16 {offsets = [0, 160], sizes = [8, 32], strides = [1, 1]} : vector<8x256xf32> to vector<8x32xf32>
    %cst_31 = arith.constant dense<0.000000e+00> : vector<8x8xf32>
    %95 = tpu.matmul %92, %93, %cst_31 {dimension_numbers = #tpu.dot_dimension_numbers<[1], [1], [0], [0], [0, 0, 1, 0], [], []>} : vector<8x32xf32>, vector<8x32xf32>, vector<8x8xf32> -> vector<8x8xf32>
    %cst_32 = arith.constant dense<0xFF800000> : vector<8xf32>
    %96 = vector.multi_reduction <maximumf>, %95, %cst_32 [1] : vector<8x8xf32> to vector<8xf32>
    %97 = vector.shape_cast %96 : vector<8xf32> to vector<8x1xf32>
    %98 = vector.broadcast %97 : vector<8x1xf32> to vector<8x8xf32>
    %99 = arith.subf %95, %98 : vector<8x8xf32>
    %100 = math.exp %99 : vector<8x8xf32>
    %cst_33 = arith.constant dense<0.000000e+00> : vector<8xf32>
    %101 = vector.multi_reduction <add>, %100, %cst_33 [1] : vector<8x8xf32> to vector<8xf32>
    %102 = vector.shape_cast %101 : vector<8xf32> to vector<8x1xf32>
    %103 = tpu.reciprocal %102 {approx = true} : vector<8x1xf32> -> vector<8x1xf32>
    %104 = vector.broadcast %103 : vector<8x1xf32> to vector<8x8xf32>
    %105 = arith.mulf %100, %104 : vector<8x8xf32>
    %cst_34 = arith.constant dense<0.000000e+00> : vector<8x32xf32>
    %106 = tpu.matmul %105, %94, %cst_34 {dimension_numbers = #tpu.dot_dimension_numbers<[1], [0], [0], [1], [0, 0, 1, 1], [], []>} : vector<8x8xf32>, vector<8x32xf32>, vector<8x32xf32> -> vector<8x32xf32>
    %107 = vector.extract_strided_slice %14 {offsets = [0, 192], sizes = [8, 32], strides = [1, 1]} : vector<8x256xf32> to vector<8x32xf32>
    %108 = vector.extract_strided_slice %15 {offsets = [0, 192], sizes = [8, 32], strides = [1, 1]} : vector<8x256xf32> to vector<8x32xf32>
    %109 = vector.extract_strided_slice %16 {offsets = [0, 192], sizes = [8, 32], strides = [1, 1]} : vector<8x256xf32> to vector<8x32xf32>
    %cst_35 = arith.constant dense<0.000000e+00> : vector<8x8xf32>
    %110 = tpu.matmul %107, %108, %cst_35 {dimension_numbers = #tpu.dot_dimension_numbers<[1], [1], [0], [0], [0, 0, 1, 0], [], []>} : vector<8x32xf32>, vector<8x32xf32>, vector<8x8xf32> -> vector<8x8xf32>
    %cst_36 = arith.constant dense<0xFF800000> : vector<8xf32>
    %111 = vector.multi_reduction <maximumf>, %110, %cst_36 [1] : vector<8x8xf32> to vector<8xf32>
    %112 = vector.shape_cast %111 : vector<8xf32> to vector<8x1xf32>
    %113 = vector.broadcast %112 : vector<8x1xf32> to vector<8x8xf32>
    %114 = arith.subf %110, %113 : vector<8x8xf32>
    %115 = math.exp %114 : vector<8x8xf32>
    %cst_37 = arith.constant dense<0.000000e+00> : vector<8xf32>
    %116 = vector.multi_reduction <add>, %115, %cst_37 [1] : vector<8x8xf32> to vector<8xf32>
    %117 = vector.shape_cast %116 : vector<8xf32> to vector<8x1xf32>
    %118 = tpu.reciprocal %117 {approx = true} : vector<8x1xf32> -> vector<8x1xf32>
    %119 = vector.broadcast %118 : vector<8x1xf32> to vector<8x8xf32>
    %120 = arith.mulf %115, %119 : vector<8x8xf32>
    %cst_38 = arith.constant dense<0.000000e+00> : vector<8x32xf32>
    %121 = tpu.matmul %120, %109, %cst_38 {dimension_numbers = #tpu.dot_dimension_numbers<[1], [0], [0], [1], [0, 0, 1, 1], [], []>} : vector<8x8xf32>, vector<8x32xf32>, vector<8x32xf32> -> vector<8x32xf32>
    %122 = vector.extract_strided_slice %14 {offsets = [0, 224], sizes = [8, 32], strides = [1, 1]} : vector<8x256xf32> to vector<8x32xf32>
    %123 = vector.extract_strided_slice %15 {offsets = [0, 224], sizes = [8, 32], strides = [1, 1]} : vector<8x256xf32> to vector<8x32xf32>
    %124 = vector.extract_strided_slice %16 {offsets = [0, 224], sizes = [8, 32], strides = [1, 1]} : vector<8x256xf32> to vector<8x32xf32>
    %cst_39 = arith.constant dense<0.000000e+00> : vector<8x8xf32>
    %125 = tpu.matmul %122, %123, %cst_39 {dimension_numbers = #tpu.dot_dimension_numbers<[1], [1], [0], [0], [0, 0, 1, 0], [], []>} : vector<8x32xf32>, vector<8x32xf32>, vector<8x8xf32> -> vector<8x8xf32>
    %cst_40 = arith.constant dense<0xFF800000> : vector<8xf32>
    %126 = vector.multi_reduction <maximumf>, %125, %cst_40 [1] : vector<8x8xf32> to vector<8xf32>
    %127 = vector.shape_cast %126 : vector<8xf32> to vector<8x1xf32>
    %128 = vector.broadcast %127 : vector<8x1xf32> to vector<8x8xf32>
    %129 = arith.subf %125, %128 : vector<8x8xf32>
    %130 = math.exp %129 : vector<8x8xf32>
    %cst_41 = arith.constant dense<0.000000e+00> : vector<8xf32>
    %131 = vector.multi_reduction <add>, %130, %cst_41 [1] : vector<8x8xf32> to vector<8xf32>
    %132 = vector.shape_cast %131 : vector<8xf32> to vector<8x1xf32>
    %133 = tpu.reciprocal %132 {approx = true} : vector<8x1xf32> -> vector<8x1xf32>
    %134 = vector.broadcast %133 : vector<8x1xf32> to vector<8x8xf32>
    %135 = arith.mulf %130, %134 : vector<8x8xf32>
    %cst_42 = arith.constant dense<0.000000e+00> : vector<8x32xf32>
    %136 = tpu.matmul %135, %124, %cst_42 {dimension_numbers = #tpu.dot_dimension_numbers<[1], [0], [0], [1], [0, 0, 1, 1], [], []>} : vector<8x8xf32>, vector<8x32xf32>, vector<8x32xf32> -> vector<8x32xf32>
    %137 = tpu.concatenate %31, %46, %61, %76, %91, %106, %121, %136 in 1 : vector<8x32xf32>, vector<8x32xf32>, vector<8x32xf32>, vector<8x32xf32>, vector<8x32xf32>, vector<8x32xf32>, vector<8x32xf32>, vector<8x32xf32> -> vector<8x256xf32>
    %138 = arith.truncf %137 : vector<8x256xf32> to vector<8x256xbf16>
    %c0_43 = arith.constant 0 : index
    %c0_44 = arith.constant 0 : index
    %c0_45 = arith.constant 0 : index
    %c0_46 = arith.constant 0 : index
    %139 = vector.load %arg6[%c0_43, %c0_44, %c0_45, %c0_46] : memref<1x1x256x256xbf16, #tpu.memory_space<vmem>>, vector<1x1x256x256xbf16>
    %140 = vector.shape_cast %139 : vector<1x1x256x256xbf16> to vector<256x256xbf16>
    %cst_47 = arith.constant dense<0.000000e+00> : vector<8x256xf32>
    %141 = tpu.matmul %138, %140, %cst_47 {dimension_numbers = #tpu.dot_dimension_numbers<[1], [0], [0], [1], [0, 0, 1, 1], [], []>} : vector<8x256xbf16>, vector<256x256xbf16>, vector<8x256xf32> -> vector<8x256xf32>
    %c0_48 = arith.constant 0 : index
    %c0_49 = arith.constant 0 : index
    %c0_50 = arith.constant 0 : index
    %c0_51 = arith.constant 0 : index
    %142 = vector.load %arg7[%c0_48, %c0_49, %c0_50, %c0_51] : memref<1x1x1x256xf32, #tpu.memory_space<vmem>>, vector<1x1x1x256xf32>
    %143 = vector.shape_cast %142 : vector<1x1x1x256xf32> to vector<1x256xf32>
    %144 = vector.broadcast %143 : vector<1x256xf32> to vector<8x256xf32>
    %145 = arith.addf %141, %144 : vector<8x256xf32>
    %146 = arith.addf %3, %145 : vector<8x256xf32>
    %c0_52 = arith.constant 0 : index
    %c0_53 = arith.constant 0 : index
    %c0_54 = arith.constant 0 : index
    %c0_55 = arith.constant 0 : index
    %147 = vector.load %arg8[%c0_52, %c0_53, %c0_54, %c0_55] : memref<1x1x1x256xf32, #tpu.memory_space<vmem>>, vector<1x1x1x256xf32>
    %148 = vector.shape_cast %147 : vector<1x1x1x256xf32> to vector<1x256xf32>
    %c0_56 = arith.constant 0 : index
    %c0_57 = arith.constant 0 : index
    %c0_58 = arith.constant 0 : index
    %c0_59 = arith.constant 0 : index
    %149 = vector.load %arg9[%c0_56, %c0_57, %c0_58, %c0_59] : memref<1x1x1x256xf32, #tpu.memory_space<vmem>>, vector<1x1x1x256xf32>
    %150 = vector.shape_cast %149 : vector<1x1x1x256xf32> to vector<1x256xf32>
    %cst_60 = arith.constant dense<0.000000e+00> : vector<8xf32>
    %151 = vector.multi_reduction <add>, %146, %cst_60 [1] : vector<8x256xf32> to vector<8xf32>
    %152 = vector.shape_cast %151 : vector<8xf32> to vector<8x1xf32>
    %cst_61 = arith.constant 2.560000e+02 : f32
    %153 = vector.broadcast %cst_61 : f32 to vector<8x1xf32>
    %154 = arith.divf %152, %153 : vector<8x1xf32>
    %155 = vector.broadcast %154 : vector<8x1xf32> to vector<8x256xf32>
    %156 = arith.subf %146, %155 : vector<8x256xf32>
    %157 = arith.mulf %156, %156 : vector<8x256xf32>
    %cst_62 = arith.constant dense<0.000000e+00> : vector<8xf32>
    %158 = vector.multi_reduction <add>, %157, %cst_62 [1] : vector<8x256xf32> to vector<8xf32>
    %159 = vector.shape_cast %158 : vector<8xf32> to vector<8x1xf32>
    %cst_63 = arith.constant 2.560000e+02 : f32
    %160 = vector.broadcast %cst_63 : f32 to vector<8x1xf32>
    %161 = arith.divf %159, %160 : vector<8x1xf32>
    %cst_64 = arith.constant 9.99999974E-6 : f32
    %162 = vector.broadcast %cst_64 : f32 to vector<8x1xf32>
    %163 = arith.addf %161, %162 : vector<8x1xf32>
    %164 = math.rsqrt %163 : vector<8x1xf32>
    %165 = vector.broadcast %164 : vector<8x1xf32> to vector<8x256xf32>
    %166 = arith.mulf %156, %165 : vector<8x256xf32>
    %167 = vector.broadcast %148 : vector<1x256xf32> to vector<8x256xf32>
    %168 = arith.mulf %166, %167 : vector<8x256xf32>
    %169 = vector.broadcast %150 : vector<1x256xf32> to vector<8x256xf32>
    %170 = arith.addf %168, %169 : vector<8x256xf32>
    %171 = arith.truncf %170 : vector<8x256xf32> to vector<8x256xbf16>
    %c0_65 = arith.constant 0 : index
    %c0_66 = arith.constant 0 : index
    %c0_67 = arith.constant 0 : index
    %c0_68 = arith.constant 0 : index
    %172 = vector.load %arg10[%c0_65, %c0_66, %c0_67, %c0_68] : memref<1x1x256x1024xbf16, #tpu.memory_space<vmem>>, vector<1x1x256x1024xbf16>
    %173 = vector.shape_cast %172 : vector<1x1x256x1024xbf16> to vector<256x1024xbf16>
    %cst_69 = arith.constant dense<0.000000e+00> : vector<8x1024xf32>
    %174 = tpu.matmul %171, %173, %cst_69 {dimension_numbers = #tpu.dot_dimension_numbers<[1], [0], [0], [1], [0, 0, 1, 1], [], []>} : vector<8x256xbf16>, vector<256x1024xbf16>, vector<8x1024xf32> -> vector<8x1024xf32>
    %c0_70 = arith.constant 0 : index
    %c0_71 = arith.constant 0 : index
    %c0_72 = arith.constant 0 : index
    %c0_73 = arith.constant 0 : index
    %175 = vector.load %arg11[%c0_70, %c0_71, %c0_72, %c0_73] : memref<1x1x1x1024xf32, #tpu.memory_space<vmem>>, vector<1x1x1x1024xf32>
    %176 = vector.shape_cast %175 : vector<1x1x1x1024xf32> to vector<1x1024xf32>
    %177 = vector.broadcast %176 : vector<1x1024xf32> to vector<8x1024xf32>
    %178 = arith.addf %174, %177 : vector<8x1024xf32>
    %cst_74 = arith.constant 5.000000e-01 : f32
    %179 = vector.broadcast %cst_74 : f32 to vector<8x1024xf32>
    %180 = arith.mulf %179, %178 : vector<8x1024xf32>
    %cst_75 = arith.constant 0.707106769 : f32
    %181 = vector.broadcast %cst_75 : f32 to vector<8x1024xf32>
    %182 = arith.mulf %178, %181 : vector<8x1024xf32>
    %183 = math.erf %182 : vector<8x1024xf32>
    %cst_76 = arith.constant 1.000000e+00 : f32
    %184 = vector.broadcast %cst_76 : f32 to vector<8x1024xf32>
    %185 = arith.addf %184, %183 : vector<8x1024xf32>
    %186 = arith.mulf %180, %185 : vector<8x1024xf32>
    %187 = arith.truncf %186 : vector<8x1024xf32> to vector<8x1024xbf16>
    %c0_77 = arith.constant 0 : index
    %c0_78 = arith.constant 0 : index
    %c0_79 = arith.constant 0 : index
    %c0_80 = arith.constant 0 : index
    %188 = vector.load %arg12[%c0_77, %c0_78, %c0_79, %c0_80] : memref<1x1x1024x256xbf16, #tpu.memory_space<vmem>>, vector<1x1x1024x256xbf16>
    %189 = vector.shape_cast %188 : vector<1x1x1024x256xbf16> to vector<1024x256xbf16>
    %cst_81 = arith.constant dense<0.000000e+00> : vector<8x256xf32>
    %190 = tpu.matmul %187, %189, %cst_81 {dimension_numbers = #tpu.dot_dimension_numbers<[1], [0], [0], [1], [0, 0, 1, 1], [], []>} : vector<8x1024xbf16>, vector<1024x256xbf16>, vector<8x256xf32> -> vector<8x256xf32>
    %c0_82 = arith.constant 0 : index
    %c0_83 = arith.constant 0 : index
    %c0_84 = arith.constant 0 : index
    %c0_85 = arith.constant 0 : index
    %191 = vector.load %arg13[%c0_82, %c0_83, %c0_84, %c0_85] : memref<1x1x1x256xf32, #tpu.memory_space<vmem>>, vector<1x1x1x256xf32>
    %192 = vector.shape_cast %191 : vector<1x1x1x256xf32> to vector<1x256xf32>
    %193 = vector.broadcast %192 : vector<1x256xf32> to vector<8x256xf32>
    %194 = arith.addf %190, %193 : vector<8x256xf32>
    %195 = arith.addf %170, %194 : vector<8x256xf32>
    %c0_86 = arith.constant 0 : index
    %c0_87 = arith.constant 0 : index
    %c0_88 = arith.constant 0 : index
    %c0_89 = arith.constant 0 : index
    %196 = vector.load %arg14[%c0_86, %c0_87, %c0_88, %c0_89] : memref<1x1x1x256xf32, #tpu.memory_space<vmem>>, vector<1x1x1x256xf32>
    %197 = vector.shape_cast %196 : vector<1x1x1x256xf32> to vector<1x256xf32>
    %c0_90 = arith.constant 0 : index
    %c0_91 = arith.constant 0 : index
    %c0_92 = arith.constant 0 : index
    %c0_93 = arith.constant 0 : index
    %198 = vector.load %arg15[%c0_90, %c0_91, %c0_92, %c0_93] : memref<1x1x1x256xf32, #tpu.memory_space<vmem>>, vector<1x1x1x256xf32>
    %199 = vector.shape_cast %198 : vector<1x1x1x256xf32> to vector<1x256xf32>
    %cst_94 = arith.constant dense<0.000000e+00> : vector<8xf32>
    %200 = vector.multi_reduction <add>, %195, %cst_94 [1] : vector<8x256xf32> to vector<8xf32>
    %201 = vector.shape_cast %200 : vector<8xf32> to vector<8x1xf32>
    %cst_95 = arith.constant 2.560000e+02 : f32
    %202 = vector.broadcast %cst_95 : f32 to vector<8x1xf32>
    %203 = arith.divf %201, %202 : vector<8x1xf32>
    %204 = vector.broadcast %203 : vector<8x1xf32> to vector<8x256xf32>
    %205 = arith.subf %195, %204 : vector<8x256xf32>
    %206 = arith.mulf %205, %205 : vector<8x256xf32>
    %cst_96 = arith.constant dense<0.000000e+00> : vector<8xf32>
    %207 = vector.multi_reduction <add>, %206, %cst_96 [1] : vector<8x256xf32> to vector<8xf32>
    %208 = vector.shape_cast %207 : vector<8xf32> to vector<8x1xf32>
    %cst_97 = arith.constant 2.560000e+02 : f32
    %209 = vector.broadcast %cst_97 : f32 to vector<8x1xf32>
    %210 = arith.divf %208, %209 : vector<8x1xf32>
    %cst_98 = arith.constant 9.99999974E-6 : f32
    %211 = vector.broadcast %cst_98 : f32 to vector<8x1xf32>
    %212 = arith.addf %210, %211 : vector<8x1xf32>
    %213 = math.rsqrt %212 : vector<8x1xf32>
    %214 = vector.broadcast %213 : vector<8x1xf32> to vector<8x256xf32>
    %215 = arith.mulf %205, %214 : vector<8x256xf32>
    %216 = vector.broadcast %197 : vector<1x256xf32> to vector<8x256xf32>
    %217 = arith.mulf %215, %216 : vector<8x256xf32>
    %218 = vector.broadcast %199 : vector<1x256xf32> to vector<8x256xf32>
    %219 = arith.addf %217, %218 : vector<8x256xf32>
    %c0_99 = arith.constant 0 : index
    %c0_100 = arith.constant 0 : index
    %220 = vector.load %arg17[%c0_99, %c0_100] : memref<8x256xf32, #tpu.memory_space<vmem>>, vector<8x256xf32>
    tpu.vector_store %arg17[%c0_99, %c0_100], %219 {strides = array<i32>} : memref<8x256xf32, #tpu.memory_space<vmem>>, vector<8x256xf32>,
    %c5_i32 = arith.constant 5 : i32
    %221 = arith.cmpi eq, %arg2, %c5_i32 : i32
    %222 = arith.extui %221 : i1 to i32
    %c0_i32_101 = arith.constant 0 : i32
    %223 = arith.cmpi ne, %222, %c0_i32_101 : i32
    scf.if %223 {
      %cst_102 = arith.constant dense<0.000000e+00> : vector<256xf32>
      %224 = vector.multi_reduction <add>, %219, %cst_102 [0] : vector<8x256xf32> to vector<256xf32>
      %225 = vector.shape_cast %224 : vector<256xf32> to vector<1x256xf32>
      %cst_103 = arith.constant 8.000000e+00 : f32
      %226 = vector.broadcast %cst_103 : f32 to vector<1x256xf32>
      %227 = arith.divf %225, %226 : vector<1x256xf32>
      %c0_104 = arith.constant 0 : index
      %c0_105 = arith.constant 0 : index
      %c0_106 = arith.constant 0 : index
      %c0_107 = arith.constant 0 : index
      %228 = vector.load %arg16[%c0_104, %c0_105, %c0_106, %c0_107] : memref<1x1x1x256xf32, #tpu.memory_space<vmem>>, vector<1x1x1x256xf32>
      %229 = vector.shape_cast %228 : vector<1x1x1x256xf32> to vector<1x256xf32>
      %230 = vector.shape_cast %227 : vector<1x256xf32> to vector<1x1x1x256xf32>
      tpu.vector_store %arg16[%c0_104, %c0_105, %c0_106, %c0_107], %230 {strides = array<i32>} : memref<1x1x1x256xf32, #tpu.memory_space<vmem>>, vector<1x1x1x256xf32>,
    } else {
    }
    return
  }
  func.func @transform_0(%arg0: i32, %arg1: i32, %arg2: i32) -> (i32, i32, i32, i32) {
    %c0_i32 = arith.constant 0 : i32
    %c0_i32_0 = arith.constant 0 : i32
    %c0_i32_1 = arith.constant 0 : i32
    return %arg0, %arg1, %c0_i32, %c0_i32_0 : i32, i32, i32, i32
  }
  func.func @transform_1(%arg0: i32, %arg1: i32, %arg2: i32) -> (i32, i32, i32, i32) {
    %c0_i32 = arith.constant 0 : i32
    %c0_i32_0 = arith.constant 0 : i32
    %c0_i32_1 = arith.constant 0 : i32
    return %arg0, %arg2, %c0_i32, %c0_i32_0 : i32, i32, i32, i32
  }
  func.func @transform_2(%arg0: i32, %arg1: i32, %arg2: i32) -> (i32, i32, i32, i32) {
    %c0_i32 = arith.constant 0 : i32
    %c0_i32_0 = arith.constant 0 : i32
    %c0_i32_1 = arith.constant 0 : i32
    return %arg0, %arg2, %c0_i32, %c0_i32_0 : i32, i32, i32, i32
  }
  func.func @transform_3(%arg0: i32, %arg1: i32, %arg2: i32) -> (i32, i32, i32, i32) {
    %c0_i32 = arith.constant 0 : i32
    %c0_i32_0 = arith.constant 0 : i32
    %c0_i32_1 = arith.constant 0 : i32
    return %arg0, %arg2, %c0_i32, %c0_i32_0 : i32, i32, i32, i32
  }
  func.func @transform_4(%arg0: i32, %arg1: i32, %arg2: i32) -> (i32, i32, i32, i32) {
    %c0_i32 = arith.constant 0 : i32
    %c0_i32_0 = arith.constant 0 : i32
    %c0_i32_1 = arith.constant 0 : i32
    return %arg0, %arg2, %c0_i32, %c0_i32_0 : i32, i32, i32, i32
  }
  func.func @transform_5(%arg0: i32, %arg1: i32, %arg2: i32) -> (i32, i32, i32, i32) {
    %c0_i32 = arith.constant 0 : i32
    %c0_i32_0 = arith.constant 0 : i32
    %c0_i32_1 = arith.constant 0 : i32
    return %arg0, %arg2, %c0_i32, %c0_i32_0 : i32, i32, i32, i32
  }
  func.func @transform_6(%arg0: i32, %arg1: i32, %arg2: i32) -> (i32, i32, i32, i32) {
    %c0_i32 = arith.constant 0 : i32
    %c0_i32_0 = arith.constant 0 : i32
    %c0_i32_1 = arith.constant 0 : i32
    return %arg0, %arg2, %c0_i32, %c0_i32_0 : i32, i32, i32, i32
  }
  func.func @transform_7(%arg0: i32, %arg1: i32, %arg2: i32) -> (i32, i32, i32, i32) {
    %c0_i32 = arith.constant 0 : i32
    %c0_i32_0 = arith.constant 0 : i32
    %c0_i32_1 = arith.constant 0 : i32
    return %arg0, %arg2, %c0_i32, %c0_i32_0 : i32, i32, i32, i32
  }
  func.func @transform_8(%arg0: i32, %arg1: i32, %arg2: i32) -> (i32, i32, i32, i32) {
    %c0_i32 = arith.constant 0 : i32
    %c0_i32_0 = arith.constant 0 : i32
    %c0_i32_1 = arith.constant 0 : i32
    return %arg0, %arg2, %c0_i32, %c0_i32_0 : i32, i32, i32, i32
  }
  func.func @transform_9(%arg0: i32, %arg1: i32, %arg2: i32) -> (i32, i32, i32, i32) {
    %c0_i32 = arith.constant 0 : i32
    %c0_i32_0 = arith.constant 0 : i32
    %c0_i32_1 = arith.constant 0 : i32
    return %arg0, %arg2, %c0_i32, %c0_i32_0 : i32, i32, i32, i32
  }
  func.func @transform_10(%arg0: i32, %arg1: i32, %arg2: i32) -> (i32, i32, i32, i32) {
    %c0_i32 = arith.constant 0 : i32
    %c0_i32_0 = arith.constant 0 : i32
    %c0_i32_1 = arith.constant 0 : i32
    return %arg0, %arg2, %c0_i32, %c0_i32_0 : i32, i32, i32, i32
  }
  func.func @transform_11(%arg0: i32, %arg1: i32, %arg2: i32) -> (i32, i32, i32, i32) {
    %c0_i32 = arith.constant 0 : i32
    %c0_i32_0 = arith.constant 0 : i32
    %c0_i32_1 = arith.constant 0 : i32
    return %arg0, %arg2, %c0_i32, %c0_i32_0 : i32, i32, i32, i32
  }
  func.func @transform_12(%arg0: i32, %arg1: i32, %arg2: i32) -> (i32, i32, i32, i32) {
    %c0_i32 = arith.constant 0 : i32
    %c0_i32_0 = arith.constant 0 : i32
    %c0_i32_1 = arith.constant 0 : i32
    return %arg0, %arg2, %c0_i32, %c0_i32_0 : i32, i32, i32, i32
  }
  func.func @transform_13(%arg0: i32, %arg1: i32, %arg2: i32) -> (i32, i32, i32, i32) {
    %c0_i32 = arith.constant 0 : i32
    %c0_i32_0 = arith.constant 0 : i32
    %c0_i32_1 = arith.constant 0 : i32
    return %arg0, %arg1, %c0_i32, %c0_i32_0 : i32, i32, i32, i32
  }
}

module attributes {stable_mosaic.version = 11 : i64} {
  func.func @_head_kernel(%arg0: i32, %arg1: memref<2x256xf32, #tpu.memory_space<vmem>>, %arg2: memref<2x256xf32, #tpu.memory_space<vmem>>, %arg3: memref<256x2xf32, #tpu.memory_space<vmem>>, %arg4: memref<1x2xf32, #tpu.memory_space<vmem>>, %arg5: memref<256x2xf32, #tpu.memory_space<vmem>>, %arg6: memref<1x2xf32, #tpu.memory_space<vmem>>, %arg7: memref<2x2xf32, #tpu.memory_space<vmem>>, %arg8: memref<2x2xf32, #tpu.memory_space<vmem>>, %arg9: memref<1x2xf32, #tpu.memory_space<vmem>>, %arg10: memref<2x2xf32, #tpu.memory_space<vmem>>) attributes {dimension_semantics = [#tpu.dimension_semantics<arbitrary>], iteration_bounds = array<i64: 1>, scalar_prefetch = 0 : i64, scratch_operands = 0 : i64, tpu.core_type = #tpu.core_type<tc>, window_params = [{pipeline_mode = #tpu.pipeline_mode<synchronous>, transform_indices = @transform_0, window_bounds = array<i64: 2, 256>}, {pipeline_mode = #tpu.pipeline_mode<synchronous>, transform_indices = @transform_1, window_bounds = array<i64: 2, 256>}, {pipeline_mode = #tpu.pipeline_mode<synchronous>, transform_indices = @transform_2, window_bounds = array<i64: 256, 2>}, {pipeline_mode = #tpu.pipeline_mode<synchronous>, transform_indices = @transform_3, window_bounds = array<i64: 1, 2>}, {pipeline_mode = #tpu.pipeline_mode<synchronous>, transform_indices = @transform_4, window_bounds = array<i64: 256, 2>}, {pipeline_mode = #tpu.pipeline_mode<synchronous>, transform_indices = @transform_5, window_bounds = array<i64: 1, 2>}, {pipeline_mode = #tpu.pipeline_mode<synchronous>, transform_indices = @transform_6, window_bounds = array<i64: 2, 2>}, {pipeline_mode = #tpu.pipeline_mode<synchronous>, transform_indices = @transform_7, window_bounds = array<i64: 2, 2>}, {pipeline_mode = #tpu.pipeline_mode<synchronous>, transform_indices = @transform_8, window_bounds = array<i64: 1, 2>}, {pipeline_mode = #tpu.pipeline_mode<synchronous>, transform_indices = @transform_9, window_bounds = array<i64: 2, 2>}]} {
    %c0 = arith.constant 0 : index
    %c0_0 = arith.constant 0 : index
    %0 = vector.load %arg1[%c0, %c0_0] : memref<2x256xf32, #tpu.memory_space<vmem>>, vector<2x256xf32>
    %c0_1 = arith.constant 0 : index
    %c0_2 = arith.constant 0 : index
    %1 = vector.load %arg3[%c0_1, %c0_2] : memref<256x2xf32, #tpu.memory_space<vmem>>, vector<256x2xf32>
    %cst = arith.constant dense<0.000000e+00> : vector<2x2xf32>
    %2 = tpu.matmul %0, %1, %cst {dimension_numbers = #tpu.dot_dimension_numbers<[1], [0], [0], [1], [0, 0, 1, 1], [], []>} : vector<2x256xf32>, vector<256x2xf32>, vector<2x2xf32> -> vector<2x2xf32>
    %c0_3 = arith.constant 0 : index
    %c0_4 = arith.constant 0 : index
    %3 = vector.load %arg4[%c0_3, %c0_4] : memref<1x2xf32, #tpu.memory_space<vmem>>, vector<1x2xf32>
    %4 = vector.broadcast %3 : vector<1x2xf32> to vector<2x2xf32>
    %5 = arith.addf %2, %4 : vector<2x2xf32>
    %c0_5 = arith.constant 0 : index
    %c0_6 = arith.constant 0 : index
    %6 = vector.load %arg2[%c0_5, %c0_6] : memref<2x256xf32, #tpu.memory_space<vmem>>, vector<2x256xf32>
    %c0_7 = arith.constant 0 : index
    %c0_8 = arith.constant 0 : index
    %7 = vector.load %arg5[%c0_7, %c0_8] : memref<256x2xf32, #tpu.memory_space<vmem>>, vector<256x2xf32>
    %cst_9 = arith.constant dense<0.000000e+00> : vector<2x2xf32>
    %8 = tpu.matmul %6, %7, %cst_9 {dimension_numbers = #tpu.dot_dimension_numbers<[1], [0], [0], [1], [0, 0, 1, 1], [], []>} : vector<2x256xf32>, vector<256x2xf32>, vector<2x2xf32> -> vector<2x2xf32>
    %c0_10 = arith.constant 0 : index
    %c0_11 = arith.constant 0 : index
    %9 = vector.load %arg6[%c0_10, %c0_11] : memref<1x2xf32, #tpu.memory_space<vmem>>, vector<1x2xf32>
    %10 = vector.broadcast %9 : vector<1x2xf32> to vector<2x2xf32>
    %11 = arith.addf %8, %10 : vector<2x2xf32>
    %c0_12 = arith.constant 0 : index
    %c0_13 = arith.constant 0 : index
    %12 = vector.load %arg7[%c0_12, %c0_13] : memref<2x2xf32, #tpu.memory_space<vmem>>, vector<2x2xf32>
    %cst_14 = arith.constant dense<0.000000e+00> : vector<2x2xf32>
    %13 = tpu.matmul %5, %12, %cst_14 {dimension_numbers = #tpu.dot_dimension_numbers<[1], [0], [0], [1], [0, 0, 1, 1], [], []>} : vector<2x2xf32>, vector<2x2xf32>, vector<2x2xf32> -> vector<2x2xf32>
    %c0_15 = arith.constant 0 : index
    %c0_16 = arith.constant 0 : index
    %14 = vector.load %arg8[%c0_15, %c0_16] : memref<2x2xf32, #tpu.memory_space<vmem>>, vector<2x2xf32>
    %cst_17 = arith.constant dense<0.000000e+00> : vector<2x2xf32>
    %15 = tpu.matmul %11, %14, %cst_17 {dimension_numbers = #tpu.dot_dimension_numbers<[1], [0], [0], [1], [0, 0, 1, 1], [], []>} : vector<2x2xf32>, vector<2x2xf32>, vector<2x2xf32> -> vector<2x2xf32>
    %16 = arith.addf %13, %15 : vector<2x2xf32>
    %c0_18 = arith.constant 0 : index
    %c0_19 = arith.constant 0 : index
    %17 = vector.load %arg9[%c0_18, %c0_19] : memref<1x2xf32, #tpu.memory_space<vmem>>, vector<1x2xf32>
    %18 = vector.broadcast %17 : vector<1x2xf32> to vector<2x2xf32>
    %19 = arith.addf %16, %18 : vector<2x2xf32>
    %cst_20 = arith.constant dense<0xFF800000> : vector<2xf32>
    %20 = vector.multi_reduction <maximumf>, %19, %cst_20 [1] : vector<2x2xf32> to vector<2xf32>
    %21 = vector.shape_cast %20 : vector<2xf32> to vector<2x1xf32>
    %22 = vector.broadcast %21 : vector<2x1xf32> to vector<2x2xf32>
    %23 = arith.subf %19, %22 : vector<2x2xf32>
    %24 = math.exp %23 : vector<2x2xf32>
    %cst_21 = arith.constant dense<0.000000e+00> : vector<2xf32>
    %25 = vector.multi_reduction <add>, %24, %cst_21 [1] : vector<2x2xf32> to vector<2xf32>
    %26 = vector.shape_cast %25 : vector<2xf32> to vector<2x1xf32>
    %27 = vector.broadcast %26 : vector<2x1xf32> to vector<2x2xf32>
    %28 = arith.divf %24, %27 : vector<2x2xf32>
    %c0_22 = arith.constant 0 : index
    %c0_23 = arith.constant 0 : index
    %29 = vector.load %arg10[%c0_22, %c0_23] : memref<2x2xf32, #tpu.memory_space<vmem>>, vector<2x2xf32>
    tpu.vector_store %arg10[%c0_22, %c0_23], %28 {strides = array<i32>} : memref<2x2xf32, #tpu.memory_space<vmem>>, vector<2x2xf32>,
    return
  }
  func.func @transform_0(%arg0: i32) -> (i32, i32) {
    %c0_i32 = arith.constant 0 : i32
    %c0_i32_0 = arith.constant 0 : i32
    %c0_i32_1 = arith.constant 0 : i32
    return %c0_i32, %c0_i32_0 : i32, i32
  }
  func.func @transform_1(%arg0: i32) -> (i32, i32) {
    %c0_i32 = arith.constant 0 : i32
    %c0_i32_0 = arith.constant 0 : i32
    %c0_i32_1 = arith.constant 0 : i32
    return %c0_i32, %c0_i32_0 : i32, i32
  }
  func.func @transform_2(%arg0: i32) -> (i32, i32) {
    %c0_i32 = arith.constant 0 : i32
    %c0_i32_0 = arith.constant 0 : i32
    %c0_i32_1 = arith.constant 0 : i32
    return %c0_i32, %c0_i32_0 : i32, i32
  }
  func.func @transform_3(%arg0: i32) -> (i32, i32) {
    %c0_i32 = arith.constant 0 : i32
    %c0_i32_0 = arith.constant 0 : i32
    %c0_i32_1 = arith.constant 0 : i32
    return %c0_i32, %c0_i32_0 : i32, i32
  }
  func.func @transform_4(%arg0: i32) -> (i32, i32) {
    %c0_i32 = arith.constant 0 : i32
    %c0_i32_0 = arith.constant 0 : i32
    %c0_i32_1 = arith.constant 0 : i32
    return %c0_i32, %c0_i32_0 : i32, i32
  }
  func.func @transform_5(%arg0: i32) -> (i32, i32) {
    %c0_i32 = arith.constant 0 : i32
    %c0_i32_0 = arith.constant 0 : i32
    %c0_i32_1 = arith.constant 0 : i32
    return %c0_i32, %c0_i32_0 : i32, i32
  }
  func.func @transform_6(%arg0: i32) -> (i32, i32) {
    %c0_i32 = arith.constant 0 : i32
    %c0_i32_0 = arith.constant 0 : i32
    %c0_i32_1 = arith.constant 0 : i32
    return %c0_i32, %c0_i32_0 : i32, i32
  }
  func.func @transform_7(%arg0: i32) -> (i32, i32) {
    %c0_i32 = arith.constant 0 : i32
    %c0_i32_0 = arith.constant 0 : i32
    %c0_i32_1 = arith.constant 0 : i32
    return %c0_i32, %c0_i32_0 : i32, i32
  }
  func.func @transform_8(%arg0: i32) -> (i32, i32) {
    %c0_i32 = arith.constant 0 : i32
    %c0_i32_0 = arith.constant 0 : i32
    %c0_i32_1 = arith.constant 0 : i32
    return %c0_i32, %c0_i32_0 : i32, i32
  }
  func.func @transform_9(%arg0: i32) -> (i32, i32) {
    %c0_i32 = arith.constant 0 : i32
    %c0_i32_0 = arith.constant 0 : i32
    %c0_i32_1 = arith.constant 0 : i32
    return %c0_i32, %c0_i32_0 : i32, i32
  }
}

</mosaic_0001>

<llo_original>
// kernel: stacked_transformers_forward.3
$region0: #{stacked_transformers_forward.3}
  #allocation0 [shape = 'u32[]', space=smem, size = 0x4, offset = 0x4, fixed_abs, tag = 'smem constant byte address 0x4 - core index']
  #allocation1 [shape = 'u32[72,128]{1,0:T(1,128)}', space=vmem, size = 0x9000, scoped, tag = 'internal scratch']
  %s0 = inlined_call_operand.vmem [shape: f32[2,256], index: 0, kind: input, shape index: {}]
  %s1 = inlined_call_operand.vmem [shape: f32[2,256], index: 1, kind: input, shape index: {}]
  %s2 = inlined_call_operand.vmem [shape: f32[256,2], index: 2, kind: input, shape index: {}]
  %s3 = inlined_call_operand.hbm [shape: f32[1,2], index: 3, kind: input, shape index: {}]
  %s4 = inlined_call_operand.vmem [shape: f32[256,2], index: 4, kind: input, shape index: {}]
  %s5 = inlined_call_operand.hbm [shape: f32[1,2], index: 5, kind: input, shape index: {}]
  %s6 = inlined_call_operand.hbm [shape: f32[2,2], index: 6, kind: input, shape index: {}]
  %s7 = inlined_call_operand.hbm [shape: f32[2,2], index: 7, kind: input, shape index: {}]
  %s8 = inlined_call_operand.hbm [shape: f32[1,2], index: 8, kind: input, shape index: {}]
  %s9 = inlined_call_operand.hbm [shape: f32[2,2], index: 9, kind: output, shape index: {}]
  %s10 = sld [smem:[#allocation0]]
  $region66: #{stacked_transformers_forward.3} parent=0
    _
  %s12 = ssub.s32 1, %s10
  %s13 = scalar_select 0, %s12, %s10
  $region1: #{stacked_transformers_forward.3} parent=0
    #allocation2 [shape = 'u8[512]{0}', space=vmem, size = 0x400, scoped, tag = 'input window, operand 3, single buffered']
    #allocation3 [shape = 's32[1]{0}', space=sflag, size = 0x4, scoped, tag = 'scoped memory for stacked_transformers_forward.3']
    #allocation4 [shape = 's32[1]{0}', space=sflag, size = 0x4, scoped, tag = 'scoped memory for stacked_transformers_forward.3']
    #allocation5 [shape = 'u8[512]{0}', space=vmem, size = 0x400, scoped, tag = 'input window, operand 5, single buffered']
    #allocation6 [shape = 's32[1]{0}', space=sflag, size = 0x4, scoped, tag = 'scoped memory for stacked_transformers_forward.3']
    #allocation7 [shape = 'u8[1024]{0}', space=vmem, size = 0x400, scoped, tag = 'input window, operand 6, single buffered']
    #allocation8 [shape = 'u8[1024]{0}', space=vmem, size = 0x400, scoped, tag = 'input window, operand 7, single buffered']
    #allocation9 [shape = 's32[1]{0}', space=sflag, size = 0x4, scoped, tag = 'scoped memory for stacked_transformers_forward.3']
    #allocation10 [shape = 'u8[512]{0}', space=vmem, size = 0x400, scoped, tag = 'input window, operand 8, single buffered']
    #allocation11 [shape = 'u8[1024]{0}', space=vmem, size = 0x400, scoped, tag = 'output window, operand 0, single buffered']
    %14 = vsyncpa [#allocation3], 0
    %15 = vsyncpa [#allocation6], 0
    %16 = vsyncpa [#allocation9], 0
    %17 = vsyncpa [#allocation4], 0
    // Predicated region
    $region2: #{stacked_transformers_forward.3} parent=1 // pred_check
      _
    $region3: #{stacked_transformers_forward.3} parent=1 // pred_check_branch
      %19 = sbr.rel (0) target = $region5
    $region4: #{stacked_transformers_forward.3} parent=1 // pred_region
      _
    $region5: #{stacked_transformers_forward.3} parent=1 // pred_fallthru
      _
    // Predicated region
    $region6: #{stacked_transformers_forward.3} parent=1 // pred_check
      _
    $region7: #{stacked_transformers_forward.3} parent=1 // pred_check_branch
      %21 = sbr.rel (0) target = $region9
    $region8: #{stacked_transformers_forward.3} parent=1 // pred_region
      _
    $region9: #{stacked_transformers_forward.3} parent=1 // pred_fallthru
      _
    // Predicated region
    $region10: #{stacked_transformers_forward.3} parent=1 // pred_check
      _
    $region11: #{stacked_transformers_forward.3} parent=1 // pred_check_branch
      %23 = sbr.rel (0) target = $region13
    $region12: #{stacked_transformers_forward.3} parent=1 // pred_region
      _
    $region13: #{stacked_transformers_forward.3} parent=1 // pred_fallthru
      _
    // Predicated region
    $region14: #{stacked_transformers_forward.3} parent=1 // pred_check
      _
    $region15: #{stacked_transformers_forward.3} parent=1 // pred_check_branch
      %25 = sbr.rel (0) target = $region17
    $region16: #{stacked_transformers_forward.3} parent=1 // pred_region
      %27 = vsyncadd [#allocation3], 0
      %s29 = sshll.u32 %s3, 4
      %s30 = int_to_ptr.hbm [resolvable:$true] %s29
      %s31 = sshll.u32 [#allocation2], 4
      %s32 = int_to_ptr.vmem [resolvable:$true] %s31
      %34 = dma.hbm_to_vmem [thread:$0]  %s30, 16, %s32, [#allocation3]
    $region17: #{stacked_transformers_forward.3} parent=1 // pred_fallthru
      _
    // Predicated region
    $region18: #{stacked_transformers_forward.3} parent=1 // pred_check
      _
    $region19: #{stacked_transformers_forward.3} parent=1 // pred_check_branch
      %36 = sbr.rel (0) target = $region21
    $region20: #{stacked_transformers_forward.3} parent=1 // pred_region
      _
    $region21: #{stacked_transformers_forward.3} parent=1 // pred_fallthru
      _
    // Predicated region
    $region22: #{stacked_transformers_forward.3} parent=1 // pred_check
      _
    $region23: #{stacked_transformers_forward.3} parent=1 // pred_check_branch
      %38 = sbr.rel (0) target = $region25
    $region24: #{stacked_transformers_forward.3} parent=1 // pred_region
      %40 = vsyncadd [#allocation6], 0
      %s42 = sshll.u32 %s5, 4
      %s43 = int_to_ptr.hbm [resolvable:$true] %s42
      %s44 = sshll.u32 [#allocation5], 4
      %s45 = int_to_ptr.vmem [resolvable:$true] %s44
      %47 = dma.hbm_to_vmem [thread:$0]  %s43, 16, %s45, [#allocation6]
    $region25: #{stacked_transformers_forward.3} parent=1 // pred_fallthru
      _
    // Predicated region
    $region26: #{stacked_transformers_forward.3} parent=1 // pred_check
      _
    $region27: #{stacked_transformers_forward.3} parent=1 // pred_check_branch
      %49 = sbr.rel (0) target = $region29
    $region28: #{stacked_transformers_forward.3} parent=1 // pred_region
      %51 = vsyncadd [#allocation6], 0
      %s53 = sshll.u32 %s6, 4
      %s54 = int_to_ptr.hbm [resolvable:$true] %s53
      %s55 = sshll.u32 [#allocation7], 4
      %s56 = int_to_ptr.vmem [resolvable:$true] %s55
      %58 = dma.hbm_to_vmem [thread:$0]  %s54, 32, %s56, [#allocation6]
    $region29: #{stacked_transformers_forward.3} parent=1 // pred_fallthru
      _
    // Predicated region
    $region30: #{stacked_transformers_forward.3} parent=1 // pred_check
      _
    $region31: #{stacked_transformers_forward.3} parent=1 // pred_check_branch
      %60 = sbr.rel (0) target = $region33
    $region32: #{stacked_transformers_forward.3} parent=1 // pred_region
      %62 = vsyncadd [#allocation9], 0
      %s64 = sshll.u32 %s7, 4
      %s65 = int_to_ptr.hbm [resolvable:$true] %s64
      %s66 = sshll.u32 [#allocation8], 4
      %s67 = int_to_ptr.vmem [resolvable:$true] %s66
      %69 = dma.hbm_to_vmem [thread:$0]  %s65, 32, %s67, [#allocation9]
    $region33: #{stacked_transformers_forward.3} parent=1 // pred_fallthru
      _
    // Predicated region
    $region34: #{stacked_transformers_forward.3} parent=1 // pred_check
      _
    $region35: #{stacked_transformers_forward.3} parent=1 // pred_check_branch
      %71 = sbr.rel (0) target = $region37
    $region36: #{stacked_transformers_forward.3} parent=1 // pred_region
      %73 = vsyncadd [#allocation9], 0
      %s75 = sshll.u32 %s8, 4
      %s76 = int_to_ptr.hbm [resolvable:$true] %s75
      %s77 = sshll.u32 [#allocation10], 4
      %s78 = int_to_ptr.vmem [resolvable:$true] %s77
      %80 = dma.hbm_to_vmem [thread:$0]  %s76, 16, %s78, [#allocation9]
    $region37: #{stacked_transformers_forward.3} parent=1 // pred_fallthru
      _
    // Predicated region
    $region38: #{stacked_transformers_forward.3} parent=1 // pred_check
      _
    $region39: #{stacked_transformers_forward.3} parent=1 // pred_check_branch
      %82 = sbr.rel (0) target = $region41
    $region40: #{stacked_transformers_forward.3} parent=1 // pred_region
      %84 = dma.done [#allocation3], 16
    $region41: #{stacked_transformers_forward.3} parent=1 // pred_fallthru
      _
    // Predicated region
    $region42: #{stacked_transformers_forward.3} parent=1 // pred_check
      _
    $region43: #{stacked_transformers_forward.3} parent=1 // pred_check_branch
      %86 = sbr.rel (0) target = $region45
    $region44: #{stacked_transformers_forward.3} parent=1 // pred_region
      %88 = dma.done [#allocation6], 16
    $region45: #{stacked_transformers_forward.3} parent=1 // pred_fallthru
      _
    // Predicated region
    $region46: #{stacked_transformers_forward.3} parent=1 // pred_check
      _
    $region47: #{stacked_transformers_forward.3} parent=1 // pred_check_branch
      %90 = sbr.rel (0) target = $region49
    $region48: #{stacked_transformers_forward.3} parent=1 // pred_region
      %92 = dma.done [#allocation6], 32
    $region49: #{stacked_transformers_forward.3} parent=1 // pred_fallthru
      _
    // Predicated region
    $region50: #{stacked_transformers_forward.3} parent=1 // pred_check
      _
    $region51: #{stacked_transformers_forward.3} parent=1 // pred_check_branch
      %94 = sbr.rel (0) target = $region53
    $region52: #{stacked_transformers_forward.3} parent=1 // pred_region
      %96 = dma.done [#allocation9], 32
    $region53: #{stacked_transformers_forward.3} parent=1 // pred_fallthru
      _
    // Predicated region
    $region54: #{stacked_transformers_forward.3} parent=1 // pred_check
      _
    $region55: #{stacked_transformers_forward.3} parent=1 // pred_check_branch
      %98 = sbr.rel (0) target = $region57
    $region56: #{stacked_transformers_forward.3} parent=1 // pred_region
      %100 = dma.done [#allocation9], 16
    $region57: #{stacked_transformers_forward.3} parent=1 // pred_fallthru
      _
    %v101 = vld [vmem:[%s0] sm:$0xf]
    %v102 = vld [vmem:[%s2] sm:$0xff]
    %v103 = vld [vmem:[%s2 + $0x8] sm:$0xff]
    %v104 = vld [vmem:[%s2 + $0x10] sm:$0xff]
    %v105 = vld [vmem:[%s2 + $0x18] sm:$0xff]
    %v106 = vld [vmem:[%s2 + $0x20] sm:$0xff]
    %v107 = vld [vmem:[%s2 + $0x28] sm:$0xff]
    %v108 = vld [vmem:[%s2 + $0x30] sm:$0xff]
    %v109 = vld [vmem:[%s2 + $0x38] sm:$0xff]
    %v110 = vld [vmem:[%s2 + $0x40] sm:$0xff]
    %v111 = vld [vmem:[%s2 + $0x48] sm:$0xff]
    %v112 = vld [vmem:[%s2 + $0x50] sm:$0xff]
    %v113 = vld [vmem:[%s2 + $0x58] sm:$0xff]
    %v114 = vld [vmem:[%s2 + $0x60] sm:$0xff]
    %v115 = vld [vmem:[%s2 + $0x68] sm:$0xff]
    %v116 = vld [vmem:[%s2 + $0x70] sm:$0xff]
    %v117 = vld [vmem:[%s2 + $0x78] sm:$0xff]
    %v118 = vld [vmem:[%s2 + $0x80] sm:$0xff]
    %v119 = vld [vmem:[%s2 + $0x88] sm:$0xff]
    %v120 = vld [vmem:[%s2 + $0x90] sm:$0xff]
    %v121 = vld [vmem:[%s2 + $0x98] sm:$0xff]
    %v122 = vld [vmem:[%s2 + $0xa0] sm:$0xff]
    %v123 = vld [vmem:[%s2 + $0xa8] sm:$0xff]
    %v124 = vld [vmem:[%s2 + $0xb0] sm:$0xff]
    %v125 = vld [vmem:[%s2 + $0xb8] sm:$0xff]
    %v126 = vld [vmem:[%s2 + $0xc0] sm:$0xff]
    %v127 = vld [vmem:[%s2 + $0xc8] sm:$0xff]
    %v128 = vld [vmem:[%s2 + $0xd0] sm:$0xff]
    %v129 = vld [vmem:[%s2 + $0xd8] sm:$0xff]
    %v130 = vld [vmem:[%s2 + $0xe0] sm:$0xff]
    %v131 = vld [vmem:[%s2 + $0xe8] sm:$0xff]
    %v132 = vld [vmem:[%s2 + $0xf0] sm:$0xff]
    %v133 = vld [vmem:[%s2 + $0xf8] sm:$0xff]
    %v134 = vld [vmem:[#allocation2] sm:$0x1]
    %v136 = vperm.slane %v134, 0
    %139 = vst [vmem:[#allocation1] ss:$4 sm:$0xff] %v101
    %v140 = vld.sshfl [vmem:[#allocation1] sm:$0xff pattern:$0x73625140]
    %v141 = vld.sshfl [vmem:[#allocation1 + $0x8] sm:$0xff pattern:$0x73625140]
    %144 = vmatpush.msra.mxu0 %v117
    %145 = vmatpush.msra.mxu0 %v116
    %146 = vmatpush.msra.mxu0 %v115
    %147 = vmatpush.msra.mxu0 %v114
    %148 = vmatpush.msra.mxu0 %v113
    %149 = vmatpush.msra.mxu0 %v112
    %150 = vmatpush.msra.mxu0 %v111
    %151 = vmatpush.msra.mxu0 %v110
    %152 = vmatpush.msra.mxu0 %v109
    %153 = vmatpush.msra.mxu0 %v108
    %154 = vmatpush.msra.mxu0 %v107
    %155 = vmatpush.msra.mxu0 %v106
    %156 = vmatpush.msra.mxu0 %v105
    %157 = vmatpush.msra.mxu0 %v104
    %158 = vmatpush.msra.mxu0 %v103
    %159 = vmatpush.msra.mxu0 %v102
    %160 = vmatmul.f32.gmra.mxu0 %v140
    %v161 = vpop.f32.mrf.mxu0
    %v162 = vadd.f32 %v136, %v161
    %163 = vdwg.mxu0
    %164 = vmatpush.msra.mxu0 %v133
    %165 = vmatpush.msra.mxu0 %v132
    %166 = vmatpush.msra.mxu0 %v131
    %167 = vmatpush.msra.mxu0 %v130
    %168 = vmatpush.msra.mxu0 %v129
    %169 = vmatpush.msra.mxu0 %v128
    %170 = vmatpush.msra.mxu0 %v127
    %171 = vmatpush.msra.mxu0 %v126
    %172 = vmatpush.msra.mxu0 %v125
    %173 = vmatpush.msra.mxu0 %v124
    %174 = vmatpush.msra.mxu0 %v123
    %175 = vmatpush.msra.mxu0 %v122
    %176 = vmatpush.msra.mxu0 %v121
    %177 = vmatpush.msra.mxu0 %v120
    %178 = vmatpush.msra.mxu0 %v119
    %179 = vmatpush.msra.mxu0 %v118
    %180 = vmatmul.f32.gmra.mxu0 %v141
    %v181 = vpop.f32.mrf.mxu0
    %v182 = vadd.f32 %v162, %v181
    %183 = vdwg.mxu0
    %v184 = vld [vmem:[%s1] sm:$0xf]
    %v185 = vld [vmem:[%s4] sm:$0xff]
    %v186 = vld [vmem:[%s4 + $0x8] sm:$0xff]
    %v187 = vld [vmem:[%s4 + $0x10] sm:$0xff]
    %v188 = vld [vmem:[%s4 + $0x18] sm:$0xff]
    %v189 = vld [vmem:[%s4 + $0x20] sm:$0xff]
    %v190 = vld [vmem:[%s4 + $0x28] sm:$0xff]
    %v191 = vld [vmem:[%s4 + $0x30] sm:$0xff]
    %v192 = vld [vmem:[%s4 + $0x38] sm:$0xff]
    %v193 = vld [vmem:[%s4 + $0x40] sm:$0xff]
    %v194 = vld [vmem:[%s4 + $0x48] sm:$0xff]
    %v195 = vld [vmem:[%s4 + $0x50] sm:$0xff]
    %v196 = vld [vmem:[%s4 + $0x58] sm:$0xff]
    %v197 = vld [vmem:[%s4 + $0x60] sm:$0xff]
    %v198 = vld [vmem:[%s4 + $0x68] sm:$0xff]
    %v199 = vld [vmem:[%s4 + $0x70] sm:$0xff]
    %v200 = vld [vmem:[%s4 + $0x78] sm:$0xff]
    %v201 = vld [vmem:[%s4 + $0x80] sm:$0xff]
    %v202 = vld [vmem:[%s4 + $0x88] sm:$0xff]
    %v203 = vld [vmem:[%s4 + $0x90] sm:$0xff]
    %v204 = vld [vmem:[%s4 + $0x98] sm:$0xff]
    %v205 = vld [vmem:[%s4 + $0xa0] sm:$0xff]
    %v206 = vld [vmem:[%s4 + $0xa8] sm:$0xff]
    %v207 = vld [vmem:[%s4 + $0xb0] sm:$0xff]
    %v208 = vld [vmem:[%s4 + $0xb8] sm:$0xff]
    %v209 = vld [vmem:[%s4 + $0xc0] sm:$0xff]
    %v210 = vld [vmem:[%s4 + $0xc8] sm:$0xff]
    %v211 = vld [vmem:[%s4 + $0xd0] sm:$0xff]
    %v212 = vld [vmem:[%s4 + $0xd8] sm:$0xff]
    %v213 = vld [vmem:[%s4 + $0xe0] sm:$0xff]
    %v214 = vld [vmem:[%s4 + $0xe8] sm:$0xff]
    %v215 = vld [vmem:[%s4 + $0xf0] sm:$0xff]
    %v216 = vld [vmem:[%s4 + $0xf8] sm:$0xff]
    %v217 = vld [vmem:[#allocation5] sm:$0x1]
    %v219 = vperm.slane %v217, 0
    %222 = vst [vmem:[#allocation1] ss:$4 sm:$0xff] %v184
    %v223 = vld.sshfl [vmem:[#allocation1] sm:$0xff pattern:$0x73625140]
    %v224 = vld.sshfl [vmem:[#allocation1 + $0x8] sm:$0xff pattern:$0x73625140]
    %227 = vmatpush.msra.mxu0 %v200
    %228 = vmatpush.msra.mxu0 %v199
    %229 = vmatpush.msra.mxu0 %v198
    %230 = vmatpush.msra.mxu0 %v197
    %231 = vmatpush.msra.mxu0 %v196
    %232 = vmatpush.msra.mxu0 %v195
    %233 = vmatpush.msra.mxu0 %v194
    %234 = vmatpush.msra.mxu0 %v193
    %235 = vmatpush.msra.mxu0 %v192
    %236 = vmatpush.msra.mxu0 %v191
    %237 = vmatpush.msra.mxu0 %v190
    %238 = vmatpush.msra.mxu0 %v189
    %239 = vmatpush.msra.mxu0 %v188
    %240 = vmatpush.msra.mxu0 %v187
    %241 = vmatpush.msra.mxu0 %v186
    %242 = vmatpush.msra.mxu0 %v185
    %243 = vmatmul.f32.gmra.mxu0 %v223
    %v244 = vpop.f32.mrf.mxu0
    %v245 = vadd.f32 %v219, %v244
    %246 = vdwg.mxu0
    %247 = vmatpush.msra.mxu0 %v216
    %248 = vmatpush.msra.mxu0 %v215
    %249 = vmatpush.msra.mxu0 %v214
    %250 = vmatpush.msra.mxu0 %v213
    %251 = vmatpush.msra.mxu0 %v212
    %252 = vmatpush.msra.mxu0 %v211
    %253 = vmatpush.msra.mxu0 %v210
    %254 = vmatpush.msra.mxu0 %v209
    %255 = vmatpush.msra.mxu0 %v208
    %256 = vmatpush.msra.mxu0 %v207
    %257 = vmatpush.msra.mxu0 %v206
    %258 = vmatpush.msra.mxu0 %v205
    %259 = vmatpush.msra.mxu0 %v204
    %260 = vmatpush.msra.mxu0 %v203
    %261 = vmatpush.msra.mxu0 %v202
    %262 = vmatpush.msra.mxu0 %v201
    %263 = vmatmul.f32.gmra.mxu0 %v224
    %v264 = vpop.f32.mrf.mxu0
    %v265 = vadd.f32 %v245, %v264
    %266 = vdwg.mxu0
    %v267 = vld [vmem:[#allocation7] sm:$0x3]
    %v268 = vld [vmem:[#allocation8] sm:$0x3]
    %vm269 = vcmask 15360
    %v271 = vsel %vm269, %v265, 0
    %vm273 = vcmask 1041408
    %v275 = vsel %vm273, %v268, 0
    %277 = vmatpush.msra.mxu0 0.0
    %278 = vmatpush.msra.mxu0 0.0
    %279 = vmatpush.msra.mxu0 0.0
    %280 = vmatpush.msra.mxu0 0.0
    %281 = vmatpush.msra.mxu0 0.0
    %282 = vmatpush.msra.mxu0 0.0
    %283 = vmatpush.msra.mxu0 0.0
    %284 = vmatpush.msra.mxu0 0.0
    %285 = vmatpush.msra.mxu0 0.0
    %286 = vmatpush.msra.mxu0 0.0
    %287 = vmatpush.msra.mxu0 0.0
    %288 = vmatpush.msra.mxu0 0.0
    %289 = vmatpush.msra.mxu0 0.0
    %290 = vmatpush.msra.mxu0 0.0
    %291 = vmatpush.msra.mxu0 0.0
    %292 = vmatpush.msra.mxu0 %v275
    %293 = vmatmul.f32.gmra.mxu0 %v271
    %v294 = vpop.f32.mrf.mxu0
    %v295 = vadd.f32 0.0, %v294
    %296 = vdwg.mxu0
    %v298 = vsel %vm269, %v182, 0
    %v301 = vsel %vm273, %v267, 0
    %303 = vmatpush.msra.mxu0 0.0
    %304 = vmatpush.msra.mxu0 0.0
    %305 = vmatpush.msra.mxu0 0.0
    %306 = vmatpush.msra.mxu0 0.0
    %307 = vmatpush.msra.mxu0 0.0
    %308 = vmatpush.msra.mxu0 0.0
    %309 = vmatpush.msra.mxu0 0.0
    %310 = vmatpush.msra.mxu0 0.0
    %311 = vmatpush.msra.mxu0 0.0
    %312 = vmatpush.msra.mxu0 0.0
    %313 = vmatpush.msra.mxu0 0.0
    %314 = vmatpush.msra.mxu0 0.0
    %315 = vmatpush.msra.mxu0 0.0
    %316 = vmatpush.msra.mxu0 0.0
    %317 = vmatpush.msra.mxu0 0.0
    %318 = vmatpush.msra.mxu0 %v301
    %319 = vmatmul.f32.gmra.mxu0 %v298
    %v320 = vpop.f32.mrf.mxu0
    %v321 = vadd.f32 %v295, %v320
    %322 = vdwg.mxu0
    %v323 = vld [vmem:[#allocation10] sm:$0x1]
    %v325 = vperm.slane %v323, 0
    %v327 = vadd.f32 %v321, %v325
    %vm328 = vcmask 9216
    %v329 = vsel %vm328, %v327, -inf
    %330 = vmax.xlane.f32.xlu0 %v329
    %v331 = vpop.xlane.xlu0 %330
    %v332 = vsub.f32 %v327, %v331
    %v333 = vmul.f32 %v332, 1.442695
    %v334 = vpow.pop %v333
    %v335 = vsel %vm328, %v334, 0.0
    %336 = vadd.xlane.f32.xlu0 %v335
    %v337 = vpop.xlane.xlu0 %336
    %v338 = vrcp.pop %v337
    %v339 = vmul.f32 %v337, %v338
    %v340 = vsub.f32 1.0, %v339
    %v341 = vmul.f32 %v338, %v340
    %v342 = vadd.f32 %v338, %v341
    %vm343 = vweird.f32 %v337
    %vm344 = vweird.f32 %v338
    %vm345 = vmor %vm343, %vm344
    %v346 = vsel %vm345, %v338, %v342
    %v347 = vand.u32 2147483647, %v337
    %vm348 = vcmp.eq.f32.partialorder %v347, 8.507059e+37
    %v349 = vand.u32 %v337, 2147483648
    %v350 = vor.u32 1.1754944e-38, %v349
    %v351 = vsel %vm348, %v350, %v346
    %v352 = vmul.f32 %v334, %v351
    %353 = vst.msk [vmem:[#allocation11] sm:$0x3] %vm328, %v352
    // Predicated region
    $region58: #{stacked_transformers_forward.3} parent=1 // pred_check
      _
    $region59: #{stacked_transformers_forward.3} parent=1 // pred_check_branch
      %355 = sbr.rel (0) target = $region61
    $region60: #{stacked_transformers_forward.3} parent=1 // pred_region
      %357 = vsyncadd [#allocation4], 0
      %s359 = sshll.u32 [#allocation11], 4
      %s360 = int_to_ptr.vmem [resolvable:$true] %s359
      %s361 = sshll.u32 %s9, 4
      %s362 = int_to_ptr.hbm [resolvable:$true] %s361
      %364 = dma.vmem_to_hbm [thread:$0]  %s360, 32, %s362, [#allocation4]
    $region61: #{stacked_transformers_forward.3} parent=1 // pred_fallthru
      _
    // Predicated region
    $region62: #{stacked_transformers_forward.3} parent=1 // pred_check
      _
    $region63: #{stacked_transformers_forward.3} parent=1 // pred_check_branch
      %366 = sbr.rel (0) target = $region65
    $region64: #{stacked_transformers_forward.3} parent=1 // pred_region
      %368 = dma.done [#allocation4], 32
    $region65: #{stacked_transformers_forward.3} parent=1 // pred_fallthru
      _
    %369 = vsyncpa [#allocation3], 1
    %370 = vsyncpa [#allocation6], 1
    %371 = vsyncpa [#allocation9], 1
    %372 = vsyncpa [#allocation4], 1

// kernel: stacked_transformers_forward.2
$region0: #{stacked_transformers_forward.2}
  #allocation0 [shape = 'u32[]', space=smem, size = 0x4, offset = 0x4, fixed_abs, tag = 'smem constant byte address 0x4 - core index']
  #allocation1 [shape = 'u32[72,128]{1,0:T(1,128)}', space=vmem, size = 0x9000, scoped, tag = 'internal scratch']
  #allocation2 [shape = 'f32[8,256]{1,0:T(8,128)}', space=vmem, size = 0x2000, scoped, tag = 'scratch operand']
  %s0 = inlined_call_operand.vmem [shape: f32[2,2,8,256], index: 0, kind: input, shape index: {}]
  %s1 = inlined_call_operand.hbm [shape: bf16[2,6,256,768], index: 1, kind: input, shape index: {}]
  %s2 = inlined_call_operand.hbm [shape: f32[2,6,1,768], index: 2, kind: input, shape index: {}]
  %s3 = inlined_call_operand.hbm [shape: bf16[2,6,256,256], index: 3, kind: input, shape index: {}]
  %s4 = inlined_call_operand.hbm [shape: f32[2,6,1,256], index: 4, kind: input, shape index: {}]
  %s5 = inlined_call_operand.hbm [shape: f32[2,6,1,256], index: 5, kind: input, shape index: {}]
  %s6 = inlined_call_operand.hbm [shape: f32[2,6,1,256], index: 6, kind: input, shape index: {}]
  %s7 = inlined_call_operand.hbm [shape: bf16[2,6,256,1024], index: 7, kind: input, shape index: {}]
  %s8 = inlined_call_operand.hbm [shape: f32[2,6,1,1024], index: 8, kind: input, shape index: {}]
  %s9 = inlined_call_operand.hbm [shape: bf16[2,6,1024,256], index: 9, kind: input, shape index: {}]
  %s10 = inlined_call_operand.hbm [shape: f32[2,6,1,256], index: 10, kind: input, shape index: {}]
  %s11 = inlined_call_operand.hbm [shape: f32[2,6,1,256], index: 11, kind: input, shape index: {}]
  %s12 = inlined_call_operand.hbm [shape: f32[2,6,1,256], index: 12, kind: input, shape index: {}]
  %s13 = inlined_call_operand.vmem [shape: f32[2,2,1,256], index: 13, kind: output, shape index: {}]
  %s14 = sld [smem:[#allocation0]]
  $region141: #{stacked_transformers_forward.2} parent=0
    _
  %s16 = ssub.s32 1, %s14
  %s17 = scalar_select 0, %s16, %s14
  $region1: #{stacked_transformers_forward.2} parent=0
    #allocation3 [shape = 'u8[786432]{0}', space=vmem, size = 0xc0000, scoped, tag = 'input window, operand 1']
    #allocation4 [shape = 's32[2]{0}', space=sflag, size = 0x8, scoped, tag = 'scoped memory for stacked_transformers_forward.2']
    #allocation5 [shape = 'u8[6144]{0}', space=vmem, size = 0x1800, scoped, tag = 'input window, operand 2']
    #allocation6 [shape = 's32[2]{0}', space=sflag, size = 0x8, scoped, tag = 'scoped memory for stacked_transformers_forward.2']
    #allocation7 [shape = 'u8[262144]{0}', space=vmem, size = 0x40000, scoped, tag = 'input window, operand 3']
    #allocation8 [shape = 'u8[2048]{0}', space=vmem, size = 0x800, scoped, tag = 'input window, operand 4']
    #allocation9 [shape = 's32[2]{0}', space=sflag, size = 0x8, scoped, tag = 'scoped memory for stacked_transformers_forward.2']
    #allocation10 [shape = 'u8[2048]{0}', space=vmem, size = 0x800, scoped, tag = 'input window, operand 5']
    #allocation11 [shape = 'u8[2048]{0}', space=vmem, size = 0x800, scoped, tag = 'input window, operand 6']
    #allocation12 [shape = 's32[2]{0}', space=sflag, size = 0x8, scoped, tag = 'scoped memory for stacked_transformers_forward.2']
    #allocation13 [shape = 'u8[1048576]{0}', space=vmem, size = 0x100000, scoped, tag = 'input window, operand 7']
    #allocation14 [shape = 'u8[8192]{0}', space=vmem, size = 0x2000, scoped, tag = 'input window, operand 8']
    #allocation15 [shape = 's32[2]{0}', space=sflag, size = 0x8, scoped, tag = 'scoped memory for stacked_transformers_forward.2']
    #allocation16 [shape = 'u8[1048576]{0}', space=vmem, size = 0x100000, scoped, tag = 'input window, operand 9']
    #allocation17 [shape = 'u8[2048]{0}', space=vmem, size = 0x800, scoped, tag = 'input window, operand 10']
    #allocation18 [shape = 's32[2]{0}', space=sflag, size = 0x8, scoped, tag = 'scoped memory for stacked_transformers_forward.2']
    #allocation19 [shape = 'u8[2048]{0}', space=vmem, size = 0x800, scoped, tag = 'input window, operand 11']
    #allocation20 [shape = 'u8[2048]{0}', space=vmem, size = 0x800, scoped, tag = 'input window, operand 12']
    #allocation21 [shape = 's32[2]{0}', space=sflag, size = 0x8, scoped, tag = 'scoped memory for stacked_transformers_forward.2']
    %18 = vsyncpa [#allocation4], 0
    %s19 = scalar_lea.sflag [#allocation4], 1
    %20 = vsyncpa %s19, 0
    %21 = vsyncpa [#allocation6], 0
    %s22 = scalar_lea.sflag [#allocation6], 1
    %23 = vsyncpa %s22, 0
    %24 = vsyncpa [#allocation9], 0
    %s25 = scalar_lea.sflag [#allocation9], 1
    %26 = vsyncpa %s25, 0
    %27 = vsyncpa [#allocation12], 0
    %s28 = scalar_lea.sflag [#allocation12], 1
    %29 = vsyncpa %s28, 0
    %30 = vsyncpa [#allocation15], 0
    %s31 = scalar_lea.sflag [#allocation15], 1
    %32 = vsyncpa %s31, 0
    %33 = vsyncpa [#allocation18], 0
    %s34 = scalar_lea.sflag [#allocation18], 1
    %35 = vsyncpa %s34, 0
    %36 = vsyncpa [#allocation21], 0
    %s37 = scalar_lea.sflag [#allocation21], 1
    %38 = vsyncpa %s37, 0
    loop: start=0, step=1, limit=26
    $region2: #{stacked_transformers_forward.2} parent=1 // loop_pre_header
      _
    $region3: #{stacked_transformers_forward.2} parent=1 // loop_header
      %s40 = sphi 0, %s44
      %p41 = scmp.ge.s32.totalorder %s40, 26
      %s47 = sphi 0, %s66
      %s48 = sphi 0, %s62
      %s49 = sphi 0, %s58
      %s50 = sphi 0, %s47
      %s51 = sphi 0, %s48
      %s52 = sphi 0, %s49
      %s53 = sphi 0, %s50
      %s54 = sphi 0, %s51
      %s55 = sphi 0, %s52
      %s71 = sphi 0, %s73
      %s74 = sphi 0, %s71
      %s75 = sphi 0, %s74
      %s91 = sphi 0, %s75
      %s99 = sphi 0, %s101
      %s102 = sphi 0, %s99
      %s103 = sphi 0, %s102
      %s119 = sphi 0, %s103
      %s127 = sphi 0, %s129
      %s130 = sphi 0, %s127
      %s131 = sphi 0, %s130
      %s147 = sphi 0, %s131
      %s155 = sphi 0, %s157
      %s158 = sphi 0, %s155
      %s159 = sphi 0, %s158
      %s175 = sphi 0, %s159
      %s183 = sphi 0, %s185
      %s186 = sphi 0, %s183
      %s187 = sphi 0, %s186
      %s203 = sphi 0, %s187
      %s211 = sphi 0, %s213
      %s214 = sphi 0, %s211
      %s215 = sphi 0, %s214
      %s231 = sphi 0, %s215
      %s239 = sphi 0, %s241
      %s242 = sphi 0, %s239
      %s243 = sphi 0, %s242
      %s259 = sphi 0, %s243
      %s267 = sphi 0, %s269
      %s270 = sphi 0, %s267
      %s271 = sphi 0, %s270
      %s287 = sphi 0, %s271
      %s295 = sphi 0, %s297
      %s298 = sphi 0, %s295
      %s299 = sphi 0, %s298
      %s315 = sphi 0, %s299
      %s323 = sphi 0, %s325
      %s326 = sphi 0, %s323
      %s327 = sphi 0, %s326
      %s343 = sphi 0, %s327
      %s351 = sphi 0, %s353
      %s354 = sphi 0, %s351
      %s355 = sphi 0, %s354
      %s371 = sphi 0, %s355
      %s379 = sphi 0, %s381
      %s382 = sphi 0, %s379
      %s383 = sphi 0, %s382
      %s399 = sphi 0, %s383
      %s407 = sphi 0, %s409
      %s410 = sphi 0, %s407
      %s411 = sphi 0, %s410
      %s427 = sphi 0, %s411
      %s435 = sphi 0, %s437
      %s438 = sphi 0, %s435
      %s439 = sphi 0, %s438
      %s455 = sphi 0, %s439
    $region4: #{stacked_transformers_forward.2} parent=1 // loop_header_branch
      %43 = sbr.rel (%p41) target = $region8
    $region5: #{stacked_transformers_forward.2} parent=1 // loop_body
      %s45 = ssub.s32 %s40, 1
      %s46 = ssub.s32 %s40, 2
      %s56 = sadd.s32 1, %s49
      %p57 = scmp.ge.s32.totalorder %s56, 6
      %s58 = scalar_select %p57, 0, %s56
      %s59 = sadd.s32 1, %s48
      %s60 = scalar_select %p57, %s59, %s48
      %p61 = scmp.ge.s32.totalorder %s60, 2
      %s62 = scalar_select %p61, 0, %s60
      %s63 = sadd.s32 1, %s47
      %s64 = scalar_select %p61, %s63, %s47
      %p65 = scmp.ge.s32.totalorder %s64, 2
      %s66 = scalar_select %p65, 0, %s64
      %s67 = ssub.s32 %s47, %s66
      %s68 = ssub.s32 %s48, %s62
      %s69 = sor.u32 %s67, %s68
      %p70 = scmp.eq.s32.totalorder %s69, 0
      %s72 = sadd.s32 %s71, 1
      %s73 = scalar_select %p70, %s71, %s72
      %p76 = pneg %p70
      %p77 = scmp.eq.s32.totalorder %s40, 23
      %p78 = por %p76, %p77
      %p79 = scmp.ne.s32.totalorder %s71, %s74
      %p80 = scmp.eq.s32.totalorder %s40, 0
      %p81 = por %p79, %p80
      %p82 = scmp.ne.s32.totalorder %s71, %s74
      %p83 = scmp.eq.s32.totalorder %s45, 23
      %p84 = por %p82, %p83
      %p85 = scmp.ne.s32.totalorder %s74, %s75
      %p86 = scmp.eq.s32.totalorder %s45, 0
      %p87 = por %p85, %p86
      %p88 = scmp.ne.s32.totalorder %s74, %s75
      %p89 = scmp.eq.s32.totalorder %s46, 23
      %p90 = por %p88, %p89
      %p92 = scmp.ne.s32.totalorder %s75, %s91
      %p93 = scmp.eq.s32.totalorder %s46, 0
      %p94 = por %p92, %p93
      %s95 = ssub.s32 %s47, %s66
      %s96 = ssub.s32 %s49, %s58
      %s97 = sor.u32 %s95, %s96
      %p98 = scmp.eq.s32.totalorder %s97, 0
      %s100 = sadd.s32 %s99, 1
      %s101 = scalar_select %p98, %s99, %s100
      %p104 = pneg %p98
      %p105 = scmp.eq.s32.totalorder %s40, 23
      %p106 = por %p104, %p105
      %p107 = scmp.ne.s32.totalorder %s99, %s102
      %p108 = scmp.eq.s32.totalorder %s40, 0
      %p109 = por %p107, %p108
      %p110 = scmp.ne.s32.totalorder %s99, %s102
      %p111 = scmp.eq.s32.totalorder %s45, 23
      %p112 = por %p110, %p111
      %p113 = scmp.ne.s32.totalorder %s102, %s103
      %p114 = scmp.eq.s32.totalorder %s45, 0
      %p115 = por %p113, %p114
      %p116 = scmp.ne.s32.totalorder %s102, %s103
      %p117 = scmp.eq.s32.totalorder %s46, 23
      %p118 = por %p116, %p117
      %p120 = scmp.ne.s32.totalorder %s103, %s119
      %p121 = scmp.eq.s32.totalorder %s46, 0
      %p122 = por %p120, %p121
      %s123 = ssub.s32 %s47, %s66
      %s124 = ssub.s32 %s49, %s58
      %s125 = sor.u32 %s123, %s124
      %p126 = scmp.eq.s32.totalorder %s125, 0
      %s128 = sadd.s32 %s127, 1
      %s129 = scalar_select %p126, %s127, %s128
      %p132 = pneg %p126
      %p133 = scmp.eq.s32.totalorder %s40, 23
      %p134 = por %p132, %p133
      %p135 = scmp.ne.s32.totalorder %s127, %s130
      %p136 = scmp.eq.s32.totalorder %s40, 0
      %p137 = por %p135, %p136
      %p138 = scmp.ne.s32.totalorder %s127, %s130
      %p139 = scmp.eq.s32.totalorder %s45, 23
      %p140 = por %p138, %p139
      %p141 = scmp.ne.s32.totalorder %s130, %s131
      %p142 = scmp.eq.s32.totalorder %s45, 0
      %p143 = por %p141, %p142
      %p144 = scmp.ne.s32.totalorder %s130, %s131
      %p145 = scmp.eq.s32.totalorder %s46, 23
      %p146 = por %p144, %p145
      %p148 = scmp.ne.s32.totalorder %s131, %s147
      %p149 = scmp.eq.s32.totalorder %s46, 0
      %p150 = por %p148, %p149
      %s151 = ssub.s32 %s47, %s66
      %s152 = ssub.s32 %s49, %s58
      %s153 = sor.u32 %s151, %s152
      %p154 = scmp.eq.s32.totalorder %s153, 0
      %s156 = sadd.s32 %s155, 1
      %s157 = scalar_select %p154, %s155, %s156
      %p160 = pneg %p154
      %p161 = scmp.eq.s32.totalorder %s40, 23
      %p162 = por %p160, %p161
      %p163 = scmp.ne.s32.totalorder %s155, %s158
      %p164 = scmp.eq.s32.totalorder %s40, 0
      %p165 = por %p163, %p164
      %p166 = scmp.ne.s32.totalorder %s155, %s158
      %p167 = scmp.eq.s32.totalorder %s45, 23
      %p168 = por %p166, %p167
      %p169 = scmp.ne.s32.totalorder %s158, %s159
      %p170 = scmp.eq.s32.totalorder %s45, 0
      %p171 = por %p169, %p170
      %p172 = scmp.ne.s32.totalorder %s158, %s159
      %p173 = scmp.eq.s32.totalorder %s46, 23
      %p174 = por %p172, %p173
      %p176 = scmp.ne.s32.totalorder %s159, %s175
      %p177 = scmp.eq.s32.totalorder %s46, 0
      %p178 = por %p176, %p177
      %s179 = ssub.s32 %s47, %s66
      %s180 = ssub.s32 %s49, %s58
      %s181 = sor.u32 %s179, %s180
      %p182 = scmp.eq.s32.totalorder %s181, 0
      %s184 = sadd.s32 %s183, 1
      %s185 = scalar_select %p182, %s183, %s184
      %p188 = pneg %p182
      %p189 = scmp.eq.s32.totalorder %s40, 23
      %p190 = por %p188, %p189
      %p191 = scmp.ne.s32.totalorder %s183, %s186
      %p192 = scmp.eq.s32.totalorder %s40, 0
      %p193 = por %p191, %p192
      %p194 = scmp.ne.s32.totalorder %s183, %s186
      %p195 = scmp.eq.s32.totalorder %s45, 23
      %p196 = por %p194, %p195
      %p197 = scmp.ne.s32.totalorder %s186, %s187
      %p198 = scmp.eq.s32.totalorder %s45, 0
      %p199 = por %p197, %p198
      %p200 = scmp.ne.s32.totalorder %s186, %s187
      %p201 = scmp.eq.s32.totalorder %s46, 23
      %p202 = por %p200, %p201
      %p204 = scmp.ne.s32.totalorder %s187, %s203
      %p205 = scmp.eq.s32.totalorder %s46, 0
      %p206 = por %p204, %p205
      %s207 = ssub.s32 %s47, %s66
      %s208 = ssub.s32 %s49, %s58
      %s209 = sor.u32 %s207, %s208
      %p210 = scmp.eq.s32.totalorder %s209, 0
      %s212 = sadd.s32 %s211, 1
      %s213 = scalar_select %p210, %s211, %s212
      %p216 = pneg %p210
      %p217 = scmp.eq.s32.totalorder %s40, 23
      %p218 = por %p216, %p217
      %p219 = scmp.ne.s32.totalorder %s211, %s214
      %p220 = scmp.eq.s32.totalorder %s40, 0
      %p221 = por %p219, %p220
      %p222 = scmp.ne.s32.totalorder %s211, %s214
      %p223 = scmp.eq.s32.totalorder %s45, 23
      %p224 = por %p222, %p223
      %p225 = scmp.ne.s32.totalorder %s214, %s215
      %p226 = scmp.eq.s32.totalorder %s45, 0
      %p227 = por %p225, %p226
      %p228 = scmp.ne.s32.totalorder %s214, %s215
      %p229 = scmp.eq.s32.totalorder %s46, 23
      %p230 = por %p228, %p229
      %p232 = scmp.ne.s32.totalorder %s215, %s231
      %p233 = scmp.eq.s32.totalorder %s46, 0
      %p234 = por %p232, %p233
      %s235 = ssub.s32 %s47, %s66
      %s236 = ssub.s32 %s49, %s58
      %s237 = sor.u32 %s235, %s236
      %p238 = scmp.eq.s32.totalorder %s237, 0
      %s240 = sadd.s32 %s239, 1
      %s241 = scalar_select %p238, %s239, %s240
      %p244 = pneg %p238
      %p245 = scmp.eq.s32.totalorder %s40, 23
      %p246 = por %p244, %p245
      %p247 = scmp.ne.s32.totalorder %s239, %s242
      %p248 = scmp.eq.s32.totalorder %s40, 0
      %p249 = por %p247, %p248
      %p250 = scmp.ne.s32.totalorder %s239, %s242
      %p251 = scmp.eq.s32.totalorder %s45, 23
      %p252 = por %p250, %p251
      %p253 = scmp.ne.s32.totalorder %s242, %s243
      %p254 = scmp.eq.s32.totalorder %s45, 0
      %p255 = por %p253, %p254
      %p256 = scmp.ne.s32.totalorder %s242, %s243
      %p257 = scmp.eq.s32.totalorder %s46, 23
      %p258 = por %p256, %p257
      %p260 = scmp.ne.s32.totalorder %s243, %s259
      %p261 = scmp.eq.s32.totalorder %s46, 0
      %p262 = por %p260, %p261
      %s263 = ssub.s32 %s47, %s66
      %s264 = ssub.s32 %s49, %s58
      %s265 = sor.u32 %s263, %s264
      %p266 = scmp.eq.s32.totalorder %s265, 0
      %s268 = sadd.s32 %s267, 1
      %s269 = scalar_select %p266, %s267, %s268
      %p272 = pneg %p266
      %p273 = scmp.eq.s32.totalorder %s40, 23
      %p274 = por %p272, %p273
      %p275 = scmp.ne.s32.totalorder %s267, %s270
      %p276 = scmp.eq.s32.totalorder %s40, 0
      %p277 = por %p275, %p276
      %p278 = scmp.ne.s32.totalorder %s267, %s270
      %p279 = scmp.eq.s32.totalorder %s45, 23
      %p280 = por %p278, %p279
      %p281 = scmp.ne.s32.totalorder %s270, %s271
      %p282 = scmp.eq.s32.totalorder %s45, 0
      %p283 = por %p281, %p282
      %p284 = scmp.ne.s32.totalorder %s270, %s271
      %p285 = scmp.eq.s32.totalorder %s46, 23
      %p286 = por %p284, %p285
      %p288 = scmp.ne.s32.totalorder %s271, %s287
      %p289 = scmp.eq.s32.totalorder %s46, 0
      %p290 = por %p288, %p289
      %s291 = ssub.s32 %s47, %s66
      %s292 = ssub.s32 %s49, %s58
      %s293 = sor.u32 %s291, %s292
      %p294 = scmp.eq.s32.totalorder %s293, 0
      %s296 = sadd.s32 %s295, 1
      %s297 = scalar_select %p294, %s295, %s296
      %p300 = pneg %p294
      %p301 = scmp.eq.s32.totalorder %s40, 23
      %p302 = por %p300, %p301
      %p303 = scmp.ne.s32.totalorder %s295, %s298
      %p304 = scmp.eq.s32.totalorder %s40, 0
      %p305 = por %p303, %p304
      %p306 = scmp.ne.s32.totalorder %s295, %s298
      %p307 = scmp.eq.s32.totalorder %s45, 23
      %p308 = por %p306, %p307
      %p309 = scmp.ne.s32.totalorder %s298, %s299
      %p310 = scmp.eq.s32.totalorder %s45, 0
      %p311 = por %p309, %p310
      %p312 = scmp.ne.s32.totalorder %s298, %s299
      %p313 = scmp.eq.s32.totalorder %s46, 23
      %p314 = por %p312, %p313
      %p316 = scmp.ne.s32.totalorder %s299, %s315
      %p317 = scmp.eq.s32.totalorder %s46, 0
      %p318 = por %p316, %p317
      %s319 = ssub.s32 %s47, %s66
      %s320 = ssub.s32 %s49, %s58
      %s321 = sor.u32 %s319, %s320
      %p322 = scmp.eq.s32.totalorder %s321, 0
      %s324 = sadd.s32 %s323, 1
      %s325 = scalar_select %p322, %s323, %s324
      %p328 = pneg %p322
      %p329 = scmp.eq.s32.totalorder %s40, 23
      %p330 = por %p328, %p329
      %p331 = scmp.ne.s32.totalorder %s323, %s326
      %p332 = scmp.eq.s32.totalorder %s40, 0
      %p333 = por %p331, %p332
      %p334 = scmp.ne.s32.totalorder %s323, %s326
      %p335 = scmp.eq.s32.totalorder %s45, 23
      %p336 = por %p334, %p335
      %p337 = scmp.ne.s32.totalorder %s326, %s327
      %p338 = scmp.eq.s32.totalorder %s45, 0
      %p339 = por %p337, %p338
      %p340 = scmp.ne.s32.totalorder %s326, %s327
      %p341 = scmp.eq.s32.totalorder %s46, 23
      %p342 = por %p340, %p341
      %p344 = scmp.ne.s32.totalorder %s327, %s343
      %p345 = scmp.eq.s32.totalorder %s46, 0
      %p346 = por %p344, %p345
      %s347 = ssub.s32 %s47, %s66
      %s348 = ssub.s32 %s49, %s58
      %s349 = sor.u32 %s347, %s348
      %p350 = scmp.eq.s32.totalorder %s349, 0
      %s352 = sadd.s32 %s351, 1
      %s353 = scalar_select %p350, %s351, %s352
      %p356 = pneg %p350
      %p357 = scmp.eq.s32.totalorder %s40, 23
      %p358 = por %p356, %p357
      %p359 = scmp.ne.s32.totalorder %s351, %s354
      %p360 = scmp.eq.s32.totalorder %s40, 0
      %p361 = por %p359, %p360
      %p362 = scmp.ne.s32.totalorder %s351, %s354
      %p363 = scmp.eq.s32.totalorder %s45, 23
      %p364 = por %p362, %p363
      %p365 = scmp.ne.s32.totalorder %s354, %s355
      %p366 = scmp.eq.s32.totalorder %s45, 0
      %p367 = por %p365, %p366
      %p368 = scmp.ne.s32.totalorder %s354, %s355
      %p369 = scmp.eq.s32.totalorder %s46, 23
      %p370 = por %p368, %p369
      %p372 = scmp.ne.s32.totalorder %s355, %s371
      %p373 = scmp.eq.s32.totalorder %s46, 0
      %p374 = por %p372, %p373
      %s375 = ssub.s32 %s47, %s66
      %s376 = ssub.s32 %s49, %s58
      %s377 = sor.u32 %s375, %s376
      %p378 = scmp.eq.s32.totalorder %s377, 0
      %s380 = sadd.s32 %s379, 1
      %s381 = scalar_select %p378, %s379, %s380
      %p384 = pneg %p378
      %p385 = scmp.eq.s32.totalorder %s40, 23
      %p386 = por %p384, %p385
      %p387 = scmp.ne.s32.totalorder %s379, %s382
      %p388 = scmp.eq.s32.totalorder %s40, 0
      %p389 = por %p387, %p388
      %p390 = scmp.ne.s32.totalorder %s379, %s382
      %p391 = scmp.eq.s32.totalorder %s45, 23
      %p392 = por %p390, %p391
      %p393 = scmp.ne.s32.totalorder %s382, %s383
      %p394 = scmp.eq.s32.totalorder %s45, 0
      %p395 = por %p393, %p394
      %p396 = scmp.ne.s32.totalorder %s382, %s383
      %p397 = scmp.eq.s32.totalorder %s46, 23
      %p398 = por %p396, %p397
      %p400 = scmp.ne.s32.totalorder %s383, %s399
      %p401 = scmp.eq.s32.totalorder %s46, 0
      %p402 = por %p400, %p401
      %s403 = ssub.s32 %s47, %s66
      %s404 = ssub.s32 %s49, %s58
      %s405 = sor.u32 %s403, %s404
      %p406 = scmp.eq.s32.totalorder %s405, 0
      %s408 = sadd.s32 %s407, 1
      %s409 = scalar_select %p406, %s407, %s408
      %p412 = pneg %p406
      %p413 = scmp.eq.s32.totalorder %s40, 23
      %p414 = por %p412, %p413
      %p415 = scmp.ne.s32.totalorder %s407, %s410
      %p416 = scmp.eq.s32.totalorder %s40, 0
      %p417 = por %p415, %p416
      %p418 = scmp.ne.s32.totalorder %s407, %s410
      %p419 = scmp.eq.s32.totalorder %s45, 23
      %p420 = por %p418, %p419
      %p421 = scmp.ne.s32.totalorder %s410, %s411
      %p422 = scmp.eq.s32.totalorder %s45, 0
      %p423 = por %p421, %p422
      %p424 = scmp.ne.s32.totalorder %s410, %s411
      %p425 = scmp.eq.s32.totalorder %s46, 23
      %p426 = por %p424, %p425
      %p428 = scmp.ne.s32.totalorder %s411, %s427
      %p429 = scmp.eq.s32.totalorder %s46, 0
      %p430 = por %p428, %p429
      %s431 = ssub.s32 %s47, %s66
      %s432 = ssub.s32 %s48, %s62
      %s433 = sor.u32 %s431, %s432
      %p434 = scmp.eq.s32.totalorder %s433, 0
      %s436 = sadd.s32 %s435, 1
      %s437 = scalar_select %p434, %s435, %s436
      %p440 = pneg %p434
      %p441 = scmp.eq.s32.totalorder %s40, 23
      %p442 = por %p440, %p441
      %p443 = scmp.ne.s32.totalorder %s435, %s438
      %p444 = scmp.eq.s32.totalorder %s40, 0
      %p445 = por %p443, %p444
      %p446 = scmp.ne.s32.totalorder %s435, %s438
      %p447 = scmp.eq.s32.totalorder %s45, 23
      %p448 = por %p446, %p447
      %p449 = scmp.ne.s32.totalorder %s438, %s439
      %p450 = scmp.eq.s32.totalorder %s45, 0
      %p451 = por %p449, %p450
      %p452 = scmp.ne.s32.totalorder %s438, %s439
      %p453 = scmp.eq.s32.totalorder %s46, 23
      %p454 = por %p452, %p453
      %p456 = scmp.ne.s32.totalorder %s439, %s455
      %p457 = scmp.eq.s32.totalorder %s46, 0
      %p458 = por %p456, %p457
      %p459 = scmp.le.s32.totalorder 1, %s40
      %p460 = scmp.lt.s32.totalorder %s40, 25
      %p461 = pnand %p459, %p460
      %p462 = pneg %p461
      // Predicated region
      $region9: #{stacked_transformers_forward.2} parent=5 // pred_check
        _
      $region10: #{stacked_transformers_forward.2} parent=5 // pred_check_branch
        %464 = sbr.rel (%p461) target = $region12
      $region11: #{stacked_transformers_forward.2} parent=5 // pred_region
        %s465 = ssub.s32 %s40, 1
      $region12: #{stacked_transformers_forward.2} parent=5 // pred_fallthru
        _
      %p466 = scmp.lt.s32.totalorder %s40, 24
      // Predicated region
      $region13: #{stacked_transformers_forward.2} parent=5 // pred_check
        %p467 = pneg %p466
      $region14: #{stacked_transformers_forward.2} parent=5 // pred_check_branch
        %469 = sbr.rel (%p467) target = $region16
      $region15: #{stacked_transformers_forward.2} parent=5 // pred_region
        // Predicated region
        $region17: #{stacked_transformers_forward.2} parent=15 // pred_check
          %p470 = pneg %p81
        $region18: #{stacked_transformers_forward.2} parent=15 // pred_check_branch
          %472 = sbr.rel (%p470) target = $region20
        $region19: #{stacked_transformers_forward.2} parent=15 // pred_region
          %p473 = scmp.lt.s32.totalorder %s47, 1
          %s474 = scalar_select %p473, %s47, 1
          %p475 = scmp.lt.s32.totalorder %s48, 1
          %s476 = scalar_select %p475, %s48, 1
          %s477 = smul.addr %s476, 2
          %s478 = smul.addr %s474, 4
          %s479 = sadd.s32 %s477, %s478
          %s480 = smul.addr %s479, 8
          %s481 = scalar_lea.vmem %s0, %s480
        $region20: #{stacked_transformers_forward.2} parent=15 // pred_fallthru
          _
        // Predicated region
        $region21: #{stacked_transformers_forward.2} parent=15 // pred_check
          %p482 = pneg %p109
        $region22: #{stacked_transformers_forward.2} parent=15 // pred_check_branch
          %484 = sbr.rel (%p482) target = $region24
        $region23: #{stacked_transformers_forward.2} parent=15 // pred_region
          %s485 = sand.u32 %s99, 1
          %s486 = scalar_lea.sflag [#allocation4], %s485
          %s487 = sand.u32 %s99, 1
          %s488 = smul.addr %s487, 768
          %s489 = scalar_lea.vmem [#allocation3], %s488
          %491 = vsyncadd %s486, 0
          %s492 = smul.addr %s49, 192
          %s493 = smul.addr %s47, 1152
          %s494 = sadd.s32 %s492, %s493
          %s495 = smul.addr %s494, 4
          %s496 = scalar_lea.hbm %s1, %s495
          %s497 = sshll.u32 %s496, 4
          %s498 = int_to_ptr.hbm [resolvable:$true] %s497
          %s499 = sshll.u32 %s489, 4
          %s500 = int_to_ptr.vmem [resolvable:$true] %s499
          %505 = dma.hbm_to_vmem [thread:$0]  %s498, 12288, %s500, %s486, 384, 384, 24
        $region24: #{stacked_transformers_forward.2} parent=15 // pred_fallthru
          _
        // Predicated region
        $region25: #{stacked_transformers_forward.2} parent=15 // pred_check
          %p506 = pneg %p137
        $region26: #{stacked_transformers_forward.2} parent=15 // pred_check_branch
          %508 = sbr.rel (%p506) target = $region28
        $region27: #{stacked_transformers_forward.2} parent=15 // pred_region
          %s509 = sand.u32 %s40, 1
          %s510 = scalar_lea.sflag [#allocation6], %s509
          %s511 = sand.u32 %s127, 1
          %s512 = smul.addr %s511, 6
          %s513 = scalar_lea.vmem [#allocation5], %s512
          %515 = vsyncadd %s510, 0
          %s516 = smul.addr %s49, 6
          %s517 = smul.addr %s47, 36
          %s518 = sadd.s32 %s516, %s517
          %s519 = scalar_lea.hbm %s2, %s518
          %s521 = sshll.u32 %s519, 4
          %s522 = int_to_ptr.hbm [resolvable:$true] %s521
          %s523 = sshll.u32 %s513, 4
          %s524 = int_to_ptr.vmem [resolvable:$true] %s523
          %526 = dma.hbm_to_vmem [thread:$0]  %s522, 96, %s524, %s510
        $region28: #{stacked_transformers_forward.2} parent=15 // pred_fallthru
          _
        // Predicated region
        $region29: #{stacked_transformers_forward.2} parent=15 // pred_check
          %p527 = pneg %p165
        $region30: #{stacked_transformers_forward.2} parent=15 // pred_check_branch
          %529 = sbr.rel (%p527) target = $region32
        $region31: #{stacked_transformers_forward.2} parent=15 // pred_region
          %s530 = sand.u32 %s40, 1
          %s531 = scalar_lea.sflag [#allocation6], %s530
          %s532 = sand.u32 %s155, 1
          %s533 = smul.addr %s532, 256
          %s534 = scalar_lea.vmem [#allocation7], %s533
          %536 = vsyncadd %s531, 0
          %s537 = smul.addr %s49, 64
          %s538 = smul.addr %s47, 384
          %s539 = sadd.s32 %s537, %s538
          %s540 = smul.addr %s539, 4
          %s541 = scalar_lea.hbm %s3, %s540
          %s542 = sshll.u32 %s541, 4
          %s543 = int_to_ptr.hbm [resolvable:$true] %s542
          %s544 = sshll.u32 %s534, 4
          %s545 = int_to_ptr.vmem [resolvable:$true] %s544
          %550 = dma.hbm_to_vmem [thread:$0]  %s543, 4096, %s545, %s531, 128, 128, 8
        $region32: #{stacked_transformers_forward.2} parent=15 // pred_fallthru
          _
        // Predicated region
        $region33: #{stacked_transformers_forward.2} parent=15 // pred_check
          %p551 = pneg %p193
        $region34: #{stacked_transformers_forward.2} parent=15 // pred_check_branch
          %553 = sbr.rel (%p551) target = $region36
        $region35: #{stacked_transformers_forward.2} parent=15 // pred_region
          %s554 = sand.u32 %s40, 1
          %s555 = scalar_lea.sflag [#allocation9], %s554
          %s556 = sand.u32 %s183, 1
          %s557 = smul.addr %s556, 2
          %s558 = scalar_lea.vmem [#allocation8], %s557
          %560 = vsyncadd %s555, 0
          %s561 = smul.addr %s49, 2
          %s562 = smul.addr %s47, 12
          %s563 = sadd.s32 %s561, %s562
          %s564 = scalar_lea.hbm %s4, %s563
          %s566 = sshll.u32 %s564, 4
          %s567 = int_to_ptr.hbm [resolvable:$true] %s566
          %s568 = sshll.u32 %s558, 4
          %s569 = int_to_ptr.vmem [resolvable:$true] %s568
          %571 = dma.hbm_to_vmem [thread:$0]  %s567, 32, %s569, %s555
        $region36: #{stacked_transformers_forward.2} parent=15 // pred_fallthru
          _
        // Predicated region
        $region37: #{stacked_transformers_forward.2} parent=15 // pred_check
          %p572 = pneg %p221
        $region38: #{stacked_transformers_forward.2} parent=15 // pred_check_branch
          %574 = sbr.rel (%p572) target = $region40
        $region39: #{stacked_transformers_forward.2} parent=15 // pred_region
          %s575 = sand.u32 %s40, 1
          %s576 = scalar_lea.sflag [#allocation9], %s575
          %s577 = sand.u32 %s211, 1
          %s578 = smul.addr %s577, 2
          %s579 = scalar_lea.vmem [#allocation10], %s578
          %581 = vsyncadd %s576, 0
          %s582 = smul.addr %s49, 2
          %s583 = smul.addr %s47, 12
          %s584 = sadd.s32 %s582, %s583
          %s585 = scalar_lea.hbm %s5, %s584
          %s587 = sshll.u32 %s585, 4
          %s588 = int_to_ptr.hbm [resolvable:$true] %s587
          %s589 = sshll.u32 %s579, 4
          %s590 = int_to_ptr.vmem [resolvable:$true] %s589
          %592 = dma.hbm_to_vmem [thread:$0]  %s588, 32, %s590, %s576
        $region40: #{stacked_transformers_forward.2} parent=15 // pred_fallthru
          _
        // Predicated region
        $region41: #{stacked_transformers_forward.2} parent=15 // pred_check
          %p593 = pneg %p249
        $region42: #{stacked_transformers_forward.2} parent=15 // pred_check_branch
          %595 = sbr.rel (%p593) target = $region44
        $region43: #{stacked_transformers_forward.2} parent=15 // pred_region
          %s596 = sand.u32 %s40, 1
          %s597 = scalar_lea.sflag [#allocation12], %s596
          %s598 = sand.u32 %s239, 1
          %s599 = smul.addr %s598, 2
          %s600 = scalar_lea.vmem [#allocation11], %s599
          %602 = vsyncadd %s597, 0
          %s603 = smul.addr %s49, 2
          %s604 = smul.addr %s47, 12
          %s605 = sadd.s32 %s603, %s604
          %s606 = scalar_lea.hbm %s6, %s605
          %s608 = sshll.u32 %s606, 4
          %s609 = int_to_ptr.hbm [resolvable:$true] %s608
          %s610 = sshll.u32 %s600, 4
          %s611 = int_to_ptr.vmem [resolvable:$true] %s610
          %613 = dma.hbm_to_vmem [thread:$0]  %s609, 32, %s611, %s597
        $region44: #{stacked_transformers_forward.2} parent=15 // pred_fallthru
          _
        // Predicated region
        $region45: #{stacked_transformers_forward.2} parent=15 // pred_check
          %p614 = pneg %p277
        $region46: #{stacked_transformers_forward.2} parent=15 // pred_check_branch
          %616 = sbr.rel (%p614) target = $region48
        $region47: #{stacked_transformers_forward.2} parent=15 // pred_region
          %s617 = sand.u32 %s40, 1
          %s618 = scalar_lea.sflag [#allocation12], %s617
          %s619 = sand.u32 %s267, 1
          %s620 = smul.addr %s619, 1024
          %s621 = scalar_lea.vmem [#allocation13], %s620
          %623 = vsyncadd %s618, 0
          %s624 = smul.addr %s49, 256
          %s625 = smul.addr %s47, 1536
          %s626 = sadd.s32 %s624, %s625
          %s627 = smul.addr %s626, 4
          %s628 = scalar_lea.hbm %s7, %s627
          %s629 = sshll.u32 %s628, 4
          %s630 = int_to_ptr.hbm [resolvable:$true] %s629
          %s631 = sshll.u32 %s621, 4
          %s632 = int_to_ptr.vmem [resolvable:$true] %s631
          %637 = dma.hbm_to_vmem [thread:$0]  %s630, 16384, %s632, %s618, 512, 512, 32
        $region48: #{stacked_transformers_forward.2} parent=15 // pred_fallthru
          _
        // Predicated region
        $region49: #{stacked_transformers_forward.2} parent=15 // pred_check
          %p638 = pneg %p305
        $region50: #{stacked_transformers_forward.2} parent=15 // pred_check_branch
          %640 = sbr.rel (%p638) target = $region52
        $region51: #{stacked_transformers_forward.2} parent=15 // pred_region
          %s641 = sand.u32 %s40, 1
          %s642 = scalar_lea.sflag [#allocation15], %s641
          %s643 = sand.u32 %s295, 1
          %s644 = smul.addr %s643, 8
          %s645 = scalar_lea.vmem [#allocation14], %s644
          %647 = vsyncadd %s642, 0
          %s648 = smul.addr %s49, 8
          %s649 = smul.addr %s47, 48
          %s650 = sadd.s32 %s648, %s649
          %s651 = scalar_lea.hbm %s8, %s650
          %s653 = sshll.u32 %s651, 4
          %s654 = int_to_ptr.hbm [resolvable:$true] %s653
          %s655 = sshll.u32 %s645, 4
          %s656 = int_to_ptr.vmem [resolvable:$true] %s655
          %658 = dma.hbm_to_vmem [thread:$0]  %s654, 128, %s656, %s642
        $region52: #{stacked_transformers_forward.2} parent=15 // pred_fallthru
          _
        // Predicated region
        $region53: #{stacked_transformers_forward.2} parent=15 // pred_check
          %p659 = pneg %p333
        $region54: #{stacked_transformers_forward.2} parent=15 // pred_check_branch
          %661 = sbr.rel (%p659) target = $region56
        $region55: #{stacked_transformers_forward.2} parent=15 // pred_region
          %s662 = sand.u32 %s40, 1
          %s663 = scalar_lea.sflag [#allocation15], %s662
          %s664 = sand.u32 %s323, 1
          %s665 = smul.addr %s664, 1024
          %s666 = scalar_lea.vmem [#allocation16], %s665
          %668 = vsyncadd %s663, 0
          %s669 = smul.addr %s49, 256
          %s670 = smul.addr %s47, 1536
          %s671 = sadd.s32 %s669, %s670
          %s672 = smul.addr %s671, 4
          %s673 = scalar_lea.hbm %s9, %s672
          %s674 = sshll.u32 %s673, 4
          %s675 = int_to_ptr.hbm [resolvable:$true] %s674
          %s676 = sshll.u32 %s666, 4
          %s677 = int_to_ptr.vmem [resolvable:$true] %s676
          %682 = dma.hbm_to_vmem [thread:$0]  %s675, 16384, %s677, %s663, 128, 128, 8
        $region56: #{stacked_transformers_forward.2} parent=15 // pred_fallthru
          _
        // Predicated region
        $region57: #{stacked_transformers_forward.2} parent=15 // pred_check
          %p683 = pneg %p361
        $region58: #{stacked_transformers_forward.2} parent=15 // pred_check_branch
          %685 = sbr.rel (%p683) target = $region60
        $region59: #{stacked_transformers_forward.2} parent=15 // pred_region
          %s686 = sand.u32 %s40, 1
          %s687 = scalar_lea.sflag [#allocation18], %s686
          %s688 = sand.u32 %s351, 1
          %s689 = smul.addr %s688, 2
          %s690 = scalar_lea.vmem [#allocation17], %s689
          %692 = vsyncadd %s687, 0
          %s693 = smul.addr %s49, 2
          %s694 = smul.addr %s47, 12
          %s695 = sadd.s32 %s693, %s694
          %s696 = scalar_lea.hbm %s10, %s695
          %s698 = sshll.u32 %s696, 4
          %s699 = int_to_ptr.hbm [resolvable:$true] %s698
          %s700 = sshll.u32 %s690, 4
          %s701 = int_to_ptr.vmem [resolvable:$true] %s700
          %703 = dma.hbm_to_vmem [thread:$0]  %s699, 32, %s701, %s687
        $region60: #{stacked_transformers_forward.2} parent=15 // pred_fallthru
          _
        // Predicated region
        $region61: #{stacked_transformers_forward.2} parent=15 // pred_check
          %p704 = pneg %p389
        $region62: #{stacked_transformers_forward.2} parent=15 // pred_check_branch
          %706 = sbr.rel (%p704) target = $region64
        $region63: #{stacked_transformers_forward.2} parent=15 // pred_region
          %s707 = sand.u32 %s40, 1
          %s708 = scalar_lea.sflag [#allocation18], %s707
          %s709 = sand.u32 %s379, 1
          %s710 = smul.addr %s709, 2
          %s711 = scalar_lea.vmem [#allocation19], %s710
          %713 = vsyncadd %s708, 0
          %s714 = smul.addr %s49, 2
          %s715 = smul.addr %s47, 12
          %s716 = sadd.s32 %s714, %s715
          %s717 = scalar_lea.hbm %s11, %s716
          %s719 = sshll.u32 %s717, 4
          %s720 = int_to_ptr.hbm [resolvable:$true] %s719
          %s721 = sshll.u32 %s711, 4
          %s722 = int_to_ptr.vmem [resolvable:$true] %s721
          %724 = dma.hbm_to_vmem [thread:$0]  %s720, 32, %s722, %s708
        $region64: #{stacked_transformers_forward.2} parent=15 // pred_fallthru
          _
        // Predicated region
        $region65: #{stacked_transformers_forward.2} parent=15 // pred_check
          %p725 = pneg %p417
        $region66: #{stacked_transformers_forward.2} parent=15 // pred_check_branch
          %727 = sbr.rel (%p725) target = $region68
        $region67: #{stacked_transformers_forward.2} parent=15 // pred_region
          %s728 = sand.u32 %s407, 1
          %s729 = scalar_lea.sflag [#allocation21], %s728
          %s730 = sand.u32 %s407, 1
          %s731 = smul.addr %s730, 2
          %s732 = scalar_lea.vmem [#allocation20], %s731
          %734 = vsyncadd %s729, 0
          %s735 = smul.addr %s49, 2
          %s736 = smul.addr %s47, 12
          %s737 = sadd.s32 %s735, %s736
          %s738 = scalar_lea.hbm %s12, %s737
          %s740 = sshll.u32 %s738, 4
          %s741 = int_to_ptr.hbm [resolvable:$true] %s740
          %s742 = sshll.u32 %s732, 4
          %s743 = int_to_ptr.vmem [resolvable:$true] %s742
          %745 = dma.hbm_to_vmem [thread:$0]  %s741, 32, %s743, %s729
        $region68: #{stacked_transformers_forward.2} parent=15 // pred_fallthru
          _
      $region16: #{stacked_transformers_forward.2} parent=5 // pred_fallthru
        _
      %p746 = scmp.le.s32.totalorder 1, %s40
      %p747 = scmp.lt.s32.totalorder %s40, 25
      %p748 = pnand %p746, %p747
      %p749 = pneg %p748
      // Predicated region
      $region69: #{stacked_transformers_forward.2} parent=5 // pred_check
        _
      $region70: #{stacked_transformers_forward.2} parent=5 // pred_check_branch
        %751 = sbr.rel (%p748) target = $region72
      $region71: #{stacked_transformers_forward.2} parent=5 // pred_region
        %s752 = ssub.s32 %s40, 1
        %s753 = sand.u32 %s102, 1
        %s754 = scalar_lea.sflag [#allocation4], %s753
        %s755 = sand.u32 %s102, 1
        %s756 = smul.addr %s755, 768
        %s757 = scalar_lea.vmem [#allocation3], %s756
        // Predicated region
        $region73: #{stacked_transformers_forward.2} parent=71 // pred_check
          %p758 = pneg %p115
        $region74: #{stacked_transformers_forward.2} parent=71 // pred_check_branch
          %760 = sbr.rel (%p758) target = $region76
        $region75: #{stacked_transformers_forward.2} parent=71 // pred_region
          %762 = dma.done %s754, 12288
        $region76: #{stacked_transformers_forward.2} parent=71 // pred_fallthru
          _
        %s763 = sand.u32 %s45, 1
        %s764 = scalar_lea.sflag [#allocation6], %s763
        %s765 = sand.u32 %s130, 1
        %s766 = smul.addr %s765, 6
        %s767 = scalar_lea.vmem [#allocation5], %s766
        // Predicated region
        $region77: #{stacked_transformers_forward.2} parent=71 // pred_check
          %p768 = pneg %p143
        $region78: #{stacked_transformers_forward.2} parent=71 // pred_check_branch
          %770 = sbr.rel (%p768) target = $region80
        $region79: #{stacked_transformers_forward.2} parent=71 // pred_region
          %772 = dma.done %s764, 96
        $region80: #{stacked_transformers_forward.2} parent=71 // pred_fallthru
          _
        %s773 = sand.u32 %s45, 1
        %s774 = scalar_lea.sflag [#allocation6], %s773
        %s775 = sand.u32 %s158, 1
        %s776 = smul.addr %s775, 256
        %s777 = scalar_lea.vmem [#allocation7], %s776
        // Predicated region
        $region81: #{stacked_transformers_forward.2} parent=71 // pred_check
          %p778 = pneg %p171
        $region82: #{stacked_transformers_forward.2} parent=71 // pred_check_branch
          %780 = sbr.rel (%p778) target = $region84
        $region83: #{stacked_transformers_forward.2} parent=71 // pred_region
          %782 = dma.done %s774, 4096
        $region84: #{stacked_transformers_forward.2} parent=71 // pred_fallthru
          _
        %s783 = sand.u32 %s45, 1
        %s784 = scalar_lea.sflag [#allocation9], %s783
        %s785 = sand.u32 %s186, 1
        %s786 = smul.addr %s785, 2
        %s787 = scalar_lea.vmem [#allocation8], %s786
        // Predicated region
        $region85: #{stacked_transformers_forward.2} parent=71 // pred_check
          %p788 = pneg %p199
        $region86: #{stacked_transformers_forward.2} parent=71 // pred_check_branch
          %790 = sbr.rel (%p788) target = $region88
        $region87: #{stacked_transformers_forward.2} parent=71 // pred_region
          %792 = dma.done %s784, 32
        $region88: #{stacked_transformers_forward.2} parent=71 // pred_fallthru
          _
        %s793 = sand.u32 %s45, 1
        %s794 = scalar_lea.sflag [#allocation9], %s793
        %s795 = sand.u32 %s214, 1
        %s796 = smul.addr %s795, 2
        %s797 = scalar_lea.vmem [#allocation10], %s796
        // Predicated region
        $region89: #{stacked_transformers_forward.2} parent=71 // pred_check
          %p798 = pneg %p227
        $region90: #{stacked_transformers_forward.2} parent=71 // pred_check_branch
          %800 = sbr.rel (%p798) target = $region92
        $region91: #{stacked_transformers_forward.2} parent=71 // pred_region
          %802 = dma.done %s794, 32
        $region92: #{stacked_transformers_forward.2} parent=71 // pred_fallthru
          _
        %s803 = sand.u32 %s45, 1
        %s804 = scalar_lea.sflag [#allocation12], %s803
        %s805 = sand.u32 %s242, 1
        %s806 = smul.addr %s805, 2
        %s807 = scalar_lea.vmem [#allocation11], %s806
        // Predicated region
        $region93: #{stacked_transformers_forward.2} parent=71 // pred_check
          %p808 = pneg %p255
        $region94: #{stacked_transformers_forward.2} parent=71 // pred_check_branch
          %810 = sbr.rel (%p808) target = $region96
        $region95: #{stacked_transformers_forward.2} parent=71 // pred_region
          %812 = dma.done %s804, 32
        $region96: #{stacked_transformers_forward.2} parent=71 // pred_fallthru
          _
        %s813 = sand.u32 %s45, 1
        %s814 = scalar_lea.sflag [#allocation12], %s813
        %s815 = sand.u32 %s270, 1
        %s816 = smul.addr %s815, 1024
        %s817 = scalar_lea.vmem [#allocation13], %s816
        // Predicated region
        $region97: #{stacked_transformers_forward.2} parent=71 // pred_check
          %p818 = pneg %p283
        $region98: #{stacked_transformers_forward.2} parent=71 // pred_check_branch
          %820 = sbr.rel (%p818) target = $region100
        $region99: #{stacked_transformers_forward.2} parent=71 // pred_region
          %822 = dma.done %s814, 16384
        $region100: #{stacked_transformers_forward.2} parent=71 // pred_fallthru
          _
        %s823 = sand.u32 %s45, 1
        %s824 = scalar_lea.sflag [#allocation15], %s823
        %s825 = sand.u32 %s298, 1
        %s826 = smul.addr %s825, 8
        %s827 = scalar_lea.vmem [#allocation14], %s826
        // Predicated region
        $region101: #{stacked_transformers_forward.2} parent=71 // pred_check
          %p828 = pneg %p311
        $region102: #{stacked_transformers_forward.2} parent=71 // pred_check_branch
          %830 = sbr.rel (%p828) target = $region104
        $region103: #{stacked_transformers_forward.2} parent=71 // pred_region
          %832 = dma.done %s824, 128
        $region104: #{stacked_transformers_forward.2} parent=71 // pred_fallthru
          _
        %s833 = sand.u32 %s45, 1
        %s834 = scalar_lea.sflag [#allocation15], %s833
        %s835 = sand.u32 %s326, 1
        %s836 = smul.addr %s835, 1024
        %s837 = scalar_lea.vmem [#allocation16], %s836
        // Predicated region
        $region105: #{stacked_transformers_forward.2} parent=71 // pred_check
          %p838 = pneg %p339
        $region106: #{stacked_transformers_forward.2} parent=71 // pred_check_branch
          %840 = sbr.rel (%p838) target = $region108
        $region107: #{stacked_transformers_forward.2} parent=71 // pred_region
          %842 = dma.done %s834, 16384
        $region108: #{stacked_transformers_forward.2} parent=71 // pred_fallthru
          _
        %s843 = sand.u32 %s45, 1
        %s844 = scalar_lea.sflag [#allocation18], %s843
        %s845 = sand.u32 %s354, 1
        %s846 = smul.addr %s845, 2
        %s847 = scalar_lea.vmem [#allocation17], %s846
        // Predicated region
        $region109: #{stacked_transformers_forward.2} parent=71 // pred_check
          %p848 = pneg %p367
        $region110: #{stacked_transformers_forward.2} parent=71 // pred_check_branch
          %850 = sbr.rel (%p848) target = $region112
        $region111: #{stacked_transformers_forward.2} parent=71 // pred_region
          %852 = dma.done %s844, 32
        $region112: #{stacked_transformers_forward.2} parent=71 // pred_fallthru
          _
        %s853 = sand.u32 %s45, 1
        %s854 = scalar_lea.sflag [#allocation18], %s853
        %s855 = sand.u32 %s382, 1
        %s856 = smul.addr %s855, 2
        %s857 = scalar_lea.vmem [#allocation19], %s856
        // Predicated region
        $region113: #{stacked_transformers_forward.2} parent=71 // pred_check
          %p858 = pneg %p395
        $region114: #{stacked_transformers_forward.2} parent=71 // pred_check_branch
          %860 = sbr.rel (%p858) target = $region116
        $region115: #{stacked_transformers_forward.2} parent=71 // pred_region
          %862 = dma.done %s854, 32
        $region116: #{stacked_transformers_forward.2} parent=71 // pred_fallthru
          _
        %s863 = sand.u32 %s410, 1
        %s864 = scalar_lea.sflag [#allocation21], %s863
        %s865 = sand.u32 %s410, 1
        %s866 = smul.addr %s865, 2
        %s867 = scalar_lea.vmem [#allocation20], %s866
        // Predicated region
        $region117: #{stacked_transformers_forward.2} parent=71 // pred_check
          %p868 = pneg %p423
        $region118: #{stacked_transformers_forward.2} parent=71 // pred_check_branch
          %870 = sbr.rel (%p868) target = $region120
        $region119: #{stacked_transformers_forward.2} parent=71 // pred_region
          %872 = dma.done %s864, 32
        $region120: #{stacked_transformers_forward.2} parent=71 // pred_fallthru
          _
        %p873 = scmp.lt.s32.totalorder %s50, 1
        %s874 = scalar_select %p873, %s50, 1
        %p875 = scmp.lt.s32.totalorder %s51, 1
        %s876 = scalar_select %p875, %s51, 1
        %s877 = smul.addr %s876, 2
        %s878 = smul.addr %s874, 4
        %s879 = sadd.s32 %s877, %s878
        %s880 = smul.addr %s879, 8
        %s881 = scalar_lea.vmem %s0, %s880
        %p882 = pneg %p87
        %p883 = pneg %p84
        %s884 = sand.u32 %s102, 1
        %s885 = scalar_lea.sflag [#allocation4], %s884
        %s886 = sand.u32 %s102, 1
        %s887 = smul.addr %s886, 768
        %s888 = scalar_lea.vmem [#allocation3], %s887
        %p889 = pneg %p115
        %p890 = pneg %p112
        %s891 = sand.u32 %s45, 1
        %s892 = scalar_lea.sflag [#allocation6], %s891
        %s893 = sand.u32 %s130, 1
        %s894 = smul.addr %s893, 6
        %s895 = scalar_lea.vmem [#allocation5], %s894
        %p896 = pneg %p143
        %p897 = pneg %p140
        %s898 = sand.u32 %s45, 1
        %s899 = scalar_lea.sflag [#allocation6], %s898
        %s900 = sand.u32 %s158, 1
        %s901 = smul.addr %s900, 256
        %s902 = scalar_lea.vmem [#allocation7], %s901
        %p903 = pneg %p171
        %p904 = pneg %p168
        %s905 = sand.u32 %s45, 1
        %s906 = scalar_lea.sflag [#allocation9], %s905
        %s907 = sand.u32 %s186, 1
        %s908 = smul.addr %s907, 2
        %s909 = scalar_lea.vmem [#allocation8], %s908
        %p910 = pneg %p199
        %p911 = pneg %p196
        %s912 = sand.u32 %s45, 1
        %s913 = scalar_lea.sflag [#allocation9], %s912
        %s914 = sand.u32 %s214, 1
        %s915 = smul.addr %s914, 2
        %s916 = scalar_lea.vmem [#allocation10], %s915
        %p917 = pneg %p227
        %p918 = pneg %p224
        %s919 = sand.u32 %s45, 1
        %s920 = scalar_lea.sflag [#allocation12], %s919
        %s921 = sand.u32 %s242, 1
        %s922 = smul.addr %s921, 2
        %s923 = scalar_lea.vmem [#allocation11], %s922
        %p924 = pneg %p255
        %p925 = pneg %p252
        %s926 = sand.u32 %s45, 1
        %s927 = scalar_lea.sflag [#allocation12], %s926
        %s928 = sand.u32 %s270, 1
        %s929 = smul.addr %s928, 1024
        %s930 = scalar_lea.vmem [#allocation13], %s929
        %p931 = pneg %p283
        %p932 = pneg %p280
        %s933 = sand.u32 %s45, 1
        %s934 = scalar_lea.sflag [#allocation15], %s933
        %s935 = sand.u32 %s298, 1
        %s936 = smul.addr %s935, 8
        %s937 = scalar_lea.vmem [#allocation14], %s936
        %p938 = pneg %p311
        %p939 = pneg %p308
        %s940 = sand.u32 %s45, 1
        %s941 = scalar_lea.sflag [#allocation15], %s940
        %s942 = sand.u32 %s326, 1
        %s943 = smul.addr %s942, 1024
        %s944 = scalar_lea.vmem [#allocation16], %s943
        %p945 = pneg %p339
        %p946 = pneg %p336
        %s947 = sand.u32 %s45, 1
        %s948 = scalar_lea.sflag [#allocation18], %s947
        %s949 = sand.u32 %s354, 1
        %s950 = smul.addr %s949, 2
        %s951 = scalar_lea.vmem [#allocation17], %s950
        %p952 = pneg %p367
        %p953 = pneg %p364
        %s954 = sand.u32 %s45, 1
        %s955 = scalar_lea.sflag [#allocation18], %s954
        %s956 = sand.u32 %s382, 1
        %s957 = smul.addr %s956, 2
        %s958 = scalar_lea.vmem [#allocation19], %s957
        %p959 = pneg %p395
        %p960 = pneg %p392
        %s961 = sand.u32 %s410, 1
        %s962 = scalar_lea.sflag [#allocation21], %s961
        %s963 = sand.u32 %s410, 1
        %s964 = smul.addr %s963, 2
        %s965 = scalar_lea.vmem [#allocation20], %s964
        %p966 = pneg %p423
        %p967 = pneg %p420
        %p968 = pneg %p451
        %p969 = pneg %p448
        %p970 = scmp.lt.s32.totalorder %s50, 1
        %s971 = scalar_select %p970, %s50, 1
        %p972 = scmp.lt.s32.totalorder %s51, 1
        %s973 = scalar_select %p972, %s51, 1
        %s974 = smul.addr %s973, 2
        %s975 = smul.addr %s971, 4
        %s976 = sadd.s32 %s974, %s975
        %s977 = scalar_lea.vmem %s13, %s976
        %p978 = scmp.lt.s32.totalorder %s50, 1
        %s979 = scalar_select %p978, %s50, 1
        %p980 = scmp.lt.s32.totalorder %s51, 1
        %s981 = scalar_select %p980, %s51, 1
        %s982 = smul.addr %s981, 2
        %s983 = smul.addr %s979, 4
        %s984 = sadd.s32 %s982, %s983
        %s985 = smul.addr %s984, 8
        %s986 = scalar_lea.vmem %s0, %s985
        %p987 = scmp.lt.s32.totalorder %s50, 1
        %s988 = scalar_select %p987, %s50, 1
        %p989 = scmp.lt.s32.totalorder %s51, 1
        %s990 = scalar_select %p989, %s51, 1
        %s991 = smul.addr %s990, 2
        %s992 = smul.addr %s988, 4
        %s993 = sadd.s32 %s991, %s992
        %s994 = scalar_lea.vmem %s13, %s993
        %p995 = scmp.eq.s32.totalorder %s52, 0
        // Predicated region
        $region121: #{stacked_transformers_forward.2} parent=71 // pred_check
          %p996 = pneg %p995
        $region122: #{stacked_transformers_forward.2} parent=71 // pred_check_branch
          %998 = sbr.rel (%p996) target = $region124
        $region123: #{stacked_transformers_forward.2} parent=71 // pred_region
          %v999 = vld [vmem:[%s986] sm:$0xff]
          %v1000 = vld [vmem:[%s986 + $0x8] sm:$0xff]
          %1001 = vst [vmem:[#allocation2] sm:$0xff] %v999
          %1002 = vst [vmem:[#allocation2 + $0x8] sm:$0xff] %v1000
        $region124: #{stacked_transformers_forward.2} parent=71 // pred_fallthru
          _
        %v1003 = vld [vmem:[#allocation2] sm:$0xff]
        %v1004 = vld [vmem:[#allocation2 + $0x8] sm:$0xff]
        %v1005 = vpack.c.bf16 %v1003, %v1003
        %v1006 = vpack.c.bf16 %v1004, %v1004
        %v1007 = vld [vmem:[%s757] sm:$0xff]
        %v1008 = vld [vmem:[%s757 + $0x8] sm:$0xff]
        %v1009 = vld [vmem:[%s757 + $0x10] sm:$0xff]
        %v1010 = vld [vmem:[%s757 + $0x18] sm:$0xff]
        %v1011 = vld [vmem:[%s757 + $0x20] sm:$0xff]
        %v1012 = vld [vmem:[%s757 + $0x28] sm:$0xff]
        %v1013 = vld [vmem:[%s757 + $0x30] sm:$0xff]
        %v1014 = vld [vmem:[%s757 + $0x38] sm:$0xff]
        %v1015 = vld [vmem:[%s757 + $0x40] sm:$0xff]
        %v1016 = vld [vmem:[%s757 + $0x48] sm:$0xff]
        %v1017 = vld [vmem:[%s757 + $0x50] sm:$0xff]
        %v1018 = vld [vmem:[%s757 + $0x58] sm:$0xff]
        %v1019 = vld [vmem:[%s757 + $0x60] sm:$0xff]
        %v1020 = vld [vmem:[%s757 + $0x68] sm:$0xff]
        %v1021 = vld [vmem:[%s757 + $0x70] sm:$0xff]
        %v1022 = vld [vmem:[%s757 + $0x78] sm:$0xff]
        %v1023 = vld [vmem:[%s757 + $0x80] sm:$0xff]
        %v1024 = vld [vmem:[%s757 + $0x88] sm:$0xff]
        %v1025 = vld [vmem:[%s757 + $0x90] sm:$0xff]
        %v1026 = vld [vmem:[%s757 + $0x98] sm:$0xff]
        %v1027 = vld [vmem:[%s757 + $0xa0] sm:$0xff]
        %v1028 = vld [vmem:[%s757 + $0xa8] sm:$0xff]
        %v1029 = vld [vmem:[%s757 + $0xb0] sm:$0xff]
        %v1030 = vld [vmem:[%s757 + $0xb8] sm:$0xff]
        %v1031 = vld [vmem:[%s757 + $0xc0] sm:$0xff]
        %v1032 = vld [vmem:[%s757 + $0xc8] sm:$0xff]
        %v1033 = vld [vmem:[%s757 + $0xd0] sm:$0xff]
        %v1034 = vld [vmem:[%s757 + $0xd8] sm:$0xff]
        %v1035 = vld [vmem:[%s757 + $0xe0] sm:$0xff]
        %v1036 = vld [vmem:[%s757 + $0xe8] sm:$0xff]
        %v1037 = vld [vmem:[%s757 + $0xf0] sm:$0xff]
        %v1038 = vld [vmem:[%s757 + $0xf8] sm:$0xff]
        %v1039 = vld [vmem:[%s757 + $0x100] sm:$0xff]
        %v1040 = vld [vmem:[%s757 + $0x108] sm:$0xff]
        %v1041 = vld [vmem:[%s757 + $0x110] sm:$0xff]
        %v1042 = vld [vmem:[%s757 + $0x118] sm:$0xff]
        %v1043 = vld [vmem:[%s757 + $0x120] sm:$0xff]
        %v1044 = vld [vmem:[%s757 + $0x128] sm:$0xff]
        %v1045 = vld [vmem:[%s757 + $0x130] sm:$0xff]
        %v1046 = vld [vmem:[%s757 + $0x138] sm:$0xff]
        %v1047 = vld [vmem:[%s757 + $0x140] sm:$0xff]
        %v1048 = vld [vmem:[%s757 + $0x148] sm:$0xff]
        %v1049 = vld [vmem:[%s757 + $0x150] sm:$0xff]
        %v1050 = vld [vmem:[%s757 + $0x158] sm:$0xff]
        %v1051 = vld [vmem:[%s757 + $0x160] sm:$0xff]
        %v1052 = vld [vmem:[%s757 + $0x168] sm:$0xff]
        %v1053 = vld [vmem:[%s757 + $0x170] sm:$0xff]
        %v1054 = vld [vmem:[%s757 + $0x178] sm:$0xff]
        %v1055 = vld [vmem:[%s757 + $0x180] sm:$0xff]
        %v1056 = vld [vmem:[%s757 + $0x188] sm:$0xff]
        %v1057 = vld [vmem:[%s757 + $0x190] sm:$0xff]
        %v1058 = vld [vmem:[%s757 + $0x198] sm:$0xff]
        %v1059 = vld [vmem:[%s757 + $0x1a0] sm:$0xff]
        %v1060 = vld [vmem:[%s757 + $0x1a8] sm:$0xff]
        %v1061 = vld [vmem:[%s757 + $0x1b0] sm:$0xff]
        %v1062 = vld [vmem:[%s757 + $0x1b8] sm:$0xff]
        %v1063 = vld [vmem:[%s757 + $0x1c0] sm:$0xff]
        %v1064 = vld [vmem:[%s757 + $0x1c8] sm:$0xff]
        %v1065 = vld [vmem:[%s757 + $0x1d0] sm:$0xff]
        %v1066 = vld [vmem:[%s757 + $0x1d8] sm:$0xff]
        %v1067 = vld [vmem:[%s757 + $0x1e0] sm:$0xff]
        %v1068 = vld [vmem:[%s757 + $0x1e8] sm:$0xff]
        %v1069 = vld [vmem:[%s757 + $0x1f0] sm:$0xff]
        %v1070 = vld [vmem:[%s757 + $0x1f8] sm:$0xff]
        %v1071 = vld [vmem:[%s757 + $0x200] sm:$0xff]
        %v1072 = vld [vmem:[%s757 + $0x208] sm:$0xff]
        %v1073 = vld [vmem:[%s757 + $0x210] sm:$0xff]
        %v1074 = vld [vmem:[%s757 + $0x218] sm:$0xff]
        %v1075 = vld [vmem:[%s757 + $0x220] sm:$0xff]
        %v1076 = vld [vmem:[%s757 + $0x228] sm:$0xff]
        %v1077 = vld [vmem:[%s757 + $0x230] sm:$0xff]
        %v1078 = vld [vmem:[%s757 + $0x238] sm:$0xff]
        %v1079 = vld [vmem:[%s757 + $0x240] sm:$0xff]
        %v1080 = vld [vmem:[%s757 + $0x248] sm:$0xff]
        %v1081 = vld [vmem:[%s757 + $0x250] sm:$0xff]
        %v1082 = vld [vmem:[%s757 + $0x258] sm:$0xff]
        %v1083 = vld [vmem:[%s757 + $0x260] sm:$0xff]
        %v1084 = vld [vmem:[%s757 + $0x268] sm:$0xff]
        %v1085 = vld [vmem:[%s757 + $0x270] sm:$0xff]
        %v1086 = vld [vmem:[%s757 + $0x278] sm:$0xff]
        %v1087 = vld [vmem:[%s757 + $0x280] sm:$0xff]
        %v1088 = vld [vmem:[%s757 + $0x288] sm:$0xff]
        %v1089 = vld [vmem:[%s757 + $0x290] sm:$0xff]
        %v1090 = vld [vmem:[%s757 + $0x298] sm:$0xff]
        %v1091 = vld [vmem:[%s757 + $0x2a0] sm:$0xff]
        %v1092 = vld [vmem:[%s757 + $0x2a8] sm:$0xff]
        %v1093 = vld [vmem:[%s757 + $0x2b0] sm:$0xff]
        %v1094 = vld [vmem:[%s757 + $0x2b8] sm:$0xff]
        %v1095 = vld [vmem:[%s757 + $0x2c0] sm:$0xff]
        %v1096 = vld [vmem:[%s757 + $0x2c8] sm:$0xff]
        %v1097 = vld [vmem:[%s757 + $0x2d0] sm:$0xff]
        %v1098 = vld [vmem:[%s757 + $0x2d8] sm:$0xff]
        %v1099 = vld [vmem:[%s757 + $0x2e0] sm:$0xff]
        %v1100 = vld [vmem:[%s757 + $0x2e8] sm:$0xff]
        %v1101 = vld [vmem:[%s757 + $0x2f0] sm:$0xff]
        %v1102 = vld [vmem:[%s757 + $0x2f8] sm:$0xff]
        %v1103 = vld [vmem:[%s767] sm:$0x3f]
        %v1105 = vperm.slane %v1103, 0
        %v1106 = vperm.slane %v1103, 1
        %v1107 = vperm.slane %v1103, 2
        %v1108 = vperm.slane %v1103, 3
        %v1109 = vperm.slane %v1103, 4
        %v1110 = vperm.slane %v1103, 5
        %v1213 = vunpack.c.l.b16 %v1007
        %v1214 = vunpack.c.h.b16 %v1007
        %v1215 = vunpack.c.l.b16 %v1008
        %v1216 = vunpack.c.h.b16 %v1008
        %v1217 = vunpack.c.l.b16 %v1009
        %v1218 = vunpack.c.h.b16 %v1009
        %v1219 = vunpack.c.l.b16 %v1010
        %v1220 = vunpack.c.h.b16 %v1010
        %v1221 = vunpack.c.l.b16 %v1011
        %v1222 = vunpack.c.h.b16 %v1011
        %v1223 = vunpack.c.l.b16 %v1012
        %v1224 = vunpack.c.h.b16 %v1012
        %v1225 = vunpack.c.l.b16 %v1013
        %v1226 = vunpack.c.h.b16 %v1013
        %v1227 = vunpack.c.l.b16 %v1014
        %v1228 = vunpack.c.h.b16 %v1014
        %v1229 = vunpack.c.l.b16 %v1015
        %v1230 = vunpack.c.h.b16 %v1015
        %v1231 = vunpack.c.l.b16 %v1016
        %v1232 = vunpack.c.h.b16 %v1016
        %v1233 = vunpack.c.l.b16 %v1017
        %v1234 = vunpack.c.h.b16 %v1017
        %v1235 = vunpack.c.l.b16 %v1018
        %v1236 = vunpack.c.h.b16 %v1018
        %v1237 = vunpack.c.l.b16 %v1019
        %v1238 = vunpack.c.h.b16 %v1019
        %v1239 = vunpack.c.l.b16 %v1020
        %v1240 = vunpack.c.h.b16 %v1020
        %v1241 = vunpack.c.l.b16 %v1021
        %v1242 = vunpack.c.h.b16 %v1021
        %v1243 = vunpack.c.l.b16 %v1022
        %v1244 = vunpack.c.h.b16 %v1022
        %v1245 = vunpack.c.l.b16 %v1023
        %v1246 = vunpack.c.h.b16 %v1023
        %v1247 = vunpack.c.l.b16 %v1024
        %v1248 = vunpack.c.h.b16 %v1024
        %v1249 = vunpack.c.l.b16 %v1025
        %v1250 = vunpack.c.h.b16 %v1025
        %v1251 = vunpack.c.l.b16 %v1026
        %v1252 = vunpack.c.h.b16 %v1026
        %v1253 = vunpack.c.l.b16 %v1027
        %v1254 = vunpack.c.h.b16 %v1027
        %v1255 = vunpack.c.l.b16 %v1028
        %v1256 = vunpack.c.h.b16 %v1028
        %v1257 = vunpack.c.l.b16 %v1029
        %v1258 = vunpack.c.h.b16 %v1029
        %v1259 = vunpack.c.l.b16 %v1030
        %v1260 = vunpack.c.h.b16 %v1030
        %v1261 = vunpack.c.l.b16 %v1031
        %v1262 = vunpack.c.h.b16 %v1031
        %v1263 = vunpack.c.l.b16 %v1032
        %v1264 = vunpack.c.h.b16 %v1032
        %v1265 = vunpack.c.l.b16 %v1033
        %v1266 = vunpack.c.h.b16 %v1033
        %v1267 = vunpack.c.l.b16 %v1034
        %v1268 = vunpack.c.h.b16 %v1034
        %v1269 = vunpack.c.l.b16 %v1035
        %v1270 = vunpack.c.h.b16 %v1035
        %v1271 = vunpack.c.l.b16 %v1036
        %v1272 = vunpack.c.h.b16 %v1036
        %v1273 = vunpack.c.l.b16 %v1037
        %v1274 = vunpack.c.h.b16 %v1037
        %v1275 = vunpack.c.l.b16 %v1038
        %v1276 = vunpack.c.h.b16 %v1038
        %v1277 = vunpack.c.l.b16 %v1039
        %v1278 = vunpack.c.h.b16 %v1039
        %v1279 = vunpack.c.l.b16 %v1040
        %v1280 = vunpack.c.h.b16 %v1040
        %v1281 = vunpack.c.l.b16 %v1041
        %v1282 = vunpack.c.h.b16 %v1041
        %v1283 = vunpack.c.l.b16 %v1042
        %v1284 = vunpack.c.h.b16 %v1042
        %v1285 = vunpack.c.l.b16 %v1043
        %v1286 = vunpack.c.h.b16 %v1043
        %v1287 = vunpack.c.l.b16 %v1044
        %v1288 = vunpack.c.h.b16 %v1044
        %v1289 = vunpack.c.l.b16 %v1045
        %v1290 = vunpack.c.h.b16 %v1045
        %v1291 = vunpack.c.l.b16 %v1046
        %v1292 = vunpack.c.h.b16 %v1046
        %v1293 = vunpack.c.l.b16 %v1047
        %v1294 = vunpack.c.h.b16 %v1047
        %v1295 = vunpack.c.l.b16 %v1048
        %v1296 = vunpack.c.h.b16 %v1048
        %v1297 = vunpack.c.l.b16 %v1049
        %v1298 = vunpack.c.h.b16 %v1049
        %v1299 = vunpack.c.l.b16 %v1050
        %v1300 = vunpack.c.h.b16 %v1050
        %v1301 = vunpack.c.l.b16 %v1051
        %v1302 = vunpack.c.h.b16 %v1051
        %v1303 = vunpack.c.l.b16 %v1052
        %v1304 = vunpack.c.h.b16 %v1052
        %v1305 = vunpack.c.l.b16 %v1053
        %v1306 = vunpack.c.h.b16 %v1053
        %v1307 = vunpack.c.l.b16 %v1054
        %v1308 = vunpack.c.h.b16 %v1054
        %v1309 = vunpack.c.l.b16 %v1055
        %v1310 = vunpack.c.h.b16 %v1055
        %v1311 = vunpack.c.l.b16 %v1056
        %v1312 = vunpack.c.h.b16 %v1056
        %v1313 = vunpack.c.l.b16 %v1057
        %v1314 = vunpack.c.h.b16 %v1057
        %v1315 = vunpack.c.l.b16 %v1058
        %v1316 = vunpack.c.h.b16 %v1058
        %v1317 = vunpack.c.l.b16 %v1059
        %v1318 = vunpack.c.h.b16 %v1059
        %v1319 = vunpack.c.l.b16 %v1060
        %v1320 = vunpack.c.h.b16 %v1060
        %v1321 = vunpack.c.l.b16 %v1061
        %v1322 = vunpack.c.h.b16 %v1061
        %v1323 = vunpack.c.l.b16 %v1062
        %v1324 = vunpack.c.h.b16 %v1062
        %v1325 = vunpack.c.l.b16 %v1063
        %v1326 = vunpack.c.h.b16 %v1063
        %v1327 = vunpack.c.l.b16 %v1064
        %v1328 = vunpack.c.h.b16 %v1064
        %v1329 = vunpack.c.l.b16 %v1065
        %v1330 = vunpack.c.h.b16 %v1065
        %v1331 = vunpack.c.l.b16 %v1066
        %v1332 = vunpack.c.h.b16 %v1066
        %v1333 = vunpack.c.l.b16 %v1067
        %v1334 = vunpack.c.h.b16 %v1067
        %v1335 = vunpack.c.l.b16 %v1068
        %v1336 = vunpack.c.h.b16 %v1068
        %v1337 = vunpack.c.l.b16 %v1069
        %v1338 = vunpack.c.h.b16 %v1069
        %v1339 = vunpack.c.l.b16 %v1070
        %v1340 = vunpack.c.h.b16 %v1070
        %v1341 = vunpack.c.l.b16 %v1071
        %v1342 = vunpack.c.h.b16 %v1071
        %v1343 = vunpack.c.l.b16 %v1072
        %v1344 = vunpack.c.h.b16 %v1072
        %v1345 = vunpack.c.l.b16 %v1073
        %v1346 = vunpack.c.h.b16 %v1073
        %v1347 = vunpack.c.l.b16 %v1074
        %v1348 = vunpack.c.h.b16 %v1074
        %v1349 = vunpack.c.l.b16 %v1075
        %v1350 = vunpack.c.h.b16 %v1075
        %v1351 = vunpack.c.l.b16 %v1076
        %v1352 = vunpack.c.h.b16 %v1076
        %v1353 = vunpack.c.l.b16 %v1077
        %v1354 = vunpack.c.h.b16 %v1077
        %v1355 = vunpack.c.l.b16 %v1078
        %v1356 = vunpack.c.h.b16 %v1078
        %v1357 = vunpack.c.l.b16 %v1079
        %v1358 = vunpack.c.h.b16 %v1079
        %v1359 = vunpack.c.l.b16 %v1080
        %v1360 = vunpack.c.h.b16 %v1080
        %v1361 = vunpack.c.l.b16 %v1081
        %v1362 = vunpack.c.h.b16 %v1081
        %v1363 = vunpack.c.l.b16 %v1082
        %v1364 = vunpack.c.h.b16 %v1082
        %v1365 = vunpack.c.l.b16 %v1083
        %v1366 = vunpack.c.h.b16 %v1083
        %v1367 = vunpack.c.l.b16 %v1084
        %v1368 = vunpack.c.h.b16 %v1084
        %v1369 = vunpack.c.l.b16 %v1085
        %v1370 = vunpack.c.h.b16 %v1085
        %v1371 = vunpack.c.l.b16 %v1086
        %v1372 = vunpack.c.h.b16 %v1086
        %v1373 = vunpack.c.l.b16 %v1087
        %v1374 = vunpack.c.h.b16 %v1087
        %v1375 = vunpack.c.l.b16 %v1088
        %v1376 = vunpack.c.h.b16 %v1088
        %v1377 = vunpack.c.l.b16 %v1089
        %v1378 = vunpack.c.h.b16 %v1089
        %v1379 = vunpack.c.l.b16 %v1090
        %v1380 = vunpack.c.h.b16 %v1090
        %v1381 = vunpack.c.l.b16 %v1091
        %v1382 = vunpack.c.h.b16 %v1091
        %v1383 = vunpack.c.l.b16 %v1092
        %v1384 = vunpack.c.h.b16 %v1092
        %v1385 = vunpack.c.l.b16 %v1093
        %v1386 = vunpack.c.h.b16 %v1093
        %v1387 = vunpack.c.l.b16 %v1094
        %v1388 = vunpack.c.h.b16 %v1094
        %v1389 = vunpack.c.l.b16 %v1095
        %v1390 = vunpack.c.h.b16 %v1095
        %v1391 = vunpack.c.l.b16 %v1096
        %v1392 = vunpack.c.h.b16 %v1096
        %v1393 = vunpack.c.l.b16 %v1097
        %v1394 = vunpack.c.h.b16 %v1097
        %v1395 = vunpack.c.l.b16 %v1098
        %v1396 = vunpack.c.h.b16 %v1098
        %v1397 = vunpack.c.l.b16 %v1099
        %v1398 = vunpack.c.h.b16 %v1099
        %v1399 = vunpack.c.l.b16 %v1100
        %v1400 = vunpack.c.h.b16 %v1100
        %v1401 = vunpack.c.l.b16 %v1101
        %v1402 = vunpack.c.h.b16 %v1101
        %v1403 = vunpack.c.l.b16 %v1102
        %v1404 = vunpack.c.h.b16 %v1102
        %v1405 = vpack.c.b16 %v1219, %v1213
        %v1406 = vpack.c.b16 %v1220, %v1214
        %v1407 = vpack.c.b16 %v1221, %v1215
        %v1408 = vpack.c.b16 %v1222, %v1216
        %v1409 = vpack.c.b16 %v1223, %v1217
        %v1410 = vpack.c.b16 %v1224, %v1218
        %v1411 = vpack.c.b16 %v1231, %v1225
        %v1412 = vpack.c.b16 %v1232, %v1226
        %v1413 = vpack.c.b16 %v1233, %v1227
        %v1414 = vpack.c.b16 %v1234, %v1228
        %v1415 = vpack.c.b16 %v1235, %v1229
        %v1416 = vpack.c.b16 %v1236, %v1230
        %v1417 = vpack.c.b16 %v1243, %v1237
        %v1418 = vpack.c.b16 %v1244, %v1238
        %v1419 = vpack.c.b16 %v1245, %v1239
        %v1420 = vpack.c.b16 %v1246, %v1240
        %v1421 = vpack.c.b16 %v1247, %v1241
        %v1422 = vpack.c.b16 %v1248, %v1242
        %v1423 = vpack.c.b16 %v1255, %v1249
        %v1424 = vpack.c.b16 %v1256, %v1250
        %v1425 = vpack.c.b16 %v1257, %v1251
        %v1426 = vpack.c.b16 %v1258, %v1252
        %v1427 = vpack.c.b16 %v1259, %v1253
        %v1428 = vpack.c.b16 %v1260, %v1254
        %v1429 = vpack.c.b16 %v1267, %v1261
        %v1430 = vpack.c.b16 %v1268, %v1262
        %v1431 = vpack.c.b16 %v1269, %v1263
        %v1432 = vpack.c.b16 %v1270, %v1264
        %v1433 = vpack.c.b16 %v1271, %v1265
        %v1434 = vpack.c.b16 %v1272, %v1266
        %v1435 = vpack.c.b16 %v1279, %v1273
        %v1436 = vpack.c.b16 %v1280, %v1274
        %v1437 = vpack.c.b16 %v1281, %v1275
        %v1438 = vpack.c.b16 %v1282, %v1276
        %v1439 = vpack.c.b16 %v1283, %v1277
        %v1440 = vpack.c.b16 %v1284, %v1278
        %v1441 = vpack.c.b16 %v1291, %v1285
        %v1442 = vpack.c.b16 %v1292, %v1286
        %v1443 = vpack.c.b16 %v1293, %v1287
        %v1444 = vpack.c.b16 %v1294, %v1288
        %v1445 = vpack.c.b16 %v1295, %v1289
        %v1446 = vpack.c.b16 %v1296, %v1290
        %v1447 = vpack.c.b16 %v1303, %v1297
        %v1448 = vpack.c.b16 %v1304, %v1298
        %v1449 = vpack.c.b16 %v1305, %v1299
        %v1450 = vpack.c.b16 %v1306, %v1300
        %v1451 = vpack.c.b16 %v1307, %v1301
        %v1452 = vpack.c.b16 %v1308, %v1302
        %v1453 = vpack.c.b16 %v1315, %v1309
        %v1454 = vpack.c.b16 %v1316, %v1310
        %v1455 = vpack.c.b16 %v1317, %v1311
        %v1456 = vpack.c.b16 %v1318, %v1312
        %v1457 = vpack.c.b16 %v1319, %v1313
        %v1458 = vpack.c.b16 %v1320, %v1314
        %v1459 = vpack.c.b16 %v1327, %v1321
        %v1460 = vpack.c.b16 %v1328, %v1322
        %v1461 = vpack.c.b16 %v1329, %v1323
        %v1462 = vpack.c.b16 %v1330, %v1324
        %v1463 = vpack.c.b16 %v1331, %v1325
        %v1464 = vpack.c.b16 %v1332, %v1326
        %v1465 = vpack.c.b16 %v1339, %v1333
        %v1466 = vpack.c.b16 %v1340, %v1334
        %v1467 = vpack.c.b16 %v1341, %v1335
        %v1468 = vpack.c.b16 %v1342, %v1336
        %v1469 = vpack.c.b16 %v1343, %v1337
        %v1470 = vpack.c.b16 %v1344, %v1338
        %v1471 = vpack.c.b16 %v1351, %v1345
        %v1472 = vpack.c.b16 %v1352, %v1346
        %v1473 = vpack.c.b16 %v1353, %v1347
        %v1474 = vpack.c.b16 %v1354, %v1348
        %v1475 = vpack.c.b16 %v1355, %v1349
        %v1476 = vpack.c.b16 %v1356, %v1350
        %v1477 = vpack.c.b16 %v1363, %v1357
        %v1478 = vpack.c.b16 %v1364, %v1358
        %v1479 = vpack.c.b16 %v1365, %v1359
        %v1480 = vpack.c.b16 %v1366, %v1360
        %v1481 = vpack.c.b16 %v1367, %v1361
        %v1482 = vpack.c.b16 %v1368, %v1362
        %v1483 = vpack.c.b16 %v1375, %v1369
        %v1484 = vpack.c.b16 %v1376, %v1370
        %v1485 = vpack.c.b16 %v1377, %v1371
        %v1486 = vpack.c.b16 %v1378, %v1372
        %v1487 = vpack.c.b16 %v1379, %v1373
        %v1488 = vpack.c.b16 %v1380, %v1374
        %v1489 = vpack.c.b16 %v1387, %v1381
        %v1490 = vpack.c.b16 %v1388, %v1382
        %v1491 = vpack.c.b16 %v1389, %v1383
        %v1492 = vpack.c.b16 %v1390, %v1384
        %v1493 = vpack.c.b16 %v1391, %v1385
        %v1494 = vpack.c.b16 %v1392, %v1386
        %v1495 = vpack.c.b16 %v1399, %v1393
        %v1496 = vpack.c.b16 %v1400, %v1394
        %v1497 = vpack.c.b16 %v1401, %v1395
        %v1498 = vpack.c.b16 %v1402, %v1396
        %v1499 = vpack.c.b16 %v1403, %v1397
        %v1500 = vpack.c.b16 %v1404, %v1398
        %1597 = vmatpush.bf16.msra.mxu0 %v1447
        %1598 = vmatpush.bf16.msra.mxu0 %v1441
        %1599 = vmatpush.bf16.msra.mxu0 %v1435
        %1600 = vmatpush.bf16.msra.mxu0 %v1429
        %1601 = vmatpush.bf16.msra.mxu0 %v1423
        %1602 = vmatpush.bf16.msra.mxu0 %v1417
        %1603 = vmatpush.bf16.msra.mxu0 %v1411
        %1604 = vmatpush.bf16.msra.mxu0 %v1405
        %1605 = vmatmul.bf16.gmra.mxu0 %v1005
        %v1606 = vpop.f32.mrf.mxu0
        %v1607 = vadd.f32 %v1105, %v1606
        %v1608 = vpop.f32.mrf.mxu0
        %1609 = vdwg.mxu0
        %1610 = vmatpush.bf16.msra.mxu0 %v1495
        %1611 = vmatpush.bf16.msra.mxu0 %v1489
        %1612 = vmatpush.bf16.msra.mxu0 %v1483
        %1613 = vmatpush.bf16.msra.mxu0 %v1477
        %1614 = vmatpush.bf16.msra.mxu0 %v1471
        %1615 = vmatpush.bf16.msra.mxu0 %v1465
        %1616 = vmatpush.bf16.msra.mxu0 %v1459
        %1617 = vmatpush.bf16.msra.mxu0 %v1453
        %1618 = vmatmul.bf16.gmra.mxu0 %v1006
        %v1619 = vpop.f32.mrf.mxu0
        %v1620 = vadd.f32 %v1607, %v1619
        %v1621 = vpop.f32.mrf.mxu0
        %1622 = vdwg.mxu0
        %1623 = vmatpush.bf16.msra.mxu0 %v1448
        %1624 = vmatpush.bf16.msra.mxu0 %v1442
        %1625 = vmatpush.bf16.msra.mxu0 %v1436
        %1626 = vmatpush.bf16.msra.mxu0 %v1430
        %1627 = vmatpush.bf16.msra.mxu0 %v1424
        %1628 = vmatpush.bf16.msra.mxu0 %v1418
        %1629 = vmatpush.bf16.msra.mxu0 %v1412
        %1630 = vmatpush.bf16.msra.mxu0 %v1406
        %1631 = vmatmul.bf16.gmra.mxu0 %v1005
        %v1632 = vpop.f32.mrf.mxu0
        %v1633 = vadd.f32 %v1106, %v1632
        %v1634 = vpop.f32.mrf.mxu0
        %1635 = vdwg.mxu0
        %1636 = vmatpush.bf16.msra.mxu0 %v1496
        %1637 = vmatpush.bf16.msra.mxu0 %v1490
        %1638 = vmatpush.bf16.msra.mxu0 %v1484
        %1639 = vmatpush.bf16.msra.mxu0 %v1478
        %1640 = vmatpush.bf16.msra.mxu0 %v1472
        %1641 = vmatpush.bf16.msra.mxu0 %v1466
        %1642 = vmatpush.bf16.msra.mxu0 %v1460
        %1643 = vmatpush.bf16.msra.mxu0 %v1454
        %1644 = vmatmul.bf16.gmra.mxu0 %v1006
        %v1645 = vpop.f32.mrf.mxu0
        %v1646 = vadd.f32 %v1633, %v1645
        %v1647 = vpop.f32.mrf.mxu0
        %1648 = vdwg.mxu0
        %1649 = vmatpush.bf16.msra.mxu0 %v1449
        %1650 = vmatpush.bf16.msra.mxu0 %v1443
        %1651 = vmatpush.bf16.msra.mxu0 %v1437
        %1652 = vmatpush.bf16.msra.mxu0 %v1431
        %1653 = vmatpush.bf16.msra.mxu0 %v1425
        %1654 = vmatpush.bf16.msra.mxu0 %v1419
        %1655 = vmatpush.bf16.msra.mxu0 %v1413
        %1656 = vmatpush.bf16.msra.mxu0 %v1407
        %1657 = vmatmul.bf16.gmra.mxu0 %v1005
        %v1658 = vpop.f32.mrf.mxu0
        %v1659 = vadd.f32 %v1107, %v1658
        %v1660 = vpop.f32.mrf.mxu0
        %1661 = vdwg.mxu0
        %1662 = vmatpush.bf16.msra.mxu0 %v1497
        %1663 = vmatpush.bf16.msra.mxu0 %v1491
        %1664 = vmatpush.bf16.msra.mxu0 %v1485
        %1665 = vmatpush.bf16.msra.mxu0 %v1479
        %1666 = vmatpush.bf16.msra.mxu0 %v1473
        %1667 = vmatpush.bf16.msra.mxu0 %v1467
        %1668 = vmatpush.bf16.msra.mxu0 %v1461
        %1669 = vmatpush.bf16.msra.mxu0 %v1455
        %1670 = vmatmul.bf16.gmra.mxu0 %v1006
        %v1671 = vpop.f32.mrf.mxu0
        %v1672 = vadd.f32 %v1659, %v1671
        %v1673 = vpop.f32.mrf.mxu0
        %1674 = vdwg.mxu0
        %1675 = vmatpush.bf16.msra.mxu0 %v1450
        %1676 = vmatpush.bf16.msra.mxu0 %v1444
        %1677 = vmatpush.bf16.msra.mxu0 %v1438
        %1678 = vmatpush.bf16.msra.mxu0 %v1432
        %1679 = vmatpush.bf16.msra.mxu0 %v1426
        %1680 = vmatpush.bf16.msra.mxu0 %v1420
        %1681 = vmatpush.bf16.msra.mxu0 %v1414
        %1682 = vmatpush.bf16.msra.mxu0 %v1408
        %1683 = vmatmul.bf16.gmra.mxu0 %v1005
        %v1684 = vpop.f32.mrf.mxu0
        %v1685 = vadd.f32 %v1108, %v1684
        %v1686 = vpop.f32.mrf.mxu0
        %1687 = vdwg.mxu0
        %1688 = vmatpush.bf16.msra.mxu0 %v1498
        %1689 = vmatpush.bf16.msra.mxu0 %v1492
        %1690 = vmatpush.bf16.msra.mxu0 %v1486
        %1691 = vmatpush.bf16.msra.mxu0 %v1480
        %1692 = vmatpush.bf16.msra.mxu0 %v1474
        %1693 = vmatpush.bf16.msra.mxu0 %v1468
        %1694 = vmatpush.bf16.msra.mxu0 %v1462
        %1695 = vmatpush.bf16.msra.mxu0 %v1456
        %1696 = vmatmul.bf16.gmra.mxu0 %v1006
        %v1697 = vpop.f32.mrf.mxu0
        %v1698 = vadd.f32 %v1685, %v1697
        %v1699 = vpop.f32.mrf.mxu0
        %1700 = vdwg.mxu0
        %1701 = vmatpush.bf16.msra.mxu0 %v1451
        %1702 = vmatpush.bf16.msra.mxu0 %v1445
        %1703 = vmatpush.bf16.msra.mxu0 %v1439
        %1704 = vmatpush.bf16.msra.mxu0 %v1433
        %1705 = vmatpush.bf16.msra.mxu0 %v1427
        %1706 = vmatpush.bf16.msra.mxu0 %v1421
        %1707 = vmatpush.bf16.msra.mxu0 %v1415
        %1708 = vmatpush.bf16.msra.mxu0 %v1409
        %1709 = vmatmul.bf16.gmra.mxu0 %v1005
        %v1710 = vpop.f32.mrf.mxu0
        %v1711 = vadd.f32 %v1109, %v1710
        %v1712 = vpop.f32.mrf.mxu0
        %1713 = vdwg.mxu0
        %1714 = vmatpush.bf16.msra.mxu0 %v1499
        %1715 = vmatpush.bf16.msra.mxu0 %v1493
        %1716 = vmatpush.bf16.msra.mxu0 %v1487
        %1717 = vmatpush.bf16.msra.mxu0 %v1481
        %1718 = vmatpush.bf16.msra.mxu0 %v1475
        %1719 = vmatpush.bf16.msra.mxu0 %v1469
        %1720 = vmatpush.bf16.msra.mxu0 %v1463
        %1721 = vmatpush.bf16.msra.mxu0 %v1457
        %1722 = vmatmul.bf16.gmra.mxu0 %v1006
        %v1723 = vpop.f32.mrf.mxu0
        %v1724 = vadd.f32 %v1711, %v1723
        %v1725 = vpop.f32.mrf.mxu0
        %1726 = vdwg.mxu0
        %1727 = vmatpush.bf16.msra.mxu0 %v1452
        %1728 = vmatpush.bf16.msra.mxu0 %v1446
        %1729 = vmatpush.bf16.msra.mxu0 %v1440
        %1730 = vmatpush.bf16.msra.mxu0 %v1434
        %1731 = vmatpush.bf16.msra.mxu0 %v1428
        %1732 = vmatpush.bf16.msra.mxu0 %v1422
        %1733 = vmatpush.bf16.msra.mxu0 %v1416
        %1734 = vmatpush.bf16.msra.mxu0 %v1410
        %1735 = vmatmul.bf16.gmra.mxu0 %v1005
        %v1736 = vpop.f32.mrf.mxu0
        %v1737 = vadd.f32 %v1110, %v1736
        %v1738 = vpop.f32.mrf.mxu0
        %1739 = vdwg.mxu0
        %1740 = vmatpush.bf16.msra.mxu0 %v1500
        %1741 = vmatpush.bf16.msra.mxu0 %v1494
        %1742 = vmatpush.bf16.msra.mxu0 %v1488
        %1743 = vmatpush.bf16.msra.mxu0 %v1482
        %1744 = vmatpush.bf16.msra.mxu0 %v1476
        %1745 = vmatpush.bf16.msra.mxu0 %v1470
        %1746 = vmatpush.bf16.msra.mxu0 %v1464
        %1747 = vmatpush.bf16.msra.mxu0 %v1458
        %1748 = vmatmul.bf16.gmra.mxu0 %v1006
        %v1749 = vpop.f32.mrf.mxu0
        %v1750 = vadd.f32 %v1737, %v1749
        %v1751 = vpop.f32.mrf.mxu0
        %1752 = vdwg.mxu0
        %v1753 = vmul.f32 %v1620, 0.17677669
        %v1754 = vmul.f32 %v1646, 0.17677669
        %vm1755 = vcmask 261120
        %v1757 = vsel %vm1755, %v1753, 0
        %v1760 = vsel %vm1755, %v1672, 0
        %1762 = vmatpush.xpose.msra.mxu0 0.0
        %1763 = vmatpush.xpose.msra.mxu0 0.0
        %1764 = vmatpush.xpose.msra.mxu0 0.0
        %1765 = vmatpush.xpose.msra.mxu0 0.0
        %1766 = vmatpush.xpose.msra.mxu0 0.0
        %1767 = vmatpush.xpose.msra.mxu0 0.0
        %1768 = vmatpush.xpose.msra.mxu0 0.0
        %1769 = vmatpush.xpose.msra.mxu0 0.0
        %1770 = vmatpush.xpose.msra.mxu0 0.0
        %1771 = vmatpush.xpose.msra.mxu0 0.0
        %1772 = vmatpush.xpose.msra.mxu0 0.0
        %1773 = vmatpush.xpose.msra.mxu0 0.0
        %1774 = vmatpush.xpose.msra.mxu0 0.0
        %1775 = vmatpush.xpose.msra.mxu0 0.0
        %1776 = vmatpush.xpose.msra.mxu0 0.0
        %1777 = vmatpush.xpose.msra.mxu0 %v1760
        %1778 = vmatmul.f32.gmra.mxu0 %v1757
        %v1779 = vpop.f32.mrf.mxu0
        %v1780 = vadd.f32 0.0, %v1779
        %1781 = vdwg.mxu0
        %vm1782 = vcmask 64512
        %v1783 = vsel %vm1782, %v1780, -inf
        %1784 = vmax.xlane.f32.xlu0 %v1783
        %v1785 = vpop.xlane.xlu0 %1784
        %v1786 = vsub.f32 %v1780, %v1785
        %v1787 = vmul.f32 %v1786, 1.442695
        %v1788 = vpow.pop %v1787
        %v1789 = vsel %vm1782, %v1788, 0.0
        %1790 = vadd.xlane.f32.xlu0 %v1789
        %v1791 = vpop.xlane.xlu0 %1790
        %v1792 = vrcp.pop %v1791
        %v1793 = vmul.f32 %v1788, %v1792
        %v1795 = vsel %vm1782, %v1793, 0
        %1797 = vmatpush.msra.mxu0 0.0
        %1798 = vmatpush.msra.mxu0 0.0
        %1799 = vmatpush.msra.mxu0 0.0
        %1800 = vmatpush.msra.mxu0 0.0
        %1801 = vmatpush.msra.mxu0 0.0
        %1802 = vmatpush.msra.mxu0 0.0
        %1803 = vmatpush.msra.mxu0 0.0
        %1804 = vmatpush.msra.mxu0 0.0
        %1805 = vmatpush.msra.mxu0 0.0
        %1806 = vmatpush.msra.mxu0 0.0
        %1807 = vmatpush.msra.mxu0 0.0
        %1808 = vmatpush.msra.mxu0 0.0
        %1809 = vmatpush.msra.mxu0 0.0
        %1810 = vmatpush.msra.mxu0 0.0
        %1811 = vmatpush.msra.mxu0 0.0
        %1812 = vmatpush.msra.mxu0 %v1724
        %1813 = vmatmul.f32.gmra.mxu0 %v1795
        %v1814 = vpop.f32.mrf.mxu0
        %v1815 = vadd.f32 0.0, %v1814
        %1816 = vdwg.mxu0
        %1817 = vrot.lane.b32.xlu0 %v1753, 96
        %v1818 = vpop.permute.xlu0 %1817
        %1819 = vrot.lane.b32.xlu0 %v1672, 96
        %v1820 = vpop.permute.xlu0 %1819
        %v1821 = vsel %vm1755, %v1818, 0
        %v1823 = vsel %vm1755, %v1820, 0
        %1825 = vmatpush.xpose.msra.mxu0 0.0
        %1826 = vmatpush.xpose.msra.mxu0 0.0
        %1827 = vmatpush.xpose.msra.mxu0 0.0
        %1828 = vmatpush.xpose.msra.mxu0 0.0
        %1829 = vmatpush.xpose.msra.mxu0 0.0
        %1830 = vmatpush.xpose.msra.mxu0 0.0
        %1831 = vmatpush.xpose.msra.mxu0 0.0
        %1832 = vmatpush.xpose.msra.mxu0 0.0
        %1833 = vmatpush.xpose.msra.mxu0 0.0
        %1834 = vmatpush.xpose.msra.mxu0 0.0
        %1835 = vmatpush.xpose.msra.mxu0 0.0
        %1836 = vmatpush.xpose.msra.mxu0 0.0
        %1837 = vmatpush.xpose.msra.mxu0 0.0
        %1838 = vmatpush.xpose.msra.mxu0 0.0
        %1839 = vmatpush.xpose.msra.mxu0 0.0
        %1840 = vmatpush.xpose.msra.mxu0 %v1823
        %1841 = vmatmul.f32.gmra.mxu0 %v1821
        %v1842 = vpop.f32.mrf.mxu0
        %v1843 = vadd.f32 0.0, %v1842
        %1844 = vdwg.mxu0
        %v1845 = vsel %vm1782, %v1843, -inf
        %1846 = vmax.xlane.f32.xlu0 %v1845
        %v1847 = vpop.xlane.xlu0 %1846
        %v1848 = vsub.f32 %v1843, %v1847
        %v1849 = vmul.f32 %v1848, 1.442695
        %v1850 = vpow.pop %v1849
        %v1851 = vsel %vm1782, %v1850, 0.0
        %1852 = vadd.xlane.f32.xlu0 %v1851
        %v1853 = vpop.xlane.xlu0 %1852
        %v1854 = vrcp.pop %v1853
        %v1855 = vmul.f32 %v1850, %v1854
        %1857 = vrot.lane.b32.xlu0 %v1724, 96
        %v1858 = vpop.permute.xlu0 %1857
        %v1861 = vsel %vm1782, %v1855, 0
        %1863 = vmatpush.msra.mxu0 0.0
        %1864 = vmatpush.msra.mxu0 0.0
        %1865 = vmatpush.msra.mxu0 0.0
        %1866 = vmatpush.msra.mxu0 0.0
        %1867 = vmatpush.msra.mxu0 0.0
        %1868 = vmatpush.msra.mxu0 0.0
        %1869 = vmatpush.msra.mxu0 0.0
        %1870 = vmatpush.msra.mxu0 0.0
        %1871 = vmatpush.msra.mxu0 0.0
        %1872 = vmatpush.msra.mxu0 0.0
        %1873 = vmatpush.msra.mxu0 0.0
        %1874 = vmatpush.msra.mxu0 0.0
        %1875 = vmatpush.msra.mxu0 0.0
        %1876 = vmatpush.msra.mxu0 0.0
        %1877 = vmatpush.msra.mxu0 0.0
        %1878 = vmatpush.msra.mxu0 %v1858
        %1879 = vmatmul.f32.gmra.mxu0 %v1861
        %v1880 = vpop.f32.mrf.mxu0
        %v1881 = vadd.f32 0.0, %v1880
        %1882 = vdwg.mxu0
        %1883 = vrot.lane.b32.xlu0 %v1753, 64
        %v1884 = vpop.permute.xlu0 %1883
        %1885 = vrot.lane.b32.xlu0 %v1672, 64
        %v1886 = vpop.permute.xlu0 %1885
        %v1887 = vsel %vm1755, %v1884, 0
        %v1889 = vsel %vm1755, %v1886, 0
        %1891 = vmatpush.xpose.msra.mxu0 0.0
        %1892 = vmatpush.xpose.msra.mxu0 0.0
        %1893 = vmatpush.xpose.msra.mxu0 0.0
        %1894 = vmatpush.xpose.msra.mxu0 0.0
        %1895 = vmatpush.xpose.msra.mxu0 0.0
        %1896 = vmatpush.xpose.msra.mxu0 0.0
        %1897 = vmatpush.xpose.msra.mxu0 0.0
        %1898 = vmatpush.xpose.msra.mxu0 0.0
        %1899 = vmatpush.xpose.msra.mxu0 0.0
        %1900 = vmatpush.xpose.msra.mxu0 0.0
        %1901 = vmatpush.xpose.msra.mxu0 0.0
        %1902 = vmatpush.xpose.msra.mxu0 0.0
        %1903 = vmatpush.xpose.msra.mxu0 0.0
        %1904 = vmatpush.xpose.msra.mxu0 0.0
        %1905 = vmatpush.xpose.msra.mxu0 0.0
        %1906 = vmatpush.xpose.msra.mxu0 %v1889
        %1907 = vmatmul.f32.gmra.mxu0 %v1887
        %v1908 = vpop.f32.mrf.mxu0
        %v1909 = vadd.f32 0.0, %v1908
        %1910 = vdwg.mxu0
        %v1911 = vsel %vm1782, %v1909, -inf
        %1912 = vmax.xlane.f32.xlu0 %v1911
        %v1913 = vpop.xlane.xlu0 %1912
        %v1914 = vsub.f32 %v1909, %v1913
        %v1915 = vmul.f32 %v1914, 1.442695
        %v1916 = vpow.pop %v1915
        %v1917 = vsel %vm1782, %v1916, 0.0
        %1918 = vadd.xlane.f32.xlu0 %v1917
        %v1919 = vpop.xlane.xlu0 %1918
        %v1920 = vrcp.pop %v1919
        %v1921 = vmul.f32 %v1916, %v1920
        %1922 = vrot.lane.b32.xlu0 %v1724, 64
        %v1923 = vpop.permute.xlu0 %1922
        %v1926 = vsel %vm1782, %v1921, 0
        %1928 = vmatpush.msra.mxu0 0.0
        %1929 = vmatpush.msra.mxu0 0.0
        %1930 = vmatpush.msra.mxu0 0.0
        %1931 = vmatpush.msra.mxu0 0.0
        %1932 = vmatpush.msra.mxu0 0.0
        %1933 = vmatpush.msra.mxu0 0.0
        %1934 = vmatpush.msra.mxu0 0.0
        %1935 = vmatpush.msra.mxu0 0.0
        %1936 = vmatpush.msra.mxu0 0.0
        %1937 = vmatpush.msra.mxu0 0.0
        %1938 = vmatpush.msra.mxu0 0.0
        %1939 = vmatpush.msra.mxu0 0.0
        %1940 = vmatpush.msra.mxu0 0.0
        %1941 = vmatpush.msra.mxu0 0.0
        %1942 = vmatpush.msra.mxu0 0.0
        %1943 = vmatpush.msra.mxu0 %v1923
        %1944 = vmatmul.f32.gmra.mxu0 %v1926
        %v1945 = vpop.f32.mrf.mxu0
        %v1946 = vadd.f32 0.0, %v1945
        %1947 = vdwg.mxu0
        %1948 = vrot.lane.b32.xlu0 %v1753, 32
        %v1949 = vpop.permute.xlu0 %1948
        %1950 = vrot.lane.b32.xlu0 %v1672, 32
        %v1951 = vpop.permute.xlu0 %1950
        %v1952 = vsel %vm1755, %v1949, 0
        %v1954 = vsel %vm1755, %v1951, 0
        %1956 = vmatpush.xpose.msra.mxu0 0.0
        %1957 = vmatpush.xpose.msra.mxu0 0.0
        %1958 = vmatpush.xpose.msra.mxu0 0.0
        %1959 = vmatpush.xpose.msra.mxu0 0.0
        %1960 = vmatpush.xpose.msra.mxu0 0.0
        %1961 = vmatpush.xpose.msra.mxu0 0.0
        %1962 = vmatpush.xpose.msra.mxu0 0.0
        %1963 = vmatpush.xpose.msra.mxu0 0.0
        %1964 = vmatpush.xpose.msra.mxu0 0.0
        %1965 = vmatpush.xpose.msra.mxu0 0.0
        %1966 = vmatpush.xpose.msra.mxu0 0.0
        %1967 = vmatpush.xpose.msra.mxu0 0.0
        %1968 = vmatpush.xpose.msra.mxu0 0.0
        %1969 = vmatpush.xpose.msra.mxu0 0.0
        %1970 = vmatpush.xpose.msra.mxu0 0.0
        %1971 = vmatpush.xpose.msra.mxu0 %v1954
        %1972 = vmatmul.f32.gmra.mxu0 %v1952
        %v1973 = vpop.f32.mrf.mxu0
        %v1974 = vadd.f32 0.0, %v1973
        %1975 = vdwg.mxu0
        %v1976 = vsel %vm1782, %v1974, -inf
        %1977 = vmax.xlane.f32.xlu0 %v1976
        %v1978 = vpop.xlane.xlu0 %1977
        %v1979 = vsub.f32 %v1974, %v1978
        %v1980 = vmul.f32 %v1979, 1.442695
        %v1981 = vpow.pop %v1980
        %v1982 = vsel %vm1782, %v1981, 0.0
        %1983 = vadd.xlane.f32.xlu0 %v1982
        %v1984 = vpop.xlane.xlu0 %1983
        %v1985 = vrcp.pop %v1984
        %v1986 = vmul.f32 %v1981, %v1985
        %1987 = vrot.lane.b32.xlu0 %v1724, 32
        %v1988 = vpop.permute.xlu0 %1987
        %v1991 = vsel %vm1782, %v1986, 0
        %1993 = vmatpush.msra.mxu0 0.0
        %1994 = vmatpush.msra.mxu0 0.0
        %1995 = vmatpush.msra.mxu0 0.0
        %1996 = vmatpush.msra.mxu0 0.0
        %1997 = vmatpush.msra.mxu0 0.0
        %1998 = vmatpush.msra.mxu0 0.0
        %1999 = vmatpush.msra.mxu0 0.0
        %2000 = vmatpush.msra.mxu0 0.0
        %2001 = vmatpush.msra.mxu0 0.0
        %2002 = vmatpush.msra.mxu0 0.0
        %2003 = vmatpush.msra.mxu0 0.0
        %2004 = vmatpush.msra.mxu0 0.0
        %2005 = vmatpush.msra.mxu0 0.0
        %2006 = vmatpush.msra.mxu0 0.0
        %2007 = vmatpush.msra.mxu0 0.0
        %2008 = vmatpush.msra.mxu0 %v1988
        %2009 = vmatmul.f32.gmra.mxu0 %v1991
        %v2010 = vpop.f32.mrf.mxu0
        %v2011 = vadd.f32 0.0, %v2010
        %2012 = vdwg.mxu0
        %v2014 = vsel %vm1755, %v1754, 0
        %v2017 = vsel %vm1755, %v1698, 0
        %2019 = vmatpush.xpose.msra.mxu0 0.0
        %2020 = vmatpush.xpose.msra.mxu0 0.0
        %2021 = vmatpush.xpose.msra.mxu0 0.0
        %2022 = vmatpush.xpose.msra.mxu0 0.0
        %2023 = vmatpush.xpose.msra.mxu0 0.0
        %2024 = vmatpush.xpose.msra.mxu0 0.0
        %2025 = vmatpush.xpose.msra.mxu0 0.0
        %2026 = vmatpush.xpose.msra.mxu0 0.0
        %2027 = vmatpush.xpose.msra.mxu0 0.0
        %2028 = vmatpush.xpose.msra.mxu0 0.0
        %2029 = vmatpush.xpose.msra.mxu0 0.0
        %2030 = vmatpush.xpose.msra.mxu0 0.0
        %2031 = vmatpush.xpose.msra.mxu0 0.0
        %2032 = vmatpush.xpose.msra.mxu0 0.0
        %2033 = vmatpush.xpose.msra.mxu0 0.0
        %2034 = vmatpush.xpose.msra.mxu0 %v2017
        %2035 = vmatmul.f32.gmra.mxu0 %v2014
        %v2036 = vpop.f32.mrf.mxu0
        %v2037 = vadd.f32 0.0, %v2036
        %2038 = vdwg.mxu0
        %v2039 = vsel %vm1782, %v2037, -inf
        %2040 = vmax.xlane.f32.xlu0 %v2039
        %v2041 = vpop.xlane.xlu0 %2040
        %v2042 = vsub.f32 %v2037, %v2041
        %v2043 = vmul.f32 %v2042, 1.442695
        %v2044 = vpow.pop %v2043
        %v2045 = vsel %vm1782, %v2044, 0.0
        %2046 = vadd.xlane.f32.xlu0 %v2045
        %v2047 = vpop.xlane.xlu0 %2046
        %v2048 = vrcp.pop %v2047
        %v2049 = vmul.f32 %v2044, %v2048
        %v2051 = vsel %vm1782, %v2049, 0
        %2053 = vmatpush.msra.mxu0 0.0
        %2054 = vmatpush.msra.mxu0 0.0
        %2055 = vmatpush.msra.mxu0 0.0
        %2056 = vmatpush.msra.mxu0 0.0
        %2057 = vmatpush.msra.mxu0 0.0
        %2058 = vmatpush.msra.mxu0 0.0
        %2059 = vmatpush.msra.mxu0 0.0
        %2060 = vmatpush.msra.mxu0 0.0
        %2061 = vmatpush.msra.mxu0 0.0
        %2062 = vmatpush.msra.mxu0 0.0
        %2063 = vmatpush.msra.mxu0 0.0
        %2064 = vmatpush.msra.mxu0 0.0
        %2065 = vmatpush.msra.mxu0 0.0
        %2066 = vmatpush.msra.mxu0 0.0
        %2067 = vmatpush.msra.mxu0 0.0
        %2068 = vmatpush.msra.mxu0 %v1750
        %2069 = vmatmul.f32.gmra.mxu0 %v2051
        %v2070 = vpop.f32.mrf.mxu0
        %v2071 = vadd.f32 0.0, %v2070
        %2072 = vdwg.mxu0
        %2073 = vrot.lane.b32.xlu0 %v1754, 96
        %v2074 = vpop.permute.xlu0 %2073
        %2075 = vrot.lane.b32.xlu0 %v1698, 96
        %v2076 = vpop.permute.xlu0 %2075
        %v2077 = vsel %vm1755, %v2074, 0
        %v2079 = vsel %vm1755, %v2076, 0
        %2081 = vmatpush.xpose.msra.mxu0 0.0
        %2082 = vmatpush.xpose.msra.mxu0 0.0
        %2083 = vmatpush.xpose.msra.mxu0 0.0
        %2084 = vmatpush.xpose.msra.mxu0 0.0
        %2085 = vmatpush.xpose.msra.mxu0 0.0
        %2086 = vmatpush.xpose.msra.mxu0 0.0
        %2087 = vmatpush.xpose.msra.mxu0 0.0
        %2088 = vmatpush.xpose.msra.mxu0 0.0
        %2089 = vmatpush.xpose.msra.mxu0 0.0
        %2090 = vmatpush.xpose.msra.mxu0 0.0
        %2091 = vmatpush.xpose.msra.mxu0 0.0
        %2092 = vmatpush.xpose.msra.mxu0 0.0
        %2093 = vmatpush.xpose.msra.mxu0 0.0
        %2094 = vmatpush.xpose.msra.mxu0 0.0
        %2095 = vmatpush.xpose.msra.mxu0 0.0
        %2096 = vmatpush.xpose.msra.mxu0 %v2079
        %2097 = vmatmul.f32.gmra.mxu0 %v2077
        %v2098 = vpop.f32.mrf.mxu0
        %v2099 = vadd.f32 0.0, %v2098
        %2100 = vdwg.mxu0
        %v2101 = vsel %vm1782, %v2099, -inf
        %2102 = vmax.xlane.f32.xlu0 %v2101
        %v2103 = vpop.xlane.xlu0 %2102
        %v2104 = vsub.f32 %v2099, %v2103
        %v2105 = vmul.f32 %v2104, 1.442695
        %v2106 = vpow.pop %v2105
        %v2107 = vsel %vm1782, %v2106, 0.0
        %2108 = vadd.xlane.f32.xlu0 %v2107
        %v2109 = vpop.xlane.xlu0 %2108
        %v2110 = vrcp.pop %v2109
        %v2111 = vmul.f32 %v2106, %v2110
        %2113 = vrot.lane.b32.xlu0 %v1750, 96
        %v2114 = vpop.permute.xlu0 %2113
        %v2117 = vsel %vm1782, %v2111, 0
        %2119 = vmatpush.msra.mxu0 0.0
        %2120 = vmatpush.msra.mxu0 0.0
        %2121 = vmatpush.msra.mxu0 0.0
        %2122 = vmatpush.msra.mxu0 0.0
        %2123 = vmatpush.msra.mxu0 0.0
        %2124 = vmatpush.msra.mxu0 0.0
        %2125 = vmatpush.msra.mxu0 0.0
        %2126 = vmatpush.msra.mxu0 0.0
        %2127 = vmatpush.msra.mxu0 0.0
        %2128 = vmatpush.msra.mxu0 0.0
        %2129 = vmatpush.msra.mxu0 0.0
        %2130 = vmatpush.msra.mxu0 0.0
        %2131 = vmatpush.msra.mxu0 0.0
        %2132 = vmatpush.msra.mxu0 0.0
        %2133 = vmatpush.msra.mxu0 0.0
        %2134 = vmatpush.msra.mxu0 %v2114
        %2135 = vmatmul.f32.gmra.mxu0 %v2117
        %v2136 = vpop.f32.mrf.mxu0
        %v2137 = vadd.f32 0.0, %v2136
        %2138 = vdwg.mxu0
        %2139 = vrot.lane.b32.xlu0 %v1754, 64
        %v2140 = vpop.permute.xlu0 %2139
        %2141 = vrot.lane.b32.xlu0 %v1698, 64
        %v2142 = vpop.permute.xlu0 %2141
        %v2143 = vsel %vm1755, %v2140, 0
        %v2145 = vsel %vm1755, %v2142, 0
        %2147 = vmatpush.xpose.msra.mxu0 0.0
        %2148 = vmatpush.xpose.msra.mxu0 0.0
        %2149 = vmatpush.xpose.msra.mxu0 0.0
        %2150 = vmatpush.xpose.msra.mxu0 0.0
        %2151 = vmatpush.xpose.msra.mxu0 0.0
        %2152 = vmatpush.xpose.msra.mxu0 0.0
        %2153 = vmatpush.xpose.msra.mxu0 0.0
        %2154 = vmatpush.xpose.msra.mxu0 0.0
        %2155 = vmatpush.xpose.msra.mxu0 0.0
        %2156 = vmatpush.xpose.msra.mxu0 0.0
        %2157 = vmatpush.xpose.msra.mxu0 0.0
        %2158 = vmatpush.xpose.msra.mxu0 0.0
        %2159 = vmatpush.xpose.msra.mxu0 0.0
        %2160 = vmatpush.xpose.msra.mxu0 0.0
        %2161 = vmatpush.xpose.msra.mxu0 0.0
        %2162 = vmatpush.xpose.msra.mxu0 %v2145
        %2163 = vmatmul.f32.gmra.mxu0 %v2143
        %v2164 = vpop.f32.mrf.mxu0
        %v2165 = vadd.f32 0.0, %v2164
        %2166 = vdwg.mxu0
        %v2167 = vsel %vm1782, %v2165, -inf
        %2168 = vmax.xlane.f32.xlu0 %v2167
        %v2169 = vpop.xlane.xlu0 %2168
        %v2170 = vsub.f32 %v2165, %v2169
        %v2171 = vmul.f32 %v2170, 1.442695
        %v2172 = vpow.pop %v2171
        %v2173 = vsel %vm1782, %v2172, 0.0
        %2174 = vadd.xlane.f32.xlu0 %v2173
        %v2175 = vpop.xlane.xlu0 %2174
        %v2176 = vrcp.pop %v2175
        %v2177 = vmul.f32 %v2172, %v2176
        %2178 = vrot.lane.b32.xlu0 %v1750, 64
        %v2179 = vpop.permute.xlu0 %2178
        %v2182 = vsel %vm1782, %v2177, 0
        %2184 = vmatpush.msra.mxu0 0.0
        %2185 = vmatpush.msra.mxu0 0.0
        %2186 = vmatpush.msra.mxu0 0.0
        %2187 = vmatpush.msra.mxu0 0.0
        %2188 = vmatpush.msra.mxu0 0.0
        %2189 = vmatpush.msra.mxu0 0.0
        %2190 = vmatpush.msra.mxu0 0.0
        %2191 = vmatpush.msra.mxu0 0.0
        %2192 = vmatpush.msra.mxu0 0.0
        %2193 = vmatpush.msra.mxu0 0.0
        %2194 = vmatpush.msra.mxu0 0.0
        %2195 = vmatpush.msra.mxu0 0.0
        %2196 = vmatpush.msra.mxu0 0.0
        %2197 = vmatpush.msra.mxu0 0.0
        %2198 = vmatpush.msra.mxu0 0.0
        %2199 = vmatpush.msra.mxu0 %v2179
        %2200 = vmatmul.f32.gmra.mxu0 %v2182
        %v2201 = vpop.f32.mrf.mxu0
        %v2202 = vadd.f32 0.0, %v2201
        %2203 = vdwg.mxu0
        %2204 = vrot.lane.b32.xlu0 %v1754, 32
        %v2205 = vpop.permute.xlu0 %2204
        %2206 = vrot.lane.b32.xlu0 %v1698, 32
        %v2207 = vpop.permute.xlu0 %2206
        %v2208 = vsel %vm1755, %v2205, 0
        %v2210 = vsel %vm1755, %v2207, 0
        %2212 = vmatpush.xpose.msra.mxu0 0.0
        %2213 = vmatpush.xpose.msra.mxu0 0.0
        %2214 = vmatpush.xpose.msra.mxu0 0.0
        %2215 = vmatpush.xpose.msra.mxu0 0.0
        %2216 = vmatpush.xpose.msra.mxu0 0.0
        %2217 = vmatpush.xpose.msra.mxu0 0.0
        %2218 = vmatpush.xpose.msra.mxu0 0.0
        %2219 = vmatpush.xpose.msra.mxu0 0.0
        %2220 = vmatpush.xpose.msra.mxu0 0.0
        %2221 = vmatpush.xpose.msra.mxu0 0.0
        %2222 = vmatpush.xpose.msra.mxu0 0.0
        %2223 = vmatpush.xpose.msra.mxu0 0.0
        %2224 = vmatpush.xpose.msra.mxu0 0.0
        %2225 = vmatpush.xpose.msra.mxu0 0.0
        %2226 = vmatpush.xpose.msra.mxu0 0.0
        %2227 = vmatpush.xpose.msra.mxu0 %v2210
        %2228 = vmatmul.f32.gmra.mxu0 %v2208
        %v2229 = vpop.f32.mrf.mxu0
        %v2230 = vadd.f32 0.0, %v2229
        %2231 = vdwg.mxu0
        %v2232 = vsel %vm1782, %v2230, -inf
        %2233 = vmax.xlane.f32.xlu0 %v2232
        %v2234 = vpop.xlane.xlu0 %2233
        %v2235 = vsub.f32 %v2230, %v2234
        %v2236 = vmul.f32 %v2235, 1.442695
        %v2237 = vpow.pop %v2236
        %v2238 = vsel %vm1782, %v2237, 0.0
        %2239 = vadd.xlane.f32.xlu0 %v2238
        %v2240 = vpop.xlane.xlu0 %2239
        %v2241 = vrcp.pop %v2240
        %v2242 = vmul.f32 %v2237, %v2241
        %2243 = vrot.lane.b32.xlu0 %v1750, 32
        %v2244 = vpop.permute.xlu0 %2243
        %v2247 = vsel %vm1782, %v2242, 0
        %2249 = vmatpush.msra.mxu0 0.0
        %2250 = vmatpush.msra.mxu0 0.0
        %2251 = vmatpush.msra.mxu0 0.0
        %2252 = vmatpush.msra.mxu0 0.0
        %2253 = vmatpush.msra.mxu0 0.0
        %2254 = vmatpush.msra.mxu0 0.0
        %2255 = vmatpush.msra.mxu0 0.0
        %2256 = vmatpush.msra.mxu0 0.0
        %2257 = vmatpush.msra.mxu0 0.0
        %2258 = vmatpush.msra.mxu0 0.0
        %2259 = vmatpush.msra.mxu0 0.0
        %2260 = vmatpush.msra.mxu0 0.0
        %2261 = vmatpush.msra.mxu0 0.0
        %2262 = vmatpush.msra.mxu0 0.0
        %2263 = vmatpush.msra.mxu0 0.0
        %2264 = vmatpush.msra.mxu0 %v2244
        %2265 = vmatmul.f32.gmra.mxu0 %v2247
        %v2266 = vpop.f32.mrf.mxu0
        %v2267 = vadd.f32 0.0, %v2266
        %2268 = vdwg.mxu0
        %2270 = vrot.lane.b32.xlu0 %v1881, 32
        %v2271 = vpop.permute.xlu0 %2270
        %2274 = vrot.lane.b32.xlu0 %v1946, 64
        %v2275 = vpop.permute.xlu0 %2274
        %2278 = vrot.lane.b32.xlu0 %v2011, 96
        %v2279 = vpop.permute.xlu0 %2278
        %2282 = vrot.lane.b32.xlu0 %v2137, 32
        %v2283 = vpop.permute.xlu0 %2282
        %2286 = vrot.lane.b32.xlu0 %v2202, 64
        %v2287 = vpop.permute.xlu0 %2286
        %2290 = vrot.lane.b32.xlu0 %v2267, 96
        %v2291 = vpop.permute.xlu0 %2290
        %v2293 = vsel %vm1755, %v1815, %v2271
        %vm2294 = vcmask 523264
        %v2295 = vsel %vm2294, %v2293, %v2275
        %vm2296 = vcmask 785408
        %v2297 = vsel %vm2296, %v2295, %v2279
        %v2298 = vsel %vm1755, %v2071, %v2283
        %v2299 = vsel %vm2294, %v2298, %v2287
        %v2300 = vsel %vm2296, %v2299, %v2291
        %v2301 = vpack.c.bf16 %v2297, %v2297
        %v2302 = vpack.c.bf16 %v2300, %v2300
        %v2303 = vld [vmem:[%s777] sm:$0xff]
        %v2304 = vld [vmem:[%s777 + $0x8] sm:$0xff]
        %v2305 = vld [vmem:[%s777 + $0x10] sm:$0xff]
        %v2306 = vld [vmem:[%s777 + $0x18] sm:$0xff]
        %v2307 = vld [vmem:[%s777 + $0x20] sm:$0xff]
        %v2308 = vld [vmem:[%s777 + $0x28] sm:$0xff]
        %v2309 = vld [vmem:[%s777 + $0x30] sm:$0xff]
        %v2310 = vld [vmem:[%s777 + $0x38] sm:$0xff]
        %v2311 = vld [vmem:[%s777 + $0x40] sm:$0xff]
        %v2312 = vld [vmem:[%s777 + $0x48] sm:$0xff]
        %v2313 = vld [vmem:[%s777 + $0x50] sm:$0xff]
        %v2314 = vld [vmem:[%s777 + $0x58] sm:$0xff]
        %v2315 = vld [vmem:[%s777 + $0x60] sm:$0xff]
        %v2316 = vld [vmem:[%s777 + $0x68] sm:$0xff]
        %v2317 = vld [vmem:[%s777 + $0x70] sm:$0xff]
        %v2318 = vld [vmem:[%s777 + $0x78] sm:$0xff]
        %v2319 = vld [vmem:[%s777 + $0x80] sm:$0xff]
        %v2320 = vld [vmem:[%s777 + $0x88] sm:$0xff]
        %v2321 = vld [vmem:[%s777 + $0x90] sm:$0xff]
        %v2322 = vld [vmem:[%s777 + $0x98] sm:$0xff]
        %v2323 = vld [vmem:[%s777 + $0xa0] sm:$0xff]
        %v2324 = vld [vmem:[%s777 + $0xa8] sm:$0xff]
        %v2325 = vld [vmem:[%s777 + $0xb0] sm:$0xff]
        %v2326 = vld [vmem:[%s777 + $0xb8] sm:$0xff]
        %v2327 = vld [vmem:[%s777 + $0xc0] sm:$0xff]
        %v2328 = vld [vmem:[%s777 + $0xc8] sm:$0xff]
        %v2329 = vld [vmem:[%s777 + $0xd0] sm:$0xff]
        %v2330 = vld [vmem:[%s777 + $0xd8] sm:$0xff]
        %v2331 = vld [vmem:[%s777 + $0xe0] sm:$0xff]
        %v2332 = vld [vmem:[%s777 + $0xe8] sm:$0xff]
        %v2333 = vld [vmem:[%s777 + $0xf0] sm:$0xff]
        %v2334 = vld [vmem:[%s777 + $0xf8] sm:$0xff]
        %v2335 = vld [vmem:[%s787] sm:$0x3]
        %v2337 = vperm.slane %v2335, 0
        %v2338 = vperm.slane %v2335, 1
        %v2373 = vunpack.c.l.b16 %v2303
        %v2374 = vunpack.c.h.b16 %v2303
        %v2375 = vunpack.c.l.b16 %v2304
        %v2376 = vunpack.c.h.b16 %v2304
        %v2377 = vunpack.c.l.b16 %v2305
        %v2378 = vunpack.c.h.b16 %v2305
        %v2379 = vunpack.c.l.b16 %v2306
        %v2380 = vunpack.c.h.b16 %v2306
        %v2381 = vunpack.c.l.b16 %v2307
        %v2382 = vunpack.c.h.b16 %v2307
        %v2383 = vunpack.c.l.b16 %v2308
        %v2384 = vunpack.c.h.b16 %v2308
        %v2385 = vunpack.c.l.b16 %v2309
        %v2386 = vunpack.c.h.b16 %v2309
        %v2387 = vunpack.c.l.b16 %v2310
        %v2388 = vunpack.c.h.b16 %v2310
        %v2389 = vunpack.c.l.b16 %v2311
        %v2390 = vunpack.c.h.b16 %v2311
        %v2391 = vunpack.c.l.b16 %v2312
        %v2392 = vunpack.c.h.b16 %v2312
        %v2393 = vunpack.c.l.b16 %v2313
        %v2394 = vunpack.c.h.b16 %v2313
        %v2395 = vunpack.c.l.b16 %v2314
        %v2396 = vunpack.c.h.b16 %v2314
        %v2397 = vunpack.c.l.b16 %v2315
        %v2398 = vunpack.c.h.b16 %v2315
        %v2399 = vunpack.c.l.b16 %v2316
        %v2400 = vunpack.c.h.b16 %v2316
        %v2401 = vunpack.c.l.b16 %v2317
        %v2402 = vunpack.c.h.b16 %v2317
        %v2403 = vunpack.c.l.b16 %v2318
        %v2404 = vunpack.c.h.b16 %v2318
        %v2405 = vunpack.c.l.b16 %v2319
        %v2406 = vunpack.c.h.b16 %v2319
        %v2407 = vunpack.c.l.b16 %v2320
        %v2408 = vunpack.c.h.b16 %v2320
        %v2409 = vunpack.c.l.b16 %v2321
        %v2410 = vunpack.c.h.b16 %v2321
        %v2411 = vunpack.c.l.b16 %v2322
        %v2412 = vunpack.c.h.b16 %v2322
        %v2413 = vunpack.c.l.b16 %v2323
        %v2414 = vunpack.c.h.b16 %v2323
        %v2415 = vunpack.c.l.b16 %v2324
        %v2416 = vunpack.c.h.b16 %v2324
        %v2417 = vunpack.c.l.b16 %v2325
        %v2418 = vunpack.c.h.b16 %v2325
        %v2419 = vunpack.c.l.b16 %v2326
        %v2420 = vunpack.c.h.b16 %v2326
        %v2421 = vunpack.c.l.b16 %v2327
        %v2422 = vunpack.c.h.b16 %v2327
        %v2423 = vunpack.c.l.b16 %v2328
        %v2424 = vunpack.c.h.b16 %v2328
        %v2425 = vunpack.c.l.b16 %v2329
        %v2426 = vunpack.c.h.b16 %v2329
        %v2427 = vunpack.c.l.b16 %v2330
        %v2428 = vunpack.c.h.b16 %v2330
        %v2429 = vunpack.c.l.b16 %v2331
        %v2430 = vunpack.c.h.b16 %v2331
        %v2431 = vunpack.c.l.b16 %v2332
        %v2432 = vunpack.c.h.b16 %v2332
        %v2433 = vunpack.c.l.b16 %v2333
        %v2434 = vunpack.c.h.b16 %v2333
        %v2435 = vunpack.c.l.b16 %v2334
        %v2436 = vunpack.c.h.b16 %v2334
        %v2437 = vpack.c.b16 %v2375, %v2373
        %v2438 = vpack.c.b16 %v2376, %v2374
        %v2439 = vpack.c.b16 %v2379, %v2377
        %v2440 = vpack.c.b16 %v2380, %v2378
        %v2441 = vpack.c.b16 %v2383, %v2381
        %v2442 = vpack.c.b16 %v2384, %v2382
        %v2443 = vpack.c.b16 %v2387, %v2385
        %v2444 = vpack.c.b16 %v2388, %v2386
        %v2445 = vpack.c.b16 %v2391, %v2389
        %v2446 = vpack.c.b16 %v2392, %v2390
        %v2447 = vpack.c.b16 %v2395, %v2393
        %v2448 = vpack.c.b16 %v2396, %v2394
        %v2449 = vpack.c.b16 %v2399, %v2397
        %v2450 = vpack.c.b16 %v2400, %v2398
        %v2451 = vpack.c.b16 %v2403, %v2401
        %v2452 = vpack.c.b16 %v2404, %v2402
        %v2453 = vpack.c.b16 %v2407, %v2405
        %v2454 = vpack.c.b16 %v2408, %v2406
        %v2455 = vpack.c.b16 %v2411, %v2409
        %v2456 = vpack.c.b16 %v2412, %v2410
        %v2457 = vpack.c.b16 %v2415, %v2413
        %v2458 = vpack.c.b16 %v2416, %v2414
        %v2459 = vpack.c.b16 %v2419, %v2417
        %v2460 = vpack.c.b16 %v2420, %v2418
        %v2461 = vpack.c.b16 %v2423, %v2421
        %v2462 = vpack.c.b16 %v2424, %v2422
        %v2463 = vpack.c.b16 %v2427, %v2425
        %v2464 = vpack.c.b16 %v2428, %v2426
        %v2465 = vpack.c.b16 %v2431, %v2429
        %v2466 = vpack.c.b16 %v2432, %v2430
        %v2467 = vpack.c.b16 %v2435, %v2433
        %v2468 = vpack.c.b16 %v2436, %v2434
        %2501 = vmatpush.bf16.msra.mxu0 %v2451
        %2502 = vmatpush.bf16.msra.mxu0 %v2449
        %2503 = vmatpush.bf16.msra.mxu0 %v2447
        %2504 = vmatpush.bf16.msra.mxu0 %v2445
        %2505 = vmatpush.bf16.msra.mxu0 %v2443
        %2506 = vmatpush.bf16.msra.mxu0 %v2441
        %2507 = vmatpush.bf16.msra.mxu0 %v2439
        %2508 = vmatpush.bf16.msra.mxu0 %v2437
        %2509 = vmatmul.bf16.gmra.mxu0 %v2301
        %v2510 = vpop.f32.mrf.mxu0
        %v2511 = vadd.f32 %v2337, %v2510
        %v2512 = vpop.f32.mrf.mxu0
        %2513 = vdwg.mxu0
        %2514 = vmatpush.bf16.msra.mxu0 %v2467
        %2515 = vmatpush.bf16.msra.mxu0 %v2465
        %2516 = vmatpush.bf16.msra.mxu0 %v2463
        %2517 = vmatpush.bf16.msra.mxu0 %v2461
        %2518 = vmatpush.bf16.msra.mxu0 %v2459
        %2519 = vmatpush.bf16.msra.mxu0 %v2457
        %2520 = vmatpush.bf16.msra.mxu0 %v2455
        %2521 = vmatpush.bf16.msra.mxu0 %v2453
        %2522 = vmatmul.bf16.gmra.mxu0 %v2302
        %v2523 = vpop.f32.mrf.mxu0
        %v2524 = vadd.f32 %v2511, %v2523
        %v2525 = vpop.f32.mrf.mxu0
        %2526 = vdwg.mxu0
        %2527 = vmatpush.bf16.msra.mxu0 %v2452
        %2528 = vmatpush.bf16.msra.mxu0 %v2450
        %2529 = vmatpush.bf16.msra.mxu0 %v2448
        %2530 = vmatpush.bf16.msra.mxu0 %v2446
        %2531 = vmatpush.bf16.msra.mxu0 %v2444
        %2532 = vmatpush.bf16.msra.mxu0 %v2442
        %2533 = vmatpush.bf16.msra.mxu0 %v2440
        %2534 = vmatpush.bf16.msra.mxu0 %v2438
        %2535 = vmatmul.bf16.gmra.mxu0 %v2301
        %v2536 = vpop.f32.mrf.mxu0
        %v2537 = vadd.f32 %v2338, %v2536
        %v2538 = vpop.f32.mrf.mxu0
        %2539 = vdwg.mxu0
        %2540 = vmatpush.bf16.msra.mxu0 %v2468
        %2541 = vmatpush.bf16.msra.mxu0 %v2466
        %2542 = vmatpush.bf16.msra.mxu0 %v2464
        %2543 = vmatpush.bf16.msra.mxu0 %v2462
        %2544 = vmatpush.bf16.msra.mxu0 %v2460
        %2545 = vmatpush.bf16.msra.mxu0 %v2458
        %2546 = vmatpush.bf16.msra.mxu0 %v2456
        %2547 = vmatpush.bf16.msra.mxu0 %v2454
        %2548 = vmatmul.bf16.gmra.mxu0 %v2302
        %v2549 = vpop.f32.mrf.mxu0
        %v2550 = vadd.f32 %v2537, %v2549
        %v2551 = vpop.f32.mrf.mxu0
        %2552 = vdwg.mxu0
        %v2553 = vadd.f32 %v1003, %v2524
        %v2554 = vadd.f32 %v1004, %v2550
        %v2555 = vld [vmem:[%s797] sm:$0x3]
        %v2556 = vld [vmem:[%s807] sm:$0x3]
        %v2557 = vadd.f32 %v2553, %v2554
        %2558 = vadd.xlane.f32.xlu0 %v2557
        %v2559 = vpop.xlane.xlu0 %2558
        %v2560 = vrcp.pop 256.0
        %v2561 = vmul.f32 256.0, %v2560
        %v2562 = vsub.f32 1.0, %v2561
        %v2563 = vmul.f32 %v2560, %v2562
        %v2564 = vadd.f32 %v2560, %v2563
        %vm2565 = vweird.f32 %v2560
        %v2566 = vsel %vm2565, %v2560, %v2564
        %v2567 = vmul.f32 %v2559, %v2566
        %v2568 = vsub.f32 %v2553, %v2567
        %v2569 = vsub.f32 %v2554, %v2567
        %v2570 = vmul.f32 %v2568, %v2568
        %v2571 = vmul.f32 %v2569, %v2569
        %v2572 = vadd.f32 %v2570, %v2571
        %2573 = vadd.xlane.f32.xlu0 %v2572
        %v2574 = vpop.xlane.xlu0 %2573
        %v2575 = vmul.f32 %v2574, %v2566
        %v2576 = vadd.f32 %v2575, 1e-05
        %v2577 = vrsqrt.pop %v2576
        %v2578 = vmul.f32 %v2577, %v2576
        %v2579 = vmul.f32 %v2578, %v2577
        %v2580 = vmul.f32 0.5, %v2579
        %v2581 = vsub.f32 1.5, %v2580
        %v2582 = vmul.f32 %v2577, %v2581
        %vm2583 = vweird.f32 %v2576
        %vm2584 = vweird.f32 %v2577
        %vm2585 = vmor %vm2583, %vm2584
        %v2586 = vsel %vm2585, %v2577, %v2582
        %v2587 = vmul.f32 %v2568, %v2586
        %v2588 = vmul.f32 %v2569, %v2586
        %v2590 = vperm.slane %v2555, 0
        %v2591 = vperm.slane %v2555, 1
        %v2594 = vmul.f32 %v2587, %v2590
        %v2595 = vmul.f32 %v2588, %v2591
        %v2597 = vperm.slane %v2556, 0
        %v2598 = vperm.slane %v2556, 1
        %v2601 = vadd.f32 %v2594, %v2597
        %v2602 = vadd.f32 %v2595, %v2598
        %v2603 = vpack.c.bf16 %v2601, %v2601
        %v2604 = vpack.c.bf16 %v2602, %v2602
        %v2605 = vld [vmem:[%s817] sm:$0xff]
        %v2606 = vld [vmem:[%s817 + $0x8] sm:$0xff]
        %v2607 = vld [vmem:[%s817 + $0x10] sm:$0xff]
        %v2608 = vld [vmem:[%s817 + $0x18] sm:$0xff]
        %v2609 = vld [vmem:[%s817 + $0x20] sm:$0xff]
        %v2610 = vld [vmem:[%s817 + $0x28] sm:$0xff]
        %v2611 = vld [vmem:[%s817 + $0x30] sm:$0xff]
        %v2612 = vld [vmem:[%s817 + $0x38] sm:$0xff]
        %v2613 = vld [vmem:[%s817 + $0x40] sm:$0xff]
        %v2614 = vld [vmem:[%s817 + $0x48] sm:$0xff]
        %v2615 = vld [vmem:[%s817 + $0x50] sm:$0xff]
        %v2616 = vld [vmem:[%s817 + $0x58] sm:$0xff]
        %v2617 = vld [vmem:[%s817 + $0x60] sm:$0xff]
        %v2618 = vld [vmem:[%s817 + $0x68] sm:$0xff]
        %v2619 = vld [vmem:[%s817 + $0x70] sm:$0xff]
        %v2620 = vld [vmem:[%s817 + $0x78] sm:$0xff]
        %v2621 = vld [vmem:[%s817 + $0x80] sm:$0xff]
        %v2622 = vld [vmem:[%s817 + $0x88] sm:$0xff]
        %v2623 = vld [vmem:[%s817 + $0x90] sm:$0xff]
        %v2624 = vld [vmem:[%s817 + $0x98] sm:$0xff]
        %v2625 = vld [vmem:[%s817 + $0xa0] sm:$0xff]
        %v2626 = vld [vmem:[%s817 + $0xa8] sm:$0xff]
        %v2627 = vld [vmem:[%s817 + $0xb0] sm:$0xff]
        %v2628 = vld [vmem:[%s817 + $0xb8] sm:$0xff]
        %v2629 = vld [vmem:[%s817 + $0xc0] sm:$0xff]
        %v2630 = vld [vmem:[%s817 + $0xc8] sm:$0xff]
        %v2631 = vld [vmem:[%s817 + $0xd0] sm:$0xff]
        %v2632 = vld [vmem:[%s817 + $0xd8] sm:$0xff]
        %v2633 = vld [vmem:[%s817 + $0xe0] sm:$0xff]
        %v2634 = vld [vmem:[%s817 + $0xe8] sm:$0xff]
        %v2635 = vld [vmem:[%s817 + $0xf0] sm:$0xff]
        %v2636 = vld [vmem:[%s817 + $0xf8] sm:$0xff]
        %v2637 = vld [vmem:[%s817 + $0x100] sm:$0xff]
        %v2638 = vld [vmem:[%s817 + $0x108] sm:$0xff]
        %v2639 = vld [vmem:[%s817 + $0x110] sm:$0xff]
        %v2640 = vld [vmem:[%s817 + $0x118] sm:$0xff]
        %v2641 = vld [vmem:[%s817 + $0x120] sm:$0xff]
        %v2642 = vld [vmem:[%s817 + $0x128] sm:$0xff]
        %v2643 = vld [vmem:[%s817 + $0x130] sm:$0xff]
        %v2644 = vld [vmem:[%s817 + $0x138] sm:$0xff]
        %v2645 = vld [vmem:[%s817 + $0x140] sm:$0xff]
        %v2646 = vld [vmem:[%s817 + $0x148] sm:$0xff]
        %v2647 = vld [vmem:[%s817 + $0x150] sm:$0xff]
        %v2648 = vld [vmem:[%s817 + $0x158] sm:$0xff]
        %v2649 = vld [vmem:[%s817 + $0x160] sm:$0xff]
        %v2650 = vld [vmem:[%s817 + $0x168] sm:$0xff]
        %v2651 = vld [vmem:[%s817 + $0x170] sm:$0xff]
        %v2652 = vld [vmem:[%s817 + $0x178] sm:$0xff]
        %v2653 = vld [vmem:[%s817 + $0x180] sm:$0xff]
        %v2654 = vld [vmem:[%s817 + $0x188] sm:$0xff]
        %v2655 = vld [vmem:[%s817 + $0x190] sm:$0xff]
        %v2656 = vld [vmem:[%s817 + $0x198] sm:$0xff]
        %v2657 = vld [vmem:[%s817 + $0x1a0] sm:$0xff]
        %v2658 = vld [vmem:[%s817 + $0x1a8] sm:$0xff]
        %v2659 = vld [vmem:[%s817 + $0x1b0] sm:$0xff]
        %v2660 = vld [vmem:[%s817 + $0x1b8] sm:$0xff]
        %v2661 = vld [vmem:[%s817 + $0x1c0] sm:$0xff]
        %v2662 = vld [vmem:[%s817 + $0x1c8] sm:$0xff]
        %v2663 = vld [vmem:[%s817 + $0x1d0] sm:$0xff]
        %v2664 = vld [vmem:[%s817 + $0x1d8] sm:$0xff]
        %v2665 = vld [vmem:[%s817 + $0x1e0] sm:$0xff]
        %v2666 = vld [vmem:[%s817 + $0x1e8] sm:$0xff]
        %v2667 = vld [vmem:[%s817 + $0x1f0] sm:$0xff]
        %v2668 = vld [vmem:[%s817 + $0x1f8] sm:$0xff]
        %v2669 = vld [vmem:[%s817 + $0x200] sm:$0xff]
        %v2670 = vld [vmem:[%s817 + $0x208] sm:$0xff]
        %v2671 = vld [vmem:[%s817 + $0x210] sm:$0xff]
        %v2672 = vld [vmem:[%s817 + $0x218] sm:$0xff]
        %v2673 = vld [vmem:[%s817 + $0x220] sm:$0xff]
        %v2674 = vld [vmem:[%s817 + $0x228] sm:$0xff]
        %v2675 = vld [vmem:[%s817 + $0x230] sm:$0xff]
        %v2676 = vld [vmem:[%s817 + $0x238] sm:$0xff]
        %v2677 = vld [vmem:[%s817 + $0x240] sm:$0xff]
        %v2678 = vld [vmem:[%s817 + $0x248] sm:$0xff]
        %v2679 = vld [vmem:[%s817 + $0x250] sm:$0xff]
        %v2680 = vld [vmem:[%s817 + $0x258] sm:$0xff]
        %v2681 = vld [vmem:[%s817 + $0x260] sm:$0xff]
        %v2682 = vld [vmem:[%s817 + $0x268] sm:$0xff]
        %v2683 = vld [vmem:[%s817 + $0x270] sm:$0xff]
        %v2684 = vld [vmem:[%s817 + $0x278] sm:$0xff]
        %v2685 = vld [vmem:[%s817 + $0x280] sm:$0xff]
        %v2686 = vld [vmem:[%s817 + $0x288] sm:$0xff]
        %v2687 = vld [vmem:[%s817 + $0x290] sm:$0xff]
        %v2688 = vld [vmem:[%s817 + $0x298] sm:$0xff]
        %v2689 = vld [vmem:[%s817 + $0x2a0] sm:$0xff]
        %v2690 = vld [vmem:[%s817 + $0x2a8] sm:$0xff]
        %v2691 = vld [vmem:[%s817 + $0x2b0] sm:$0xff]
        %v2692 = vld [vmem:[%s817 + $0x2b8] sm:$0xff]
        %v2693 = vld [vmem:[%s817 + $0x2c0] sm:$0xff]
        %v2694 = vld [vmem:[%s817 + $0x2c8] sm:$0xff]
        %v2695 = vld [vmem:[%s817 + $0x2d0] sm:$0xff]
        %v2696 = vld [vmem:[%s817 + $0x2d8] sm:$0xff]
        %v2697 = vld [vmem:[%s817 + $0x2e0] sm:$0xff]
        %v2698 = vld [vmem:[%s817 + $0x2e8] sm:$0xff]
        %v2699 = vld [vmem:[%s817 + $0x2f0] sm:$0xff]
        %v2700 = vld [vmem:[%s817 + $0x2f8] sm:$0xff]
        %v2701 = vld [vmem:[%s817 + $0x300] sm:$0xff]
        %v2702 = vld [vmem:[%s817 + $0x308] sm:$0xff]
        %v2703 = vld [vmem:[%s817 + $0x310] sm:$0xff]
        %v2704 = vld [vmem:[%s817 + $0x318] sm:$0xff]
        %v2705 = vld [vmem:[%s817 + $0x320] sm:$0xff]
        %v2706 = vld [vmem:[%s817 + $0x328] sm:$0xff]
        %v2707 = vld [vmem:[%s817 + $0x330] sm:$0xff]
        %v2708 = vld [vmem:[%s817 + $0x338] sm:$0xff]
        %v2709 = vld [vmem:[%s817 + $0x340] sm:$0xff]
        %v2710 = vld [vmem:[%s817 + $0x348] sm:$0xff]
        %v2711 = vld [vmem:[%s817 + $0x350] sm:$0xff]
        %v2712 = vld [vmem:[%s817 + $0x358] sm:$0xff]
        %v2713 = vld [vmem:[%s817 + $0x360] sm:$0xff]
        %v2714 = vld [vmem:[%s817 + $0x368] sm:$0xff]
        %v2715 = vld [vmem:[%s817 + $0x370] sm:$0xff]
        %v2716 = vld [vmem:[%s817 + $0x378] sm:$0xff]
        %v2717 = vld [vmem:[%s817 + $0x380] sm:$0xff]
        %v2718 = vld [vmem:[%s817 + $0x388] sm:$0xff]
        %v2719 = vld [vmem:[%s817 + $0x390] sm:$0xff]
        %v2720 = vld [vmem:[%s817 + $0x398] sm:$0xff]
        %v2721 = vld [vmem:[%s817 + $0x3a0] sm:$0xff]
        %v2722 = vld [vmem:[%s817 + $0x3a8] sm:$0xff]
        %v2723 = vld [vmem:[%s817 + $0x3b0] sm:$0xff]
        %v2724 = vld [vmem:[%s817 + $0x3b8] sm:$0xff]
        %v2725 = vld [vmem:[%s817 + $0x3c0] sm:$0xff]
        %v2726 = vld [vmem:[%s817 + $0x3c8] sm:$0xff]
        %v2727 = vld [vmem:[%s817 + $0x3d0] sm:$0xff]
        %v2728 = vld [vmem:[%s817 + $0x3d8] sm:$0xff]
        %v2729 = vld [vmem:[%s817 + $0x3e0] sm:$0xff]
        %v2730 = vld [vmem:[%s817 + $0x3e8] sm:$0xff]
        %v2731 = vld [vmem:[%s817 + $0x3f0] sm:$0xff]
        %v2732 = vld [vmem:[%s817 + $0x3f8] sm:$0xff]
        %v2733 = vld [vmem:[%s827] sm:$0xff]
        %v2735 = vperm.slane %v2733, 0
        %v2736 = vperm.slane %v2733, 1
        %v2737 = vperm.slane %v2733, 2
        %v2738 = vperm.slane %v2733, 3
        %v2739 = vperm.slane %v2733, 4
        %v2740 = vperm.slane %v2733, 5
        %v2741 = vperm.slane %v2733, 6
        %v2742 = vperm.slane %v2733, 7
        %v2879 = vunpack.c.l.b16 %v2605
        %v2880 = vunpack.c.h.b16 %v2605
        %v2881 = vunpack.c.l.b16 %v2606
        %v2882 = vunpack.c.h.b16 %v2606
        %v2883 = vunpack.c.l.b16 %v2607
        %v2884 = vunpack.c.h.b16 %v2607
        %v2885 = vunpack.c.l.b16 %v2608
        %v2886 = vunpack.c.h.b16 %v2608
        %v2887 = vunpack.c.l.b16 %v2609
        %v2888 = vunpack.c.h.b16 %v2609
        %v2889 = vunpack.c.l.b16 %v2610
        %v2890 = vunpack.c.h.b16 %v2610
        %v2891 = vunpack.c.l.b16 %v2611
        %v2892 = vunpack.c.h.b16 %v2611
        %v2893 = vunpack.c.l.b16 %v2612
        %v2894 = vunpack.c.h.b16 %v2612
        %v2895 = vunpack.c.l.b16 %v2613
        %v2896 = vunpack.c.h.b16 %v2613
        %v2897 = vunpack.c.l.b16 %v2614
        %v2898 = vunpack.c.h.b16 %v2614
        %v2899 = vunpack.c.l.b16 %v2615
        %v2900 = vunpack.c.h.b16 %v2615
        %v2901 = vunpack.c.l.b16 %v2616
        %v2902 = vunpack.c.h.b16 %v2616
        %v2903 = vunpack.c.l.b16 %v2617
        %v2904 = vunpack.c.h.b16 %v2617
        %v2905 = vunpack.c.l.b16 %v2618
        %v2906 = vunpack.c.h.b16 %v2618
        %v2907 = vunpack.c.l.b16 %v2619
        %v2908 = vunpack.c.h.b16 %v2619
        %v2909 = vunpack.c.l.b16 %v2620
        %v2910 = vunpack.c.h.b16 %v2620
        %v2911 = vunpack.c.l.b16 %v2621
        %v2912 = vunpack.c.h.b16 %v2621
        %v2913 = vunpack.c.l.b16 %v2622
        %v2914 = vunpack.c.h.b16 %v2622
        %v2915 = vunpack.c.l.b16 %v2623
        %v2916 = vunpack.c.h.b16 %v2623
        %v2917 = vunpack.c.l.b16 %v2624
        %v2918 = vunpack.c.h.b16 %v2624
        %v2919 = vunpack.c.l.b16 %v2625
        %v2920 = vunpack.c.h.b16 %v2625
        %v2921 = vunpack.c.l.b16 %v2626
        %v2922 = vunpack.c.h.b16 %v2626
        %v2923 = vunpack.c.l.b16 %v2627
        %v2924 = vunpack.c.h.b16 %v2627
        %v2925 = vunpack.c.l.b16 %v2628
        %v2926 = vunpack.c.h.b16 %v2628
        %v2927 = vunpack.c.l.b16 %v2629
        %v2928 = vunpack.c.h.b16 %v2629
        %v2929 = vunpack.c.l.b16 %v2630
        %v2930 = vunpack.c.h.b16 %v2630
        %v2931 = vunpack.c.l.b16 %v2631
        %v2932 = vunpack.c.h.b16 %v2631
        %v2933 = vunpack.c.l.b16 %v2632
        %v2934 = vunpack.c.h.b16 %v2632
        %v2935 = vunpack.c.l.b16 %v2633
        %v2936 = vunpack.c.h.b16 %v2633
        %v2937 = vunpack.c.l.b16 %v2634
        %v2938 = vunpack.c.h.b16 %v2634
        %v2939 = vunpack.c.l.b16 %v2635
        %v2940 = vunpack.c.h.b16 %v2635
        %v2941 = vunpack.c.l.b16 %v2636
        %v2942 = vunpack.c.h.b16 %v2636
        %v2943 = vunpack.c.l.b16 %v2637
        %v2944 = vunpack.c.h.b16 %v2637
        %v2945 = vunpack.c.l.b16 %v2638
        %v2946 = vunpack.c.h.b16 %v2638
        %v2947 = vunpack.c.l.b16 %v2639
        %v2948 = vunpack.c.h.b16 %v2639
        %v2949 = vunpack.c.l.b16 %v2640
        %v2950 = vunpack.c.h.b16 %v2640
        %v2951 = vunpack.c.l.b16 %v2641
        %v2952 = vunpack.c.h.b16 %v2641
        %v2953 = vunpack.c.l.b16 %v2642
        %v2954 = vunpack.c.h.b16 %v2642
        %v2955 = vunpack.c.l.b16 %v2643
        %v2956 = vunpack.c.h.b16 %v2643
        %v2957 = vunpack.c.l.b16 %v2644
        %v2958 = vunpack.c.h.b16 %v2644
        %v2959 = vunpack.c.l.b16 %v2645
        %v2960 = vunpack.c.h.b16 %v2645
        %v2961 = vunpack.c.l.b16 %v2646
        %v2962 = vunpack.c.h.b16 %v2646
        %v2963 = vunpack.c.l.b16 %v2647
        %v2964 = vunpack.c.h.b16 %v2647
        %v2965 = vunpack.c.l.b16 %v2648
        %v2966 = vunpack.c.h.b16 %v2648
        %v2967 = vunpack.c.l.b16 %v2649
        %v2968 = vunpack.c.h.b16 %v2649
        %v2969 = vunpack.c.l.b16 %v2650
        %v2970 = vunpack.c.h.b16 %v2650
        %v2971 = vunpack.c.l.b16 %v2651
        %v2972 = vunpack.c.h.b16 %v2651
        %v2973 = vunpack.c.l.b16 %v2652
        %v2974 = vunpack.c.h.b16 %v2652
        %v2975 = vunpack.c.l.b16 %v2653
        %v2976 = vunpack.c.h.b16 %v2653
        %v2977 = vunpack.c.l.b16 %v2654
        %v2978 = vunpack.c.h.b16 %v2654
        %v2979 = vunpack.c.l.b16 %v2655
        %v2980 = vunpack.c.h.b16 %v2655
        %v2981 = vunpack.c.l.b16 %v2656
        %v2982 = vunpack.c.h.b16 %v2656
        %v2983 = vunpack.c.l.b16 %v2657
        %v2984 = vunpack.c.h.b16 %v2657
        %v2985 = vunpack.c.l.b16 %v2658
        %v2986 = vunpack.c.h.b16 %v2658
        %v2987 = vunpack.c.l.b16 %v2659
        %v2988 = vunpack.c.h.b16 %v2659
        %v2989 = vunpack.c.l.b16 %v2660
        %v2990 = vunpack.c.h.b16 %v2660
        %v2991 = vunpack.c.l.b16 %v2661
        %v2992 = vunpack.c.h.b16 %v2661
        %v2993 = vunpack.c.l.b16 %v2662
        %v2994 = vunpack.c.h.b16 %v2662
        %v2995 = vunpack.c.l.b16 %v2663
        %v2996 = vunpack.c.h.b16 %v2663
        %v2997 = vunpack.c.l.b16 %v2664
        %v2998 = vunpack.c.h.b16 %v2664
        %v2999 = vunpack.c.l.b16 %v2665
        %v3000 = vunpack.c.h.b16 %v2665
        %v3001 = vunpack.c.l.b16 %v2666
        %v3002 = vunpack.c.h.b16 %v2666
        %v3003 = vunpack.c.l.b16 %v2667
        %v3004 = vunpack.c.h.b16 %v2667
        %v3005 = vunpack.c.l.b16 %v2668
        %v3006 = vunpack.c.h.b16 %v2668
        %v3007 = vunpack.c.l.b16 %v2669
        %v3008 = vunpack.c.h.b16 %v2669
        %v3009 = vunpack.c.l.b16 %v2670
        %v3010 = vunpack.c.h.b16 %v2670
        %v3011 = vunpack.c.l.b16 %v2671
        %v3012 = vunpack.c.h.b16 %v2671
        %v3013 = vunpack.c.l.b16 %v2672
        %v3014 = vunpack.c.h.b16 %v2672
        %v3015 = vunpack.c.l.b16 %v2673
        %v3016 = vunpack.c.h.b16 %v2673
        %v3017 = vunpack.c.l.b16 %v2674
        %v3018 = vunpack.c.h.b16 %v2674
        %v3019 = vunpack.c.l.b16 %v2675
        %v3020 = vunpack.c.h.b16 %v2675
        %v3021 = vunpack.c.l.b16 %v2676
        %v3022 = vunpack.c.h.b16 %v2676
        %v3023 = vunpack.c.l.b16 %v2677
        %v3024 = vunpack.c.h.b16 %v2677
        %v3025 = vunpack.c.l.b16 %v2678
        %v3026 = vunpack.c.h.b16 %v2678
        %v3027 = vunpack.c.l.b16 %v2679
        %v3028 = vunpack.c.h.b16 %v2679
        %v3029 = vunpack.c.l.b16 %v2680
        %v3030 = vunpack.c.h.b16 %v2680
        %v3031 = vunpack.c.l.b16 %v2681
        %v3032 = vunpack.c.h.b16 %v2681
        %v3033 = vunpack.c.l.b16 %v2682
        %v3034 = vunpack.c.h.b16 %v2682
        %v3035 = vunpack.c.l.b16 %v2683
        %v3036 = vunpack.c.h.b16 %v2683
        %v3037 = vunpack.c.l.b16 %v2684
        %v3038 = vunpack.c.h.b16 %v2684
        %v3039 = vunpack.c.l.b16 %v2685
        %v3040 = vunpack.c.h.b16 %v2685
        %v3041 = vunpack.c.l.b16 %v2686
        %v3042 = vunpack.c.h.b16 %v2686
        %v3043 = vunpack.c.l.b16 %v2687
        %v3044 = vunpack.c.h.b16 %v2687
        %v3045 = vunpack.c.l.b16 %v2688
        %v3046 = vunpack.c.h.b16 %v2688
        %v3047 = vunpack.c.l.b16 %v2689
        %v3048 = vunpack.c.h.b16 %v2689
        %v3049 = vunpack.c.l.b16 %v2690
        %v3050 = vunpack.c.h.b16 %v2690
        %v3051 = vunpack.c.l.b16 %v2691
        %v3052 = vunpack.c.h.b16 %v2691
        %v3053 = vunpack.c.l.b16 %v2692
        %v3054 = vunpack.c.h.b16 %v2692
        %v3055 = vunpack.c.l.b16 %v2693
        %v3056 = vunpack.c.h.b16 %v2693
        %v3057 = vunpack.c.l.b16 %v2694
        %v3058 = vunpack.c.h.b16 %v2694
        %v3059 = vunpack.c.l.b16 %v2695
        %v3060 = vunpack.c.h.b16 %v2695
        %v3061 = vunpack.c.l.b16 %v2696
        %v3062 = vunpack.c.h.b16 %v2696
        %v3063 = vunpack.c.l.b16 %v2697
        %v3064 = vunpack.c.h.b16 %v2697
        %v3065 = vunpack.c.l.b16 %v2698
        %v3066 = vunpack.c.h.b16 %v2698
        %v3067 = vunpack.c.l.b16 %v2699
        %v3068 = vunpack.c.h.b16 %v2699
        %v3069 = vunpack.c.l.b16 %v2700
        %v3070 = vunpack.c.h.b16 %v2700
        %v3071 = vunpack.c.l.b16 %v2701
        %v3072 = vunpack.c.h.b16 %v2701
        %v3073 = vunpack.c.l.b16 %v2702
        %v3074 = vunpack.c.h.b16 %v2702
        %v3075 = vunpack.c.l.b16 %v2703
        %v3076 = vunpack.c.h.b16 %v2703
        %v3077 = vunpack.c.l.b16 %v2704
        %v3078 = vunpack.c.h.b16 %v2704
        %v3079 = vunpack.c.l.b16 %v2705
        %v3080 = vunpack.c.h.b16 %v2705
        %v3081 = vunpack.c.l.b16 %v2706
        %v3082 = vunpack.c.h.b16 %v2706
        %v3083 = vunpack.c.l.b16 %v2707
        %v3084 = vunpack.c.h.b16 %v2707
        %v3085 = vunpack.c.l.b16 %v2708
        %v3086 = vunpack.c.h.b16 %v2708
        %v3087 = vunpack.c.l.b16 %v2709
        %v3088 = vunpack.c.h.b16 %v2709
        %v3089 = vunpack.c.l.b16 %v2710
        %v3090 = vunpack.c.h.b16 %v2710
        %v3091 = vunpack.c.l.b16 %v2711
        %v3092 = vunpack.c.h.b16 %v2711
        %v3093 = vunpack.c.l.b16 %v2712
        %v3094 = vunpack.c.h.b16 %v2712
        %v3095 = vunpack.c.l.b16 %v2713
        %v3096 = vunpack.c.h.b16 %v2713
        %v3097 = vunpack.c.l.b16 %v2714
        %v3098 = vunpack.c.h.b16 %v2714
        %v3099 = vunpack.c.l.b16 %v2715
        %v3100 = vunpack.c.h.b16 %v2715
        %v3101 = vunpack.c.l.b16 %v2716
        %v3102 = vunpack.c.h.b16 %v2716
        %v3103 = vunpack.c.l.b16 %v2717
        %v3104 = vunpack.c.h.b16 %v2717
        %v3105 = vunpack.c.l.b16 %v2718
        %v3106 = vunpack.c.h.b16 %v2718
        %v3107 = vunpack.c.l.b16 %v2719
        %v3108 = vunpack.c.h.b16 %v2719
        %v3109 = vunpack.c.l.b16 %v2720
        %v3110 = vunpack.c.h.b16 %v2720
        %v3111 = vunpack.c.l.b16 %v2721
        %v3112 = vunpack.c.h.b16 %v2721
        %v3113 = vunpack.c.l.b16 %v2722
        %v3114 = vunpack.c.h.b16 %v2722
        %v3115 = vunpack.c.l.b16 %v2723
        %v3116 = vunpack.c.h.b16 %v2723
        %v3117 = vunpack.c.l.b16 %v2724
        %v3118 = vunpack.c.h.b16 %v2724
        %v3119 = vunpack.c.l.b16 %v2725
        %v3120 = vunpack.c.h.b16 %v2725
        %v3121 = vunpack.c.l.b16 %v2726
        %v3122 = vunpack.c.h.b16 %v2726
        %v3123 = vunpack.c.l.b16 %v2727
        %v3124 = vunpack.c.h.b16 %v2727
        %v3125 = vunpack.c.l.b16 %v2728
        %v3126 = vunpack.c.h.b16 %v2728
        %v3127 = vunpack.c.l.b16 %v2729
        %v3128 = vunpack.c.h.b16 %v2729
        %v3129 = vunpack.c.l.b16 %v2730
        %v3130 = vunpack.c.h.b16 %v2730
        %v3131 = vunpack.c.l.b16 %v2731
        %v3132 = vunpack.c.h.b16 %v2731
        %v3133 = vunpack.c.l.b16 %v2732
        %v3134 = vunpack.c.h.b16 %v2732
        %v3135 = vpack.c.b16 %v2887, %v2879
        %v3136 = vpack.c.b16 %v2888, %v2880
        %v3137 = vpack.c.b16 %v2889, %v2881
        %v3138 = vpack.c.b16 %v2890, %v2882
        %v3139 = vpack.c.b16 %v2891, %v2883
        %v3140 = vpack.c.b16 %v2892, %v2884
        %v3141 = vpack.c.b16 %v2893, %v2885
        %v3142 = vpack.c.b16 %v2894, %v2886
        %v3143 = vpack.c.b16 %v2903, %v2895
        %v3144 = vpack.c.b16 %v2904, %v2896
        %v3145 = vpack.c.b16 %v2905, %v2897
        %v3146 = vpack.c.b16 %v2906, %v2898
        %v3147 = vpack.c.b16 %v2907, %v2899
        %v3148 = vpack.c.b16 %v2908, %v2900
        %v3149 = vpack.c.b16 %v2909, %v2901
        %v3150 = vpack.c.b16 %v2910, %v2902
        %v3151 = vpack.c.b16 %v2919, %v2911
        %v3152 = vpack.c.b16 %v2920, %v2912
        %v3153 = vpack.c.b16 %v2921, %v2913
        %v3154 = vpack.c.b16 %v2922, %v2914
        %v3155 = vpack.c.b16 %v2923, %v2915
        %v3156 = vpack.c.b16 %v2924, %v2916
        %v3157 = vpack.c.b16 %v2925, %v2917
        %v3158 = vpack.c.b16 %v2926, %v2918
        %v3159 = vpack.c.b16 %v2935, %v2927
        %v3160 = vpack.c.b16 %v2936, %v2928
        %v3161 = vpack.c.b16 %v2937, %v2929
        %v3162 = vpack.c.b16 %v2938, %v2930
        %v3163 = vpack.c.b16 %v2939, %v2931
        %v3164 = vpack.c.b16 %v2940, %v2932
        %v3165 = vpack.c.b16 %v2941, %v2933
        %v3166 = vpack.c.b16 %v2942, %v2934
        %v3167 = vpack.c.b16 %v2951, %v2943
        %v3168 = vpack.c.b16 %v2952, %v2944
        %v3169 = vpack.c.b16 %v2953, %v2945
        %v3170 = vpack.c.b16 %v2954, %v2946
        %v3171 = vpack.c.b16 %v2955, %v2947
        %v3172 = vpack.c.b16 %v2956, %v2948
        %v3173 = vpack.c.b16 %v2957, %v2949
        %v3174 = vpack.c.b16 %v2958, %v2950
        %v3175 = vpack.c.b16 %v2967, %v2959
        %v3176 = vpack.c.b16 %v2968, %v2960
        %v3177 = vpack.c.b16 %v2969, %v2961
        %v3178 = vpack.c.b16 %v2970, %v2962
        %v3179 = vpack.c.b16 %v2971, %v2963
        %v3180 = vpack.c.b16 %v2972, %v2964
        %v3181 = vpack.c.b16 %v2973, %v2965
        %v3182 = vpack.c.b16 %v2974, %v2966
        %v3183 = vpack.c.b16 %v2983, %v2975
        %v3184 = vpack.c.b16 %v2984, %v2976
        %v3185 = vpack.c.b16 %v2985, %v2977
        %v3186 = vpack.c.b16 %v2986, %v2978
        %v3187 = vpack.c.b16 %v2987, %v2979
        %v3188 = vpack.c.b16 %v2988, %v2980
        %v3189 = vpack.c.b16 %v2989, %v2981
        %v3190 = vpack.c.b16 %v2990, %v2982
        %v3191 = vpack.c.b16 %v2999, %v2991
        %v3192 = vpack.c.b16 %v3000, %v2992
        %v3193 = vpack.c.b16 %v3001, %v2993
        %v3194 = vpack.c.b16 %v3002, %v2994
        %v3195 = vpack.c.b16 %v3003, %v2995
        %v3196 = vpack.c.b16 %v3004, %v2996
        %v3197 = vpack.c.b16 %v3005, %v2997
        %v3198 = vpack.c.b16 %v3006, %v2998
        %v3199 = vpack.c.b16 %v3015, %v3007
        %v3200 = vpack.c.b16 %v3016, %v3008
        %v3201 = vpack.c.b16 %v3017, %v3009
        %v3202 = vpack.c.b16 %v3018, %v3010
        %v3203 = vpack.c.b16 %v3019, %v3011
        %v3204 = vpack.c.b16 %v3020, %v3012
        %v3205 = vpack.c.b16 %v3021, %v3013
        %v3206 = vpack.c.b16 %v3022, %v3014
        %v3207 = vpack.c.b16 %v3031, %v3023
        %v3208 = vpack.c.b16 %v3032, %v3024
        %v3209 = vpack.c.b16 %v3033, %v3025
        %v3210 = vpack.c.b16 %v3034, %v3026
        %v3211 = vpack.c.b16 %v3035, %v3027
        %v3212 = vpack.c.b16 %v3036, %v3028
        %v3213 = vpack.c.b16 %v3037, %v3029
        %v3214 = vpack.c.b16 %v3038, %v3030
        %v3215 = vpack.c.b16 %v3047, %v3039
        %v3216 = vpack.c.b16 %v3048, %v3040
        %v3217 = vpack.c.b16 %v3049, %v3041
        %v3218 = vpack.c.b16 %v3050, %v3042
        %v3219 = vpack.c.b16 %v3051, %v3043
        %v3220 = vpack.c.b16 %v3052, %v3044
        %v3221 = vpack.c.b16 %v3053, %v3045
        %v3222 = vpack.c.b16 %v3054, %v3046
        %v3223 = vpack.c.b16 %v3063, %v3055
        %v3224 = vpack.c.b16 %v3064, %v3056
        %v3225 = vpack.c.b16 %v3065, %v3057
        %v3226 = vpack.c.b16 %v3066, %v3058
        %v3227 = vpack.c.b16 %v3067, %v3059
        %v3228 = vpack.c.b16 %v3068, %v3060
        %v3229 = vpack.c.b16 %v3069, %v3061
        %v3230 = vpack.c.b16 %v3070, %v3062
        %v3231 = vpack.c.b16 %v3079, %v3071
        %v3232 = vpack.c.b16 %v3080, %v3072
        %v3233 = vpack.c.b16 %v3081, %v3073
        %v3234 = vpack.c.b16 %v3082, %v3074
        %v3235 = vpack.c.b16 %v3083, %v3075
        %v3236 = vpack.c.b16 %v3084, %v3076
        %v3237 = vpack.c.b16 %v3085, %v3077
        %v3238 = vpack.c.b16 %v3086, %v3078
        %v3239 = vpack.c.b16 %v3095, %v3087
        %v3240 = vpack.c.b16 %v3096, %v3088
        %v3241 = vpack.c.b16 %v3097, %v3089
        %v3242 = vpack.c.b16 %v3098, %v3090
        %v3243 = vpack.c.b16 %v3099, %v3091
        %v3244 = vpack.c.b16 %v3100, %v3092
        %v3245 = vpack.c.b16 %v3101, %v3093
        %v3246 = vpack.c.b16 %v3102, %v3094
        %v3247 = vpack.c.b16 %v3111, %v3103
        %v3248 = vpack.c.b16 %v3112, %v3104
        %v3249 = vpack.c.b16 %v3113, %v3105
        %v3250 = vpack.c.b16 %v3114, %v3106
        %v3251 = vpack.c.b16 %v3115, %v3107
        %v3252 = vpack.c.b16 %v3116, %v3108
        %v3253 = vpack.c.b16 %v3117, %v3109
        %v3254 = vpack.c.b16 %v3118, %v3110
        %v3255 = vpack.c.b16 %v3127, %v3119
        %v3256 = vpack.c.b16 %v3128, %v3120
        %v3257 = vpack.c.b16 %v3129, %v3121
        %v3258 = vpack.c.b16 %v3130, %v3122
        %v3259 = vpack.c.b16 %v3131, %v3123
        %v3260 = vpack.c.b16 %v3132, %v3124
        %v3261 = vpack.c.b16 %v3133, %v3125
        %v3262 = vpack.c.b16 %v3134, %v3126
        %3391 = vmatpush.bf16.msra.mxu0 %v3191
        %3392 = vmatpush.bf16.msra.mxu0 %v3183
        %3393 = vmatpush.bf16.msra.mxu0 %v3175
        %3394 = vmatpush.bf16.msra.mxu0 %v3167
        %3395 = vmatpush.bf16.msra.mxu0 %v3159
        %3396 = vmatpush.bf16.msra.mxu0 %v3151
        %3397 = vmatpush.bf16.msra.mxu0 %v3143
        %3398 = vmatpush.bf16.msra.mxu0 %v3135
        %3399 = vmatmul.bf16.gmra.mxu0 %v2603
        %v3400 = vpop.f32.mrf.mxu0
        %v3401 = vadd.f32 %v2735, %v3400
        %v3402 = vpop.f32.mrf.mxu0
        %3403 = vdwg.mxu0
        %3404 = vmatpush.bf16.msra.mxu0 %v3255
        %3405 = vmatpush.bf16.msra.mxu0 %v3247
        %3406 = vmatpush.bf16.msra.mxu0 %v3239
        %3407 = vmatpush.bf16.msra.mxu0 %v3231
        %3408 = vmatpush.bf16.msra.mxu0 %v3223
        %3409 = vmatpush.bf16.msra.mxu0 %v3215
        %3410 = vmatpush.bf16.msra.mxu0 %v3207
        %3411 = vmatpush.bf16.msra.mxu0 %v3199
        %3412 = vmatmul.bf16.gmra.mxu0 %v2604
        %v3413 = vpop.f32.mrf.mxu0
        %v3414 = vadd.f32 %v3401, %v3413
        %v3415 = vpop.f32.mrf.mxu0
        %3416 = vdwg.mxu0
        %3417 = vmatpush.bf16.msra.mxu0 %v3192
        %3418 = vmatpush.bf16.msra.mxu0 %v3184
        %3419 = vmatpush.bf16.msra.mxu0 %v3176
        %3420 = vmatpush.bf16.msra.mxu0 %v3168
        %3421 = vmatpush.bf16.msra.mxu0 %v3160
        %3422 = vmatpush.bf16.msra.mxu0 %v3152
        %3423 = vmatpush.bf16.msra.mxu0 %v3144
        %3424 = vmatpush.bf16.msra.mxu0 %v3136
        %3425 = vmatmul.bf16.gmra.mxu0 %v2603
        %v3426 = vpop.f32.mrf.mxu0
        %v3427 = vadd.f32 %v2736, %v3426
        %v3428 = vpop.f32.mrf.mxu0
        %3429 = vdwg.mxu0
        %3430 = vmatpush.bf16.msra.mxu0 %v3256
        %3431 = vmatpush.bf16.msra.mxu0 %v3248
        %3432 = vmatpush.bf16.msra.mxu0 %v3240
        %3433 = vmatpush.bf16.msra.mxu0 %v3232
        %3434 = vmatpush.bf16.msra.mxu0 %v3224
        %3435 = vmatpush.bf16.msra.mxu0 %v3216
        %3436 = vmatpush.bf16.msra.mxu0 %v3208
        %3437 = vmatpush.bf16.msra.mxu0 %v3200
        %3438 = vmatmul.bf16.gmra.mxu0 %v2604
        %v3439 = vpop.f32.mrf.mxu0
        %v3440 = vadd.f32 %v3427, %v3439
        %v3441 = vpop.f32.mrf.mxu0
        %3442 = vdwg.mxu0
        %3443 = vmatpush.bf16.msra.mxu0 %v3193
        %3444 = vmatpush.bf16.msra.mxu0 %v3185
        %3445 = vmatpush.bf16.msra.mxu0 %v3177
        %3446 = vmatpush.bf16.msra.mxu0 %v3169
        %3447 = vmatpush.bf16.msra.mxu0 %v3161
        %3448 = vmatpush.bf16.msra.mxu0 %v3153
        %3449 = vmatpush.bf16.msra.mxu0 %v3145
        %3450 = vmatpush.bf16.msra.mxu0 %v3137
        %3451 = vmatmul.bf16.gmra.mxu0 %v2603
        %v3452 = vpop.f32.mrf.mxu0
        %v3453 = vadd.f32 %v2737, %v3452
        %v3454 = vpop.f32.mrf.mxu0
        %3455 = vdwg.mxu0
        %3456 = vmatpush.bf16.msra.mxu0 %v3257
        %3457 = vmatpush.bf16.msra.mxu0 %v3249
        %3458 = vmatpush.bf16.msra.mxu0 %v3241
        %3459 = vmatpush.bf16.msra.mxu0 %v3233
        %3460 = vmatpush.bf16.msra.mxu0 %v3225
        %3461 = vmatpush.bf16.msra.mxu0 %v3217
        %3462 = vmatpush.bf16.msra.mxu0 %v3209
        %3463 = vmatpush.bf16.msra.mxu0 %v3201
        %3464 = vmatmul.bf16.gmra.mxu0 %v2604
        %v3465 = vpop.f32.mrf.mxu0
        %v3466 = vadd.f32 %v3453, %v3465
        %v3467 = vpop.f32.mrf.mxu0
        %3468 = vdwg.mxu0
        %3469 = vmatpush.bf16.msra.mxu0 %v3194
        %3470 = vmatpush.bf16.msra.mxu0 %v3186
        %3471 = vmatpush.bf16.msra.mxu0 %v3178
        %3472 = vmatpush.bf16.msra.mxu0 %v3170
        %3473 = vmatpush.bf16.msra.mxu0 %v3162
        %3474 = vmatpush.bf16.msra.mxu0 %v3154
        %3475 = vmatpush.bf16.msra.mxu0 %v3146
        %3476 = vmatpush.bf16.msra.mxu0 %v3138
        %3477 = vmatmul.bf16.gmra.mxu0 %v2603
        %v3478 = vpop.f32.mrf.mxu0
        %v3479 = vadd.f32 %v2738, %v3478
        %v3480 = vpop.f32.mrf.mxu0
        %3481 = vdwg.mxu0
        %3482 = vmatpush.bf16.msra.mxu0 %v3258
        %3483 = vmatpush.bf16.msra.mxu0 %v3250
        %3484 = vmatpush.bf16.msra.mxu0 %v3242
        %3485 = vmatpush.bf16.msra.mxu0 %v3234
        %3486 = vmatpush.bf16.msra.mxu0 %v3226
        %3487 = vmatpush.bf16.msra.mxu0 %v3218
        %3488 = vmatpush.bf16.msra.mxu0 %v3210
        %3489 = vmatpush.bf16.msra.mxu0 %v3202
        %3490 = vmatmul.bf16.gmra.mxu0 %v2604
        %v3491 = vpop.f32.mrf.mxu0
        %v3492 = vadd.f32 %v3479, %v3491
        %v3493 = vpop.f32.mrf.mxu0
        %3494 = vdwg.mxu0
        %3495 = vmatpush.bf16.msra.mxu0 %v3195
        %3496 = vmatpush.bf16.msra.mxu0 %v3187
        %3497 = vmatpush.bf16.msra.mxu0 %v3179
        %3498 = vmatpush.bf16.msra.mxu0 %v3171
        %3499 = vmatpush.bf16.msra.mxu0 %v3163
        %3500 = vmatpush.bf16.msra.mxu0 %v3155
        %3501 = vmatpush.bf16.msra.mxu0 %v3147
        %3502 = vmatpush.bf16.msra.mxu0 %v3139
        %3503 = vmatmul.bf16.gmra.mxu0 %v2603
        %v3504 = vpop.f32.mrf.mxu0
        %v3505 = vadd.f32 %v2739, %v3504
        %v3506 = vpop.f32.mrf.mxu0
        %3507 = vdwg.mxu0
        %3508 = vmatpush.bf16.msra.mxu0 %v3259
        %3509 = vmatpush.bf16.msra.mxu0 %v3251
        %3510 = vmatpush.bf16.msra.mxu0 %v3243
        %3511 = vmatpush.bf16.msra.mxu0 %v3235
        %3512 = vmatpush.bf16.msra.mxu0 %v3227
        %3513 = vmatpush.bf16.msra.mxu0 %v3219
        %3514 = vmatpush.bf16.msra.mxu0 %v3211
        %3515 = vmatpush.bf16.msra.mxu0 %v3203
        %3516 = vmatmul.bf16.gmra.mxu0 %v2604
        %v3517 = vpop.f32.mrf.mxu0
        %v3518 = vadd.f32 %v3505, %v3517
        %v3519 = vpop.f32.mrf.mxu0
        %3520 = vdwg.mxu0
        %3521 = vmatpush.bf16.msra.mxu0 %v3196
        %3522 = vmatpush.bf16.msra.mxu0 %v3188
        %3523 = vmatpush.bf16.msra.mxu0 %v3180
        %3524 = vmatpush.bf16.msra.mxu0 %v3172
        %3525 = vmatpush.bf16.msra.mxu0 %v3164
        %3526 = vmatpush.bf16.msra.mxu0 %v3156
        %3527 = vmatpush.bf16.msra.mxu0 %v3148
        %3528 = vmatpush.bf16.msra.mxu0 %v3140
        %3529 = vmatmul.bf16.gmra.mxu0 %v2603
        %v3530 = vpop.f32.mrf.mxu0
        %v3531 = vadd.f32 %v2740, %v3530
        %v3532 = vpop.f32.mrf.mxu0
        %3533 = vdwg.mxu0
        %3534 = vmatpush.bf16.msra.mxu0 %v3260
        %3535 = vmatpush.bf16.msra.mxu0 %v3252
        %3536 = vmatpush.bf16.msra.mxu0 %v3244
        %3537 = vmatpush.bf16.msra.mxu0 %v3236
        %3538 = vmatpush.bf16.msra.mxu0 %v3228
        %3539 = vmatpush.bf16.msra.mxu0 %v3220
        %3540 = vmatpush.bf16.msra.mxu0 %v3212
        %3541 = vmatpush.bf16.msra.mxu0 %v3204
        %3542 = vmatmul.bf16.gmra.mxu0 %v2604
        %v3543 = vpop.f32.mrf.mxu0
        %v3544 = vadd.f32 %v3531, %v3543
        %v3545 = vpop.f32.mrf.mxu0
        %3546 = vdwg.mxu0
        %3547 = vmatpush.bf16.msra.mxu0 %v3197
        %3548 = vmatpush.bf16.msra.mxu0 %v3189
        %3549 = vmatpush.bf16.msra.mxu0 %v3181
        %3550 = vmatpush.bf16.msra.mxu0 %v3173
        %3551 = vmatpush.bf16.msra.mxu0 %v3165
        %3552 = vmatpush.bf16.msra.mxu0 %v3157
        %3553 = vmatpush.bf16.msra.mxu0 %v3149
        %3554 = vmatpush.bf16.msra.mxu0 %v3141
        %3555 = vmatmul.bf16.gmra.mxu0 %v2603
        %v3556 = vpop.f32.mrf.mxu0
        %v3557 = vadd.f32 %v2741, %v3556
        %v3558 = vpop.f32.mrf.mxu0
        %3559 = vdwg.mxu0
        %3560 = vmatpush.bf16.msra.mxu0 %v3261
        %3561 = vmatpush.bf16.msra.mxu0 %v3253
        %3562 = vmatpush.bf16.msra.mxu0 %v3245
        %3563 = vmatpush.bf16.msra.mxu0 %v3237
        %3564 = vmatpush.bf16.msra.mxu0 %v3229
        %3565 = vmatpush.bf16.msra.mxu0 %v3221
        %3566 = vmatpush.bf16.msra.mxu0 %v3213
        %3567 = vmatpush.bf16.msra.mxu0 %v3205
        %3568 = vmatmul.bf16.gmra.mxu0 %v2604
        %v3569 = vpop.f32.mrf.mxu0
        %v3570 = vadd.f32 %v3557, %v3569
        %v3571 = vpop.f32.mrf.mxu0
        %3572 = vdwg.mxu0
        %3573 = vmatpush.bf16.msra.mxu0 %v3198
        %3574 = vmatpush.bf16.msra.mxu0 %v3190
        %3575 = vmatpush.bf16.msra.mxu0 %v3182
        %3576 = vmatpush.bf16.msra.mxu0 %v3174
        %3577 = vmatpush.bf16.msra.mxu0 %v3166
        %3578 = vmatpush.bf16.msra.mxu0 %v3158
        %3579 = vmatpush.bf16.msra.mxu0 %v3150
        %3580 = vmatpush.bf16.msra.mxu0 %v3142
        %3581 = vmatmul.bf16.gmra.mxu0 %v2603
        %v3582 = vpop.f32.mrf.mxu0
        %v3583 = vadd.f32 %v2742, %v3582
        %v3584 = vpop.f32.mrf.mxu0
        %3585 = vdwg.mxu0
        %3586 = vmatpush.bf16.msra.mxu0 %v3262
        %3587 = vmatpush.bf16.msra.mxu0 %v3254
        %3588 = vmatpush.bf16.msra.mxu0 %v3246
        %3589 = vmatpush.bf16.msra.mxu0 %v3238
        %3590 = vmatpush.bf16.msra.mxu0 %v3230
        %3591 = vmatpush.bf16.msra.mxu0 %v3222
        %3592 = vmatpush.bf16.msra.mxu0 %v3214
        %3593 = vmatpush.bf16.msra.mxu0 %v3206
        %3594 = vmatmul.bf16.gmra.mxu0 %v2604
        %v3595 = vpop.f32.mrf.mxu0
        %v3596 = vadd.f32 %v3583, %v3595
        %v3597 = vpop.f32.mrf.mxu0
        %3598 = vdwg.mxu0
        %v3599 = vmul.f32 %v3414, 0.5
        %v3600 = vmul.f32 %v3440, 0.5
        %v3601 = vmul.f32 %v3466, 0.5
        %v3602 = vmul.f32 %v3492, 0.5
        %v3603 = vmul.f32 %v3518, 0.5
        %v3604 = vmul.f32 %v3544, 0.5
        %v3605 = vmul.f32 %v3570, 0.5
        %v3606 = vmul.f32 %v3596, 0.5
        %v3607 = vmul.f32 %v3414, 0.70710677
        %v3608 = vmul.f32 %v3440, 0.70710677
        %v3609 = vmul.f32 %v3466, 0.70710677
        %v3610 = vmul.f32 %v3492, 0.70710677
        %v3611 = vmul.f32 %v3518, 0.70710677
        %v3612 = vmul.f32 %v3544, 0.70710677
        %v3613 = vmul.f32 %v3570, 0.70710677
        %v3614 = vmul.f32 %v3596, 0.70710677
        %v3615 = vmul.f32 %v3607, %v3607
        %v3616 = vmin.f32 16.0, %v3615
        %v3617 = vmul.f32 %v3616, 2.1237322e-06
        %v3618 = vadd.f32 %v3617, 0.00028619796
        %v3619 = vmul.f32 %v3616, %v3618
        %v3620 = vadd.f32 %v3619, 0.0036580483
        %v3621 = vmul.f32 %v3616, %v3620
        %v3622 = vadd.f32 %v3621, 0.05243302
        %v3623 = vmul.f32 %v3616, %v3622
        %v3624 = vadd.f32 %v3623, 0.18741608
        %v3625 = vmul.f32 %v3616, %v3624
        %v3626 = vadd.f32 %v3625, 1.1283791
        %v3627 = vmul.f32 %v3607, %v3626
        %v3628 = vmul.f32 %v3616, 3.8918573e-05
        %v3629 = vadd.f32 %v3628, 0.001143296
        %v3630 = vmul.f32 %v3616, %v3629
        %v3631 = vadd.f32 %v3630, 0.014752088
        %v3632 = vmul.f32 %v3616, %v3631
        %v3633 = vadd.f32 %v3632, 0.112945676
        %v3634 = vmul.f32 %v3616, %v3633
        %v3635 = vadd.f32 %v3634, 0.4994258
        %v3636 = vmul.f32 %v3616, %v3635
        %v3637 = vadd.f32 %v3636, 1.0
        %v3638 = vrcp.pop %v3637
        %v3639 = vmul.f32 %v3637, %v3638
        %v3640 = vsub.f32 1.0, %v3639
        %v3641 = vmul.f32 %v3638, %v3640
        %v3642 = vadd.f32 %v3638, %v3641
        %vm3643 = vweird.f32 %v3637
        %vm3644 = vweird.f32 %v3638
        %vm3645 = vmor %vm3643, %vm3644
        %v3646 = vsel %vm3645, %v3638, %v3642
        %v3647 = vand.u32 2147483647, %v3637
        %vm3648 = vcmp.eq.f32.partialorder %v3647, 8.507059e+37
        %v3649 = vand.u32 %v3637, 2147483648
        %v3650 = vor.u32 1.1754944e-38, %v3649
        %v3651 = vsel %vm3648, %v3650, %v3646
        %v3652 = vmul.f32 %v3627, %v3651
        %v3653 = vmin.f32 %v3652, 1.0
        %v3654 = vmax.f32 %v3653, -1.0
        %v3655 = vmul.f32 %v3608, %v3608
        %v3656 = vmin.f32 16.0, %v3655
        %v3657 = vmul.f32 %v3656, 2.1237322e-06
        %v3658 = vadd.f32 %v3657, 0.00028619796
        %v3659 = vmul.f32 %v3656, %v3658
        %v3660 = vadd.f32 %v3659, 0.0036580483
        %v3661 = vmul.f32 %v3656, %v3660
        %v3662 = vadd.f32 %v3661, 0.05243302
        %v3663 = vmul.f32 %v3656, %v3662
        %v3664 = vadd.f32 %v3663, 0.18741608
        %v3665 = vmul.f32 %v3656, %v3664
        %v3666 = vadd.f32 %v3665, 1.1283791
        %v3667 = vmul.f32 %v3608, %v3666
        %v3668 = vmul.f32 %v3656, 3.8918573e-05
        %v3669 = vadd.f32 %v3668, 0.001143296
        %v3670 = vmul.f32 %v3656, %v3669
        %v3671 = vadd.f32 %v3670, 0.014752088
        %v3672 = vmul.f32 %v3656, %v3671
        %v3673 = vadd.f32 %v3672, 0.112945676
        %v3674 = vmul.f32 %v3656, %v3673
        %v3675 = vadd.f32 %v3674, 0.4994258
        %v3676 = vmul.f32 %v3656, %v3675
        %v3677 = vadd.f32 %v3676, 1.0
        %v3678 = vrcp.pop %v3677
        %v3679 = vmul.f32 %v3677, %v3678
        %v3680 = vsub.f32 1.0, %v3679
        %v3681 = vmul.f32 %v3678, %v3680
        %v3682 = vadd.f32 %v3678, %v3681
        %vm3683 = vweird.f32 %v3677
        %vm3684 = vweird.f32 %v3678
        %vm3685 = vmor %vm3683, %vm3684
        %v3686 = vsel %vm3685, %v3678, %v3682
        %v3687 = vand.u32 2147483647, %v3677
        %vm3688 = vcmp.eq.f32.partialorder %v3687, 8.507059e+37
        %v3689 = vand.u32 %v3677, 2147483648
        %v3690 = vor.u32 1.1754944e-38, %v3689
        %v3691 = vsel %vm3688, %v3690, %v3686
        %v3692 = vmul.f32 %v3667, %v3691
        %v3693 = vmin.f32 %v3692, 1.0
        %v3694 = vmax.f32 %v3693, -1.0
        %v3695 = vmul.f32 %v3609, %v3609
        %v3696 = vmin.f32 16.0, %v3695
        %v3697 = vmul.f32 %v3696, 2.1237322e-06
        %v3698 = vadd.f32 %v3697, 0.00028619796
        %v3699 = vmul.f32 %v3696, %v3698
        %v3700 = vadd.f32 %v3699, 0.0036580483
        %v3701 = vmul.f32 %v3696, %v3700
        %v3702 = vadd.f32 %v3701, 0.05243302
        %v3703 = vmul.f32 %v3696, %v3702
        %v3704 = vadd.f32 %v3703, 0.18741608
        %v3705 = vmul.f32 %v3696, %v3704
        %v3706 = vadd.f32 %v3705, 1.1283791
        %v3707 = vmul.f32 %v3609, %v3706
        %v3708 = vmul.f32 %v3696, 3.8918573e-05
        %v3709 = vadd.f32 %v3708, 0.001143296
        %v3710 = vmul.f32 %v3696, %v3709
        %v3711 = vadd.f32 %v3710, 0.014752088
        %v3712 = vmul.f32 %v3696, %v3711
        %v3713 = vadd.f32 %v3712, 0.112945676
        %v3714 = vmul.f32 %v3696, %v3713
        %v3715 = vadd.f32 %v3714, 0.4994258
        %v3716 = vmul.f32 %v3696, %v3715
        %v3717 = vadd.f32 %v3716, 1.0
        %v3718 = vrcp.pop %v3717
        %v3719 = vmul.f32 %v3717, %v3718
        %v3720 = vsub.f32 1.0, %v3719
        %v3721 = vmul.f32 %v3718, %v3720
        %v3722 = vadd.f32 %v3718, %v3721
        %vm3723 = vweird.f32 %v3717
        %vm3724 = vweird.f32 %v3718
        %vm3725 = vmor %vm3723, %vm3724
        %v3726 = vsel %vm3725, %v3718, %v3722
        %v3727 = vand.u32 2147483647, %v3717
        %vm3728 = vcmp.eq.f32.partialorder %v3727, 8.507059e+37
        %v3729 = vand.u32 %v3717, 2147483648
        %v3730 = vor.u32 1.1754944e-38, %v3729
        %v3731 = vsel %vm3728, %v3730, %v3726
        %v3732 = vmul.f32 %v3707, %v3731
        %v3733 = vmin.f32 %v3732, 1.0
        %v3734 = vmax.f32 %v3733, -1.0
        %v3735 = vmul.f32 %v3610, %v3610
        %v3736 = vmin.f32 16.0, %v3735
        %v3737 = vmul.f32 %v3736, 2.1237322e-06
        %v3738 = vadd.f32 %v3737, 0.00028619796
        %v3739 = vmul.f32 %v3736, %v3738
        %v3740 = vadd.f32 %v3739, 0.0036580483
        %v3741 = vmul.f32 %v3736, %v3740
        %v3742 = vadd.f32 %v3741, 0.05243302
        %v3743 = vmul.f32 %v3736, %v3742
        %v3744 = vadd.f32 %v3743, 0.18741608
        %v3745 = vmul.f32 %v3736, %v3744
        %v3746 = vadd.f32 %v3745, 1.1283791
        %v3747 = vmul.f32 %v3610, %v3746
        %v3748 = vmul.f32 %v3736, 3.8918573e-05
        %v3749 = vadd.f32 %v3748, 0.001143296
        %v3750 = vmul.f32 %v3736, %v3749
        %v3751 = vadd.f32 %v3750, 0.014752088
        %v3752 = vmul.f32 %v3736, %v3751
        %v3753 = vadd.f32 %v3752, 0.112945676
        %v3754 = vmul.f32 %v3736, %v3753
        %v3755 = vadd.f32 %v3754, 0.4994258
        %v3756 = vmul.f32 %v3736, %v3755
        %v3757 = vadd.f32 %v3756, 1.0
        %v3758 = vrcp.pop %v3757
        %v3759 = vmul.f32 %v3757, %v3758
        %v3760 = vsub.f32 1.0, %v3759
        %v3761 = vmul.f32 %v3758, %v3760
        %v3762 = vadd.f32 %v3758, %v3761
        %vm3763 = vweird.f32 %v3757
        %vm3764 = vweird.f32 %v3758
        %vm3765 = vmor %vm3763, %vm3764
        %v3766 = vsel %vm3765, %v3758, %v3762
        %v3767 = vand.u32 2147483647, %v3757
        %vm3768 = vcmp.eq.f32.partialorder %v3767, 8.507059e+37
        %v3769 = vand.u32 %v3757, 2147483648
        %v3770 = vor.u32 1.1754944e-38, %v3769
        %v3771 = vsel %vm3768, %v3770, %v3766
        %v3772 = vmul.f32 %v3747, %v3771
        %v3773 = vmin.f32 %v3772, 1.0
        %v3774 = vmax.f32 %v3773, -1.0
        %v3775 = vmul.f32 %v3611, %v3611
        %v3776 = vmin.f32 16.0, %v3775
        %v3777 = vmul.f32 %v3776, 2.1237322e-06
        %v3778 = vadd.f32 %v3777, 0.00028619796
        %v3779 = vmul.f32 %v3776, %v3778
        %v3780 = vadd.f32 %v3779, 0.0036580483
        %v3781 = vmul.f32 %v3776, %v3780
        %v3782 = vadd.f32 %v3781, 0.05243302
        %v3783 = vmul.f32 %v3776, %v3782
        %v3784 = vadd.f32 %v3783, 0.18741608
        %v3785 = vmul.f32 %v3776, %v3784
        %v3786 = vadd.f32 %v3785, 1.1283791
        %v3787 = vmul.f32 %v3611, %v3786
        %v3788 = vmul.f32 %v3776, 3.8918573e-05
        %v3789 = vadd.f32 %v3788, 0.001143296
        %v3790 = vmul.f32 %v3776, %v3789
        %v3791 = vadd.f32 %v3790, 0.014752088
        %v3792 = vmul.f32 %v3776, %v3791
        %v3793 = vadd.f32 %v3792, 0.112945676
        %v3794 = vmul.f32 %v3776, %v3793
        %v3795 = vadd.f32 %v3794, 0.4994258
        %v3796 = vmul.f32 %v3776, %v3795
        %v3797 = vadd.f32 %v3796, 1.0
        %v3798 = vrcp.pop %v3797
        %v3799 = vmul.f32 %v3797, %v3798
        %v3800 = vsub.f32 1.0, %v3799
        %v3801 = vmul.f32 %v3798, %v3800
        %v3802 = vadd.f32 %v3798, %v3801
        %vm3803 = vweird.f32 %v3797
        %vm3804 = vweird.f32 %v3798
        %vm3805 = vmor %vm3803, %vm3804
        %v3806 = vsel %vm3805, %v3798, %v3802
        %v3807 = vand.u32 2147483647, %v3797
        %vm3808 = vcmp.eq.f32.partialorder %v3807, 8.507059e+37
        %v3809 = vand.u32 %v3797, 2147483648
        %v3810 = vor.u32 1.1754944e-38, %v3809
        %v3811 = vsel %vm3808, %v3810, %v3806
        %v3812 = vmul.f32 %v3787, %v3811
        %v3813 = vmin.f32 %v3812, 1.0
        %v3814 = vmax.f32 %v3813, -1.0
        %v3815 = vmul.f32 %v3612, %v3612
        %v3816 = vmin.f32 16.0, %v3815
        %v3817 = vmul.f32 %v3816, 2.1237322e-06
        %v3818 = vadd.f32 %v3817, 0.00028619796
        %v3819 = vmul.f32 %v3816, %v3818
        %v3820 = vadd.f32 %v3819, 0.0036580483
        %v3821 = vmul.f32 %v3816, %v3820
        %v3822 = vadd.f32 %v3821, 0.05243302
        %v3823 = vmul.f32 %v3816, %v3822
        %v3824 = vadd.f32 %v3823, 0.18741608
        %v3825 = vmul.f32 %v3816, %v3824
        %v3826 = vadd.f32 %v3825, 1.1283791
        %v3827 = vmul.f32 %v3612, %v3826
        %v3828 = vmul.f32 %v3816, 3.8918573e-05
        %v3829 = vadd.f32 %v3828, 0.001143296
        %v3830 = vmul.f32 %v3816, %v3829
        %v3831 = vadd.f32 %v3830, 0.014752088
        %v3832 = vmul.f32 %v3816, %v3831
        %v3833 = vadd.f32 %v3832, 0.112945676
        %v3834 = vmul.f32 %v3816, %v3833
        %v3835 = vadd.f32 %v3834, 0.4994258
        %v3836 = vmul.f32 %v3816, %v3835
        %v3837 = vadd.f32 %v3836, 1.0
        %v3838 = vrcp.pop %v3837
        %v3839 = vmul.f32 %v3837, %v3838
        %v3840 = vsub.f32 1.0, %v3839
        %v3841 = vmul.f32 %v3838, %v3840
        %v3842 = vadd.f32 %v3838, %v3841
        %vm3843 = vweird.f32 %v3837
        %vm3844 = vweird.f32 %v3838
        %vm3845 = vmor %vm3843, %vm3844
        %v3846 = vsel %vm3845, %v3838, %v3842
        %v3847 = vand.u32 2147483647, %v3837
        %vm3848 = vcmp.eq.f32.partialorder %v3847, 8.507059e+37
        %v3849 = vand.u32 %v3837, 2147483648
        %v3850 = vor.u32 1.1754944e-38, %v3849
        %v3851 = vsel %vm3848, %v3850, %v3846
        %v3852 = vmul.f32 %v3827, %v3851
        %v3853 = vmin.f32 %v3852, 1.0
        %v3854 = vmax.f32 %v3853, -1.0
        %v3855 = vmul.f32 %v3613, %v3613
        %v3856 = vmin.f32 16.0, %v3855
        %v3857 = vmul.f32 %v3856, 2.1237322e-06
        %v3858 = vadd.f32 %v3857, 0.00028619796
        %v3859 = vmul.f32 %v3856, %v3858
        %v3860 = vadd.f32 %v3859, 0.0036580483
        %v3861 = vmul.f32 %v3856, %v3860
        %v3862 = vadd.f32 %v3861, 0.05243302
        %v3863 = vmul.f32 %v3856, %v3862
        %v3864 = vadd.f32 %v3863, 0.18741608
        %v3865 = vmul.f32 %v3856, %v3864
        %v3866 = vadd.f32 %v3865, 1.1283791
        %v3867 = vmul.f32 %v3613, %v3866
        %v3868 = vmul.f32 %v3856, 3.8918573e-05
        %v3869 = vadd.f32 %v3868, 0.001143296
        %v3870 = vmul.f32 %v3856, %v3869
        %v3871 = vadd.f32 %v3870, 0.014752088
        %v3872 = vmul.f32 %v3856, %v3871
        %v3873 = vadd.f32 %v3872, 0.112945676
        %v3874 = vmul.f32 %v3856, %v3873
        %v3875 = vadd.f32 %v3874, 0.4994258
        %v3876 = vmul.f32 %v3856, %v3875
        %v3877 = vadd.f32 %v3876, 1.0
        %v3878 = vrcp.pop %v3877
        %v3879 = vmul.f32 %v3877, %v3878
        %v3880 = vsub.f32 1.0, %v3879
        %v3881 = vmul.f32 %v3878, %v3880
        %v3882 = vadd.f32 %v3878, %v3881
        %vm3883 = vweird.f32 %v3877
        %vm3884 = vweird.f32 %v3878
        %vm3885 = vmor %vm3883, %vm3884
        %v3886 = vsel %vm3885, %v3878, %v3882
        %v3887 = vand.u32 2147483647, %v3877
        %vm3888 = vcmp.eq.f32.partialorder %v3887, 8.507059e+37
        %v3889 = vand.u32 %v3877, 2147483648
        %v3890 = vor.u32 1.1754944e-38, %v3889
        %v3891 = vsel %vm3888, %v3890, %v3886
        %v3892 = vmul.f32 %v3867, %v3891
        %v3893 = vmin.f32 %v3892, 1.0
        %v3894 = vmax.f32 %v3893, -1.0
        %v3895 = vmul.f32 %v3614, %v3614
        %v3896 = vmin.f32 16.0, %v3895
        %v3897 = vmul.f32 %v3896, 2.1237322e-06
        %v3898 = vadd.f32 %v3897, 0.00028619796
        %v3899 = vmul.f32 %v3896, %v3898
        %v3900 = vadd.f32 %v3899, 0.0036580483
        %v3901 = vmul.f32 %v3896, %v3900
        %v3902 = vadd.f32 %v3901, 0.05243302
        %v3903 = vmul.f32 %v3896, %v3902
        %v3904 = vadd.f32 %v3903, 0.18741608
        %v3905 = vmul.f32 %v3896, %v3904
        %v3906 = vadd.f32 %v3905, 1.1283791
        %v3907 = vmul.f32 %v3614, %v3906
        %v3908 = vmul.f32 %v3896, 3.8918573e-05
        %v3909 = vadd.f32 %v3908, 0.001143296
        %v3910 = vmul.f32 %v3896, %v3909
        %v3911 = vadd.f32 %v3910, 0.014752088
        %v3912 = vmul.f32 %v3896, %v3911
        %v3913 = vadd.f32 %v3912, 0.112945676
        %v3914 = vmul.f32 %v3896, %v3913
        %v3915 = vadd.f32 %v3914, 0.4994258
        %v3916 = vmul.f32 %v3896, %v3915
        %v3917 = vadd.f32 %v3916, 1.0
        %v3918 = vrcp.pop %v3917
        %v3919 = vmul.f32 %v3917, %v3918
        %v3920 = vsub.f32 1.0, %v3919
        %v3921 = vmul.f32 %v3918, %v3920
        %v3922 = vadd.f32 %v3918, %v3921
        %vm3923 = vweird.f32 %v3917
        %vm3924 = vweird.f32 %v3918
        %vm3925 = vmor %vm3923, %vm3924
        %v3926 = vsel %vm3925, %v3918, %v3922
        %v3927 = vand.u32 2147483647, %v3917
        %vm3928 = vcmp.eq.f32.partialorder %v3927, 8.507059e+37
        %v3929 = vand.u32 %v3917, 2147483648
        %v3930 = vor.u32 1.1754944e-38, %v3929
        %v3931 = vsel %vm3928, %v3930, %v3926
        %v3932 = vmul.f32 %v3907, %v3931
        %v3933 = vmin.f32 %v3932, 1.0
        %v3934 = vmax.f32 %v3933, -1.0
        %v3935 = vadd.f32 %v3654, 1.0
        %v3936 = vadd.f32 %v3694, 1.0
        %v3937 = vadd.f32 %v3734, 1.0
        %v3938 = vadd.f32 %v3774, 1.0
        %v3939 = vadd.f32 %v3814, 1.0
        %v3940 = vadd.f32 %v3854, 1.0
        %v3941 = vadd.f32 %v3894, 1.0
        %v3942 = vadd.f32 %v3934, 1.0
        %v3943 = vmul.f32 %v3599, %v3935
        %v3944 = vmul.f32 %v3600, %v3936
        %v3945 = vmul.f32 %v3601, %v3937
        %v3946 = vmul.f32 %v3602, %v3938
        %v3947 = vmul.f32 %v3603, %v3939
        %v3948 = vmul.f32 %v3604, %v3940
        %v3949 = vmul.f32 %v3605, %v3941
        %v3950 = vmul.f32 %v3606, %v3942
        %v3951 = vpack.c.bf16 %v3943, %v3943
        %v3952 = vpack.c.bf16 %v3944, %v3944
        %v3953 = vpack.c.bf16 %v3945, %v3945
        %v3954 = vpack.c.bf16 %v3946, %v3946
        %v3955 = vpack.c.bf16 %v3947, %v3947
        %v3956 = vpack.c.bf16 %v3948, %v3948
        %v3957 = vpack.c.bf16 %v3949, %v3949
        %v3958 = vpack.c.bf16 %v3950, %v3950
        %v3959 = vld [vmem:[%s837] sm:$0xff]
        %v3960 = vld [vmem:[%s837 + $0x8] sm:$0xff]
        %v3961 = vld [vmem:[%s837 + $0x10] sm:$0xff]
        %v3962 = vld [vmem:[%s837 + $0x18] sm:$0xff]
        %v3963 = vld [vmem:[%s837 + $0x20] sm:$0xff]
        %v3964 = vld [vmem:[%s837 + $0x28] sm:$0xff]
        %v3965 = vld [vmem:[%s837 + $0x30] sm:$0xff]
        %v3966 = vld [vmem:[%s837 + $0x38] sm:$0xff]
        %v3967 = vld [vmem:[%s837 + $0x40] sm:$0xff]
        %v3968 = vld [vmem:[%s837 + $0x48] sm:$0xff]
        %v3969 = vld [vmem:[%s837 + $0x50] sm:$0xff]
        %v3970 = vld [vmem:[%s837 + $0x58] sm:$0xff]
        %v3971 = vld [vmem:[%s837 + $0x60] sm:$0xff]
        %v3972 = vld [vmem:[%s837 + $0x68] sm:$0xff]
        %v3973 = vld [vmem:[%s837 + $0x70] sm:$0xff]
        %v3974 = vld [vmem:[%s837 + $0x78] sm:$0xff]
        %v3975 = vld [vmem:[%s837 + $0x80] sm:$0xff]
        %v3976 = vld [vmem:[%s837 + $0x88] sm:$0xff]
        %v3977 = vld [vmem:[%s837 + $0x90] sm:$0xff]
        %v3978 = vld [vmem:[%s837 + $0x98] sm:$0xff]
        %v3979 = vld [vmem:[%s837 + $0xa0] sm:$0xff]
        %v3980 = vld [vmem:[%s837 + $0xa8] sm:$0xff]
        %v3981 = vld [vmem:[%s837 + $0xb0] sm:$0xff]
        %v3982 = vld [vmem:[%s837 + $0xb8] sm:$0xff]
        %v3983 = vld [vmem:[%s837 + $0xc0] sm:$0xff]
        %v3984 = vld [vmem:[%s837 + $0xc8] sm:$0xff]
        %v3985 = vld [vmem:[%s837 + $0xd0] sm:$0xff]
        %v3986 = vld [vmem:[%s837 + $0xd8] sm:$0xff]
        %v3987 = vld [vmem:[%s837 + $0xe0] sm:$0xff]
        %v3988 = vld [vmem:[%s837 + $0xe8] sm:$0xff]
        %v3989 = vld [vmem:[%s837 + $0xf0] sm:$0xff]
        %v3990 = vld [vmem:[%s837 + $0xf8] sm:$0xff]
        %v3991 = vld [vmem:[%s837 + $0x100] sm:$0xff]
        %v3992 = vld [vmem:[%s837 + $0x108] sm:$0xff]
        %v3993 = vld [vmem:[%s837 + $0x110] sm:$0xff]
        %v3994 = vld [vmem:[%s837 + $0x118] sm:$0xff]
        %v3995 = vld [vmem:[%s837 + $0x120] sm:$0xff]
        %v3996 = vld [vmem:[%s837 + $0x128] sm:$0xff]
        %v3997 = vld [vmem:[%s837 + $0x130] sm:$0xff]
        %v3998 = vld [vmem:[%s837 + $0x138] sm:$0xff]
        %v3999 = vld [vmem:[%s837 + $0x140] sm:$0xff]
        %v4000 = vld [vmem:[%s837 + $0x148] sm:$0xff]
        %v4001 = vld [vmem:[%s837 + $0x150] sm:$0xff]
        %v4002 = vld [vmem:[%s837 + $0x158] sm:$0xff]
        %v4003 = vld [vmem:[%s837 + $0x160] sm:$0xff]
        %v4004 = vld [vmem:[%s837 + $0x168] sm:$0xff]
        %v4005 = vld [vmem:[%s837 + $0x170] sm:$0xff]
        %v4006 = vld [vmem:[%s837 + $0x178] sm:$0xff]
        %v4007 = vld [vmem:[%s837 + $0x180] sm:$0xff]
        %v4008 = vld [vmem:[%s837 + $0x188] sm:$0xff]
        %v4009 = vld [vmem:[%s837 + $0x190] sm:$0xff]
        %v4010 = vld [vmem:[%s837 + $0x198] sm:$0xff]
        %v4011 = vld [vmem:[%s837 + $0x1a0] sm:$0xff]
        %v4012 = vld [vmem:[%s837 + $0x1a8] sm:$0xff]
        %v4013 = vld [vmem:[%s837 + $0x1b0] sm:$0xff]
        %v4014 = vld [vmem:[%s837 + $0x1b8] sm:$0xff]
        %v4015 = vld [vmem:[%s837 + $0x1c0] sm:$0xff]
        %v4016 = vld [vmem:[%s837 + $0x1c8] sm:$0xff]
        %v4017 = vld [vmem:[%s837 + $0x1d0] sm:$0xff]
        %v4018 = vld [vmem:[%s837 + $0x1d8] sm:$0xff]
        %v4019 = vld [vmem:[%s837 + $0x1e0] sm:$0xff]
        %v4020 = vld [vmem:[%s837 + $0x1e8] sm:$0xff]
        %v4021 = vld [vmem:[%s837 + $0x1f0] sm:$0xff]
        %v4022 = vld [vmem:[%s837 + $0x1f8] sm:$0xff]
        %v4023 = vld [vmem:[%s837 + $0x200] sm:$0xff]
        %v4024 = vld [vmem:[%s837 + $0x208] sm:$0xff]
        %v4025 = vld [vmem:[%s837 + $0x210] sm:$0xff]
        %v4026 = vld [vmem:[%s837 + $0x218] sm:$0xff]
        %v4027 = vld [vmem:[%s837 + $0x220] sm:$0xff]
        %v4028 = vld [vmem:[%s837 + $0x228] sm:$0xff]
        %v4029 = vld [vmem:[%s837 + $0x230] sm:$0xff]
        %v4030 = vld [vmem:[%s837 + $0x238] sm:$0xff]
        %v4031 = vld [vmem:[%s837 + $0x240] sm:$0xff]
        %v4032 = vld [vmem:[%s837 + $0x248] sm:$0xff]
        %v4033 = vld [vmem:[%s837 + $0x250] sm:$0xff]
        %v4034 = vld [vmem:[%s837 + $0x258] sm:$0xff]
        %v4035 = vld [vmem:[%s837 + $0x260] sm:$0xff]
        %v4036 = vld [vmem:[%s837 + $0x268] sm:$0xff]
        %v4037 = vld [vmem:[%s837 + $0x270] sm:$0xff]
        %v4038 = vld [vmem:[%s837 + $0x278] sm:$0xff]
        %v4039 = vld [vmem:[%s837 + $0x280] sm:$0xff]
        %v4040 = vld [vmem:[%s837 + $0x288] sm:$0xff]
        %v4041 = vld [vmem:[%s837 + $0x290] sm:$0xff]
        %v4042 = vld [vmem:[%s837 + $0x298] sm:$0xff]
        %v4043 = vld [vmem:[%s837 + $0x2a0] sm:$0xff]
        %v4044 = vld [vmem:[%s837 + $0x2a8] sm:$0xff]
        %v4045 = vld [vmem:[%s837 + $0x2b0] sm:$0xff]
        %v4046 = vld [vmem:[%s837 + $0x2b8] sm:$0xff]
        %v4047 = vld [vmem:[%s837 + $0x2c0] sm:$0xff]
        %v4048 = vld [vmem:[%s837 + $0x2c8] sm:$0xff]
        %v4049 = vld [vmem:[%s837 + $0x2d0] sm:$0xff]
        %v4050 = vld [vmem:[%s837 + $0x2d8] sm:$0xff]
        %v4051 = vld [vmem:[%s837 + $0x2e0] sm:$0xff]
        %v4052 = vld [vmem:[%s837 + $0x2e8] sm:$0xff]
        %v4053 = vld [vmem:[%s837 + $0x2f0] sm:$0xff]
        %v4054 = vld [vmem:[%s837 + $0x2f8] sm:$0xff]
        %v4055 = vld [vmem:[%s837 + $0x300] sm:$0xff]
        %v4056 = vld [vmem:[%s837 + $0x308] sm:$0xff]
        %v4057 = vld [vmem:[%s837 + $0x310] sm:$0xff]
        %v4058 = vld [vmem:[%s837 + $0x318] sm:$0xff]
        %v4059 = vld [vmem:[%s837 + $0x320] sm:$0xff]
        %v4060 = vld [vmem:[%s837 + $0x328] sm:$0xff]
        %v4061 = vld [vmem:[%s837 + $0x330] sm:$0xff]
        %v4062 = vld [vmem:[%s837 + $0x338] sm:$0xff]
        %v4063 = vld [vmem:[%s837 + $0x340] sm:$0xff]
        %v4064 = vld [vmem:[%s837 + $0x348] sm:$0xff]
        %v4065 = vld [vmem:[%s837 + $0x350] sm:$0xff]
        %v4066 = vld [vmem:[%s837 + $0x358] sm:$0xff]
        %v4067 = vld [vmem:[%s837 + $0x360] sm:$0xff]
        %v4068 = vld [vmem:[%s837 + $0x368] sm:$0xff]
        %v4069 = vld [vmem:[%s837 + $0x370] sm:$0xff]
        %v4070 = vld [vmem:[%s837 + $0x378] sm:$0xff]
        %v4071 = vld [vmem:[%s837 + $0x380] sm:$0xff]
        %v4072 = vld [vmem:[%s837 + $0x388] sm:$0xff]
        %v4073 = vld [vmem:[%s837 + $0x390] sm:$0xff]
        %v4074 = vld [vmem:[%s837 + $0x398] sm:$0xff]
        %v4075 = vld [vmem:[%s837 + $0x3a0] sm:$0xff]
        %v4076 = vld [vmem:[%s837 + $0x3a8] sm:$0xff]
        %v4077 = vld [vmem:[%s837 + $0x3b0] sm:$0xff]
        %v4078 = vld [vmem:[%s837 + $0x3b8] sm:$0xff]
        %v4079 = vld [vmem:[%s837 + $0x3c0] sm:$0xff]
        %v4080 = vld [vmem:[%s837 + $0x3c8] sm:$0xff]
        %v4081 = vld [vmem:[%s837 + $0x3d0] sm:$0xff]
        %v4082 = vld [vmem:[%s837 + $0x3d8] sm:$0xff]
        %v4083 = vld [vmem:[%s837 + $0x3e0] sm:$0xff]
        %v4084 = vld [vmem:[%s837 + $0x3e8] sm:$0xff]
        %v4085 = vld [vmem:[%s837 + $0x3f0] sm:$0xff]
        %v4086 = vld [vmem:[%s837 + $0x3f8] sm:$0xff]
        %v4087 = vld [vmem:[%s847] sm:$0x3]
        %v4089 = vperm.slane %v4087, 0
        %v4090 = vperm.slane %v4087, 1
        %v4221 = vunpack.c.l.b16 %v3959
        %v4222 = vunpack.c.h.b16 %v3959
        %v4223 = vunpack.c.l.b16 %v3960
        %v4224 = vunpack.c.h.b16 %v3960
        %v4225 = vunpack.c.l.b16 %v3961
        %v4226 = vunpack.c.h.b16 %v3961
        %v4227 = vunpack.c.l.b16 %v3962
        %v4228 = vunpack.c.h.b16 %v3962
        %v4229 = vunpack.c.l.b16 %v3963
        %v4230 = vunpack.c.h.b16 %v3963
        %v4231 = vunpack.c.l.b16 %v3964
        %v4232 = vunpack.c.h.b16 %v3964
        %v4233 = vunpack.c.l.b16 %v3965
        %v4234 = vunpack.c.h.b16 %v3965
        %v4235 = vunpack.c.l.b16 %v3966
        %v4236 = vunpack.c.h.b16 %v3966
        %v4237 = vunpack.c.l.b16 %v3967
        %v4238 = vunpack.c.h.b16 %v3967
        %v4239 = vunpack.c.l.b16 %v3968
        %v4240 = vunpack.c.h.b16 %v3968
        %v4241 = vunpack.c.l.b16 %v3969
        %v4242 = vunpack.c.h.b16 %v3969
        %v4243 = vunpack.c.l.b16 %v3970
        %v4244 = vunpack.c.h.b16 %v3970
        %v4245 = vunpack.c.l.b16 %v3971
        %v4246 = vunpack.c.h.b16 %v3971
        %v4247 = vunpack.c.l.b16 %v3972
        %v4248 = vunpack.c.h.b16 %v3972
        %v4249 = vunpack.c.l.b16 %v3973
        %v4250 = vunpack.c.h.b16 %v3973
        %v4251 = vunpack.c.l.b16 %v3974
        %v4252 = vunpack.c.h.b16 %v3974
        %v4253 = vunpack.c.l.b16 %v3975
        %v4254 = vunpack.c.h.b16 %v3975
        %v4255 = vunpack.c.l.b16 %v3976
        %v4256 = vunpack.c.h.b16 %v3976
        %v4257 = vunpack.c.l.b16 %v3977
        %v4258 = vunpack.c.h.b16 %v3977
        %v4259 = vunpack.c.l.b16 %v3978
        %v4260 = vunpack.c.h.b16 %v3978
        %v4261 = vunpack.c.l.b16 %v3979
        %v4262 = vunpack.c.h.b16 %v3979
        %v4263 = vunpack.c.l.b16 %v3980
        %v4264 = vunpack.c.h.b16 %v3980
        %v4265 = vunpack.c.l.b16 %v3981
        %v4266 = vunpack.c.h.b16 %v3981
        %v4267 = vunpack.c.l.b16 %v3982
        %v4268 = vunpack.c.h.b16 %v3982
        %v4269 = vunpack.c.l.b16 %v3983
        %v4270 = vunpack.c.h.b16 %v3983
        %v4271 = vunpack.c.l.b16 %v3984
        %v4272 = vunpack.c.h.b16 %v3984
        %v4273 = vunpack.c.l.b16 %v3985
        %v4274 = vunpack.c.h.b16 %v3985
        %v4275 = vunpack.c.l.b16 %v3986
        %v4276 = vunpack.c.h.b16 %v3986
        %v4277 = vunpack.c.l.b16 %v3987
        %v4278 = vunpack.c.h.b16 %v3987
        %v4279 = vunpack.c.l.b16 %v3988
        %v4280 = vunpack.c.h.b16 %v3988
        %v4281 = vunpack.c.l.b16 %v3989
        %v4282 = vunpack.c.h.b16 %v3989
        %v4283 = vunpack.c.l.b16 %v3990
        %v4284 = vunpack.c.h.b16 %v3990
        %v4285 = vunpack.c.l.b16 %v3991
        %v4286 = vunpack.c.h.b16 %v3991
        %v4287 = vunpack.c.l.b16 %v3992
        %v4288 = vunpack.c.h.b16 %v3992
        %v4289 = vunpack.c.l.b16 %v3993
        %v4290 = vunpack.c.h.b16 %v3993
        %v4291 = vunpack.c.l.b16 %v3994
        %v4292 = vunpack.c.h.b16 %v3994
        %v4293 = vunpack.c.l.b16 %v3995
        %v4294 = vunpack.c.h.b16 %v3995
        %v4295 = vunpack.c.l.b16 %v3996
        %v4296 = vunpack.c.h.b16 %v3996
        %v4297 = vunpack.c.l.b16 %v3997
        %v4298 = vunpack.c.h.b16 %v3997
        %v4299 = vunpack.c.l.b16 %v3998
        %v4300 = vunpack.c.h.b16 %v3998
        %v4301 = vunpack.c.l.b16 %v3999
        %v4302 = vunpack.c.h.b16 %v3999
        %v4303 = vunpack.c.l.b16 %v4000
        %v4304 = vunpack.c.h.b16 %v4000
        %v4305 = vunpack.c.l.b16 %v4001
        %v4306 = vunpack.c.h.b16 %v4001
        %v4307 = vunpack.c.l.b16 %v4002
        %v4308 = vunpack.c.h.b16 %v4002
        %v4309 = vunpack.c.l.b16 %v4003
        %v4310 = vunpack.c.h.b16 %v4003
        %v4311 = vunpack.c.l.b16 %v4004
        %v4312 = vunpack.c.h.b16 %v4004
        %v4313 = vunpack.c.l.b16 %v4005
        %v4314 = vunpack.c.h.b16 %v4005
        %v4315 = vunpack.c.l.b16 %v4006
        %v4316 = vunpack.c.h.b16 %v4006
        %v4317 = vunpack.c.l.b16 %v4007
        %v4318 = vunpack.c.h.b16 %v4007
        %v4319 = vunpack.c.l.b16 %v4008
        %v4320 = vunpack.c.h.b16 %v4008
        %v4321 = vunpack.c.l.b16 %v4009
        %v4322 = vunpack.c.h.b16 %v4009
        %v4323 = vunpack.c.l.b16 %v4010
        %v4324 = vunpack.c.h.b16 %v4010
        %v4325 = vunpack.c.l.b16 %v4011
        %v4326 = vunpack.c.h.b16 %v4011
        %v4327 = vunpack.c.l.b16 %v4012
        %v4328 = vunpack.c.h.b16 %v4012
        %v4329 = vunpack.c.l.b16 %v4013
        %v4330 = vunpack.c.h.b16 %v4013
        %v4331 = vunpack.c.l.b16 %v4014
        %v4332 = vunpack.c.h.b16 %v4014
        %v4333 = vunpack.c.l.b16 %v4015
        %v4334 = vunpack.c.h.b16 %v4015
        %v4335 = vunpack.c.l.b16 %v4016
        %v4336 = vunpack.c.h.b16 %v4016
        %v4337 = vunpack.c.l.b16 %v4017
        %v4338 = vunpack.c.h.b16 %v4017
        %v4339 = vunpack.c.l.b16 %v4018
        %v4340 = vunpack.c.h.b16 %v4018
        %v4341 = vunpack.c.l.b16 %v4019
        %v4342 = vunpack.c.h.b16 %v4019
        %v4343 = vunpack.c.l.b16 %v4020
        %v4344 = vunpack.c.h.b16 %v4020
        %v4345 = vunpack.c.l.b16 %v4021
        %v4346 = vunpack.c.h.b16 %v4021
        %v4347 = vunpack.c.l.b16 %v4022
        %v4348 = vunpack.c.h.b16 %v4022
        %v4349 = vunpack.c.l.b16 %v4023
        %v4350 = vunpack.c.h.b16 %v4023
        %v4351 = vunpack.c.l.b16 %v4024
        %v4352 = vunpack.c.h.b16 %v4024
        %v4353 = vunpack.c.l.b16 %v4025
        %v4354 = vunpack.c.h.b16 %v4025
        %v4355 = vunpack.c.l.b16 %v4026
        %v4356 = vunpack.c.h.b16 %v4026
        %v4357 = vunpack.c.l.b16 %v4027
        %v4358 = vunpack.c.h.b16 %v4027
        %v4359 = vunpack.c.l.b16 %v4028
        %v4360 = vunpack.c.h.b16 %v4028
        %v4361 = vunpack.c.l.b16 %v4029
        %v4362 = vunpack.c.h.b16 %v4029
        %v4363 = vunpack.c.l.b16 %v4030
        %v4364 = vunpack.c.h.b16 %v4030
        %v4365 = vunpack.c.l.b16 %v4031
        %v4366 = vunpack.c.h.b16 %v4031
        %v4367 = vunpack.c.l.b16 %v4032
        %v4368 = vunpack.c.h.b16 %v4032
        %v4369 = vunpack.c.l.b16 %v4033
        %v4370 = vunpack.c.h.b16 %v4033
        %v4371 = vunpack.c.l.b16 %v4034
        %v4372 = vunpack.c.h.b16 %v4034
        %v4373 = vunpack.c.l.b16 %v4035
        %v4374 = vunpack.c.h.b16 %v4035
        %v4375 = vunpack.c.l.b16 %v4036
        %v4376 = vunpack.c.h.b16 %v4036
        %v4377 = vunpack.c.l.b16 %v4037
        %v4378 = vunpack.c.h.b16 %v4037
        %v4379 = vunpack.c.l.b16 %v4038
        %v4380 = vunpack.c.h.b16 %v4038
        %v4381 = vunpack.c.l.b16 %v4039
        %v4382 = vunpack.c.h.b16 %v4039
        %v4383 = vunpack.c.l.b16 %v4040
        %v4384 = vunpack.c.h.b16 %v4040
        %v4385 = vunpack.c.l.b16 %v4041
        %v4386 = vunpack.c.h.b16 %v4041
        %v4387 = vunpack.c.l.b16 %v4042
        %v4388 = vunpack.c.h.b16 %v4042
        %v4389 = vunpack.c.l.b16 %v4043
        %v4390 = vunpack.c.h.b16 %v4043
        %v4391 = vunpack.c.l.b16 %v4044
        %v4392 = vunpack.c.h.b16 %v4044
        %v4393 = vunpack.c.l.b16 %v4045
        %v4394 = vunpack.c.h.b16 %v4045
        %v4395 = vunpack.c.l.b16 %v4046
        %v4396 = vunpack.c.h.b16 %v4046
        %v4397 = vunpack.c.l.b16 %v4047
        %v4398 = vunpack.c.h.b16 %v4047
        %v4399 = vunpack.c.l.b16 %v4048
        %v4400 = vunpack.c.h.b16 %v4048
        %v4401 = vunpack.c.l.b16 %v4049
        %v4402 = vunpack.c.h.b16 %v4049
        %v4403 = vunpack.c.l.b16 %v4050
        %v4404 = vunpack.c.h.b16 %v4050
        %v4405 = vunpack.c.l.b16 %v4051
        %v4406 = vunpack.c.h.b16 %v4051
        %v4407 = vunpack.c.l.b16 %v4052
        %v4408 = vunpack.c.h.b16 %v4052
        %v4409 = vunpack.c.l.b16 %v4053
        %v4410 = vunpack.c.h.b16 %v4053
        %v4411 = vunpack.c.l.b16 %v4054
        %v4412 = vunpack.c.h.b16 %v4054
        %v4413 = vunpack.c.l.b16 %v4055
        %v4414 = vunpack.c.h.b16 %v4055
        %v4415 = vunpack.c.l.b16 %v4056
        %v4416 = vunpack.c.h.b16 %v4056
        %v4417 = vunpack.c.l.b16 %v4057
        %v4418 = vunpack.c.h.b16 %v4057
        %v4419 = vunpack.c.l.b16 %v4058
        %v4420 = vunpack.c.h.b16 %v4058
        %v4421 = vunpack.c.l.b16 %v4059
        %v4422 = vunpack.c.h.b16 %v4059
        %v4423 = vunpack.c.l.b16 %v4060
        %v4424 = vunpack.c.h.b16 %v4060
        %v4425 = vunpack.c.l.b16 %v4061
        %v4426 = vunpack.c.h.b16 %v4061
        %v4427 = vunpack.c.l.b16 %v4062
        %v4428 = vunpack.c.h.b16 %v4062
        %v4429 = vunpack.c.l.b16 %v4063
        %v4430 = vunpack.c.h.b16 %v4063
        %v4431 = vunpack.c.l.b16 %v4064
        %v4432 = vunpack.c.h.b16 %v4064
        %v4433 = vunpack.c.l.b16 %v4065
        %v4434 = vunpack.c.h.b16 %v4065
        %v4435 = vunpack.c.l.b16 %v4066
        %v4436 = vunpack.c.h.b16 %v4066
        %v4437 = vunpack.c.l.b16 %v4067
        %v4438 = vunpack.c.h.b16 %v4067
        %v4439 = vunpack.c.l.b16 %v4068
        %v4440 = vunpack.c.h.b16 %v4068
        %v4441 = vunpack.c.l.b16 %v4069
        %v4442 = vunpack.c.h.b16 %v4069
        %v4443 = vunpack.c.l.b16 %v4070
        %v4444 = vunpack.c.h.b16 %v4070
        %v4445 = vunpack.c.l.b16 %v4071
        %v4446 = vunpack.c.h.b16 %v4071
        %v4447 = vunpack.c.l.b16 %v4072
        %v4448 = vunpack.c.h.b16 %v4072
        %v4449 = vunpack.c.l.b16 %v4073
        %v4450 = vunpack.c.h.b16 %v4073
        %v4451 = vunpack.c.l.b16 %v4074
        %v4452 = vunpack.c.h.b16 %v4074
        %v4453 = vunpack.c.l.b16 %v4075
        %v4454 = vunpack.c.h.b16 %v4075
        %v4455 = vunpack.c.l.b16 %v4076
        %v4456 = vunpack.c.h.b16 %v4076
        %v4457 = vunpack.c.l.b16 %v4077
        %v4458 = vunpack.c.h.b16 %v4077
        %v4459 = vunpack.c.l.b16 %v4078
        %v4460 = vunpack.c.h.b16 %v4078
        %v4461 = vunpack.c.l.b16 %v4079
        %v4462 = vunpack.c.h.b16 %v4079
        %v4463 = vunpack.c.l.b16 %v4080
        %v4464 = vunpack.c.h.b16 %v4080
        %v4465 = vunpack.c.l.b16 %v4081
        %v4466 = vunpack.c.h.b16 %v4081
        %v4467 = vunpack.c.l.b16 %v4082
        %v4468 = vunpack.c.h.b16 %v4082
        %v4469 = vunpack.c.l.b16 %v4083
        %v4470 = vunpack.c.h.b16 %v4083
        %v4471 = vunpack.c.l.b16 %v4084
        %v4472 = vunpack.c.h.b16 %v4084
        %v4473 = vunpack.c.l.b16 %v4085
        %v4474 = vunpack.c.h.b16 %v4085
        %v4475 = vunpack.c.l.b16 %v4086
        %v4476 = vunpack.c.h.b16 %v4086
        %v4477 = vpack.c.b16 %v4223, %v4221
        %v4478 = vpack.c.b16 %v4224, %v4222
        %v4479 = vpack.c.b16 %v4227, %v4225
        %v4480 = vpack.c.b16 %v4228, %v4226
        %v4481 = vpack.c.b16 %v4231, %v4229
        %v4482 = vpack.c.b16 %v4232, %v4230
        %v4483 = vpack.c.b16 %v4235, %v4233
        %v4484 = vpack.c.b16 %v4236, %v4234
        %v4485 = vpack.c.b16 %v4239, %v4237
        %v4486 = vpack.c.b16 %v4240, %v4238
        %v4487 = vpack.c.b16 %v4243, %v4241
        %v4488 = vpack.c.b16 %v4244, %v4242
        %v4489 = vpack.c.b16 %v4247, %v4245
        %v4490 = vpack.c.b16 %v4248, %v4246
        %v4491 = vpack.c.b16 %v4251, %v4249
        %v4492 = vpack.c.b16 %v4252, %v4250
        %v4493 = vpack.c.b16 %v4255, %v4253
        %v4494 = vpack.c.b16 %v4256, %v4254
        %v4495 = vpack.c.b16 %v4259, %v4257
        %v4496 = vpack.c.b16 %v4260, %v4258
        %v4497 = vpack.c.b16 %v4263, %v4261
        %v4498 = vpack.c.b16 %v4264, %v4262
        %v4499 = vpack.c.b16 %v4267, %v4265
        %v4500 = vpack.c.b16 %v4268, %v4266
        %v4501 = vpack.c.b16 %v4271, %v4269
        %v4502 = vpack.c.b16 %v4272, %v4270
        %v4503 = vpack.c.b16 %v4275, %v4273
        %v4504 = vpack.c.b16 %v4276, %v4274
        %v4505 = vpack.c.b16 %v4279, %v4277
        %v4506 = vpack.c.b16 %v4280, %v4278
        %v4507 = vpack.c.b16 %v4283, %v4281
        %v4508 = vpack.c.b16 %v4284, %v4282
        %v4509 = vpack.c.b16 %v4287, %v4285
        %v4510 = vpack.c.b16 %v4288, %v4286
        %v4511 = vpack.c.b16 %v4291, %v4289
        %v4512 = vpack.c.b16 %v4292, %v4290
        %v4513 = vpack.c.b16 %v4295, %v4293
        %v4514 = vpack.c.b16 %v4296, %v4294
        %v4515 = vpack.c.b16 %v4299, %v4297
        %v4516 = vpack.c.b16 %v4300, %v4298
        %v4517 = vpack.c.b16 %v4303, %v4301
        %v4518 = vpack.c.b16 %v4304, %v4302
        %v4519 = vpack.c.b16 %v4307, %v4305
        %v4520 = vpack.c.b16 %v4308, %v4306
        %v4521 = vpack.c.b16 %v4311, %v4309
        %v4522 = vpack.c.b16 %v4312, %v4310
        %v4523 = vpack.c.b16 %v4315, %v4313
        %v4524 = vpack.c.b16 %v4316, %v4314
        %v4525 = vpack.c.b16 %v4319, %v4317
        %v4526 = vpack.c.b16 %v4320, %v4318
        %v4527 = vpack.c.b16 %v4323, %v4321
        %v4528 = vpack.c.b16 %v4324, %v4322
        %v4529 = vpack.c.b16 %v4327, %v4325
        %v4530 = vpack.c.b16 %v4328, %v4326
        %v4531 = vpack.c.b16 %v4331, %v4329
        %v4532 = vpack.c.b16 %v4332, %v4330
        %v4533 = vpack.c.b16 %v4335, %v4333
        %v4534 = vpack.c.b16 %v4336, %v4334
        %v4535 = vpack.c.b16 %v4339, %v4337
        %v4536 = vpack.c.b16 %v4340, %v4338
        %v4537 = vpack.c.b16 %v4343, %v4341
        %v4538 = vpack.c.b16 %v4344, %v4342
        %v4539 = vpack.c.b16 %v4347, %v4345
        %v4540 = vpack.c.b16 %v4348, %v4346
        %v4541 = vpack.c.b16 %v4351, %v4349
        %v4542 = vpack.c.b16 %v4352, %v4350
        %v4543 = vpack.c.b16 %v4355, %v4353
        %v4544 = vpack.c.b16 %v4356, %v4354
        %v4545 = vpack.c.b16 %v4359, %v4357
        %v4546 = vpack.c.b16 %v4360, %v4358
        %v4547 = vpack.c.b16 %v4363, %v4361
        %v4548 = vpack.c.b16 %v4364, %v4362
        %v4549 = vpack.c.b16 %v4367, %v4365
        %v4550 = vpack.c.b16 %v4368, %v4366
        %v4551 = vpack.c.b16 %v4371, %v4369
        %v4552 = vpack.c.b16 %v4372, %v4370
        %v4553 = vpack.c.b16 %v4375, %v4373
        %v4554 = vpack.c.b16 %v4376, %v4374
        %v4555 = vpack.c.b16 %v4379, %v4377
        %v4556 = vpack.c.b16 %v4380, %v4378
        %v4557 = vpack.c.b16 %v4383, %v4381
        %v4558 = vpack.c.b16 %v4384, %v4382
        %v4559 = vpack.c.b16 %v4387, %v4385
        %v4560 = vpack.c.b16 %v4388, %v4386
        %v4561 = vpack.c.b16 %v4391, %v4389
        %v4562 = vpack.c.b16 %v4392, %v4390
        %v4563 = vpack.c.b16 %v4395, %v4393
        %v4564 = vpack.c.b16 %v4396, %v4394
        %v4565 = vpack.c.b16 %v4399, %v4397
        %v4566 = vpack.c.b16 %v4400, %v4398
        %v4567 = vpack.c.b16 %v4403, %v4401
        %v4568 = vpack.c.b16 %v4404, %v4402
        %v4569 = vpack.c.b16 %v4407, %v4405
        %v4570 = vpack.c.b16 %v4408, %v4406
        %v4571 = vpack.c.b16 %v4411, %v4409
        %v4572 = vpack.c.b16 %v4412, %v4410
        %v4573 = vpack.c.b16 %v4415, %v4413
        %v4574 = vpack.c.b16 %v4416, %v4414
        %v4575 = vpack.c.b16 %v4419, %v4417
        %v4576 = vpack.c.b16 %v4420, %v4418
        %v4577 = vpack.c.b16 %v4423, %v4421
        %v4578 = vpack.c.b16 %v4424, %v4422
        %v4579 = vpack.c.b16 %v4427, %v4425
        %v4580 = vpack.c.b16 %v4428, %v4426
        %v4581 = vpack.c.b16 %v4431, %v4429
        %v4582 = vpack.c.b16 %v4432, %v4430
        %v4583 = vpack.c.b16 %v4435, %v4433
        %v4584 = vpack.c.b16 %v4436, %v4434
        %v4585 = vpack.c.b16 %v4439, %v4437
        %v4586 = vpack.c.b16 %v4440, %v4438
        %v4587 = vpack.c.b16 %v4443, %v4441
        %v4588 = vpack.c.b16 %v4444, %v4442
        %v4589 = vpack.c.b16 %v4447, %v4445
        %v4590 = vpack.c.b16 %v4448, %v4446
        %v4591 = vpack.c.b16 %v4451, %v4449
        %v4592 = vpack.c.b16 %v4452, %v4450
        %v4593 = vpack.c.b16 %v4455, %v4453
        %v4594 = vpack.c.b16 %v4456, %v4454
        %v4595 = vpack.c.b16 %v4459, %v4457
        %v4596 = vpack.c.b16 %v4460, %v4458
        %v4597 = vpack.c.b16 %v4463, %v4461
        %v4598 = vpack.c.b16 %v4464, %v4462
        %v4599 = vpack.c.b16 %v4467, %v4465
        %v4600 = vpack.c.b16 %v4468, %v4466
        %v4601 = vpack.c.b16 %v4471, %v4469
        %v4602 = vpack.c.b16 %v4472, %v4470
        %v4603 = vpack.c.b16 %v4475, %v4473
        %v4604 = vpack.c.b16 %v4476, %v4474
        %4733 = vmatpush.bf16.msra.mxu0 %v4491
        %4734 = vmatpush.bf16.msra.mxu0 %v4489
        %4735 = vmatpush.bf16.msra.mxu0 %v4487
        %4736 = vmatpush.bf16.msra.mxu0 %v4485
        %4737 = vmatpush.bf16.msra.mxu0 %v4483
        %4738 = vmatpush.bf16.msra.mxu0 %v4481
        %4739 = vmatpush.bf16.msra.mxu0 %v4479
        %4740 = vmatpush.bf16.msra.mxu0 %v4477
        %4741 = vmatmul.bf16.gmra.mxu0 %v3951
        %v4742 = vpop.f32.mrf.mxu0
        %v4743 = vadd.f32 %v4089, %v4742
        %v4744 = vpop.f32.mrf.mxu0
        %4745 = vdwg.mxu0
        %4746 = vmatpush.bf16.msra.mxu0 %v4507
        %4747 = vmatpush.bf16.msra.mxu0 %v4505
        %4748 = vmatpush.bf16.msra.mxu0 %v4503
        %4749 = vmatpush.bf16.msra.mxu0 %v4501
        %4750 = vmatpush.bf16.msra.mxu0 %v4499
        %4751 = vmatpush.bf16.msra.mxu0 %v4497
        %4752 = vmatpush.bf16.msra.mxu0 %v4495
        %4753 = vmatpush.bf16.msra.mxu0 %v4493
        %4754 = vmatmul.bf16.gmra.mxu0 %v3952
        %v4755 = vpop.f32.mrf.mxu0
        %v4756 = vadd.f32 %v4743, %v4755
        %v4757 = vpop.f32.mrf.mxu0
        %4758 = vdwg.mxu0
        %4759 = vmatpush.bf16.msra.mxu0 %v4523
        %4760 = vmatpush.bf16.msra.mxu0 %v4521
        %4761 = vmatpush.bf16.msra.mxu0 %v4519
        %4762 = vmatpush.bf16.msra.mxu0 %v4517
        %4763 = vmatpush.bf16.msra.mxu0 %v4515
        %4764 = vmatpush.bf16.msra.mxu0 %v4513
        %4765 = vmatpush.bf16.msra.mxu0 %v4511
        %4766 = vmatpush.bf16.msra.mxu0 %v4509
        %4767 = vmatmul.bf16.gmra.mxu0 %v3953
        %v4768 = vpop.f32.mrf.mxu0
        %v4769 = vadd.f32 %v4756, %v4768
        %v4770 = vpop.f32.mrf.mxu0
        %4771 = vdwg.mxu0
        %4772 = vmatpush.bf16.msra.mxu0 %v4539
        %4773 = vmatpush.bf16.msra.mxu0 %v4537
        %4774 = vmatpush.bf16.msra.mxu0 %v4535
        %4775 = vmatpush.bf16.msra.mxu0 %v4533
        %4776 = vmatpush.bf16.msra.mxu0 %v4531
        %4777 = vmatpush.bf16.msra.mxu0 %v4529
        %4778 = vmatpush.bf16.msra.mxu0 %v4527
        %4779 = vmatpush.bf16.msra.mxu0 %v4525
        %4780 = vmatmul.bf16.gmra.mxu0 %v3954
        %v4781 = vpop.f32.mrf.mxu0
        %v4782 = vadd.f32 %v4769, %v4781
        %v4783 = vpop.f32.mrf.mxu0
        %4784 = vdwg.mxu0
        %4785 = vmatpush.bf16.msra.mxu0 %v4555
        %4786 = vmatpush.bf16.msra.mxu0 %v4553
        %4787 = vmatpush.bf16.msra.mxu0 %v4551
        %4788 = vmatpush.bf16.msra.mxu0 %v4549
        %4789 = vmatpush.bf16.msra.mxu0 %v4547
        %4790 = vmatpush.bf16.msra.mxu0 %v4545
        %4791 = vmatpush.bf16.msra.mxu0 %v4543
        %4792 = vmatpush.bf16.msra.mxu0 %v4541
        %4793 = vmatmul.bf16.gmra.mxu0 %v3955
        %v4794 = vpop.f32.mrf.mxu0
        %v4795 = vadd.f32 %v4782, %v4794
        %v4796 = vpop.f32.mrf.mxu0
        %4797 = vdwg.mxu0
        %4798 = vmatpush.bf16.msra.mxu0 %v4571
        %4799 = vmatpush.bf16.msra.mxu0 %v4569
        %4800 = vmatpush.bf16.msra.mxu0 %v4567
        %4801 = vmatpush.bf16.msra.mxu0 %v4565
        %4802 = vmatpush.bf16.msra.mxu0 %v4563
        %4803 = vmatpush.bf16.msra.mxu0 %v4561
        %4804 = vmatpush.bf16.msra.mxu0 %v4559
        %4805 = vmatpush.bf16.msra.mxu0 %v4557
        %4806 = vmatmul.bf16.gmra.mxu0 %v3956
        %v4807 = vpop.f32.mrf.mxu0
        %v4808 = vadd.f32 %v4795, %v4807
        %v4809 = vpop.f32.mrf.mxu0
        %4810 = vdwg.mxu0
        %4811 = vmatpush.bf16.msra.mxu0 %v4587
        %4812 = vmatpush.bf16.msra.mxu0 %v4585
        %4813 = vmatpush.bf16.msra.mxu0 %v4583
        %4814 = vmatpush.bf16.msra.mxu0 %v4581
        %4815 = vmatpush.bf16.msra.mxu0 %v4579
        %4816 = vmatpush.bf16.msra.mxu0 %v4577
        %4817 = vmatpush.bf16.msra.mxu0 %v4575
        %4818 = vmatpush.bf16.msra.mxu0 %v4573
        %4819 = vmatmul.bf16.gmra.mxu0 %v3957
        %v4820 = vpop.f32.mrf.mxu0
        %v4821 = vadd.f32 %v4808, %v4820
        %v4822 = vpop.f32.mrf.mxu0
        %4823 = vdwg.mxu0
        %4824 = vmatpush.bf16.msra.mxu0 %v4603
        %4825 = vmatpush.bf16.msra.mxu0 %v4601
        %4826 = vmatpush.bf16.msra.mxu0 %v4599
        %4827 = vmatpush.bf16.msra.mxu0 %v4597
        %4828 = vmatpush.bf16.msra.mxu0 %v4595
        %4829 = vmatpush.bf16.msra.mxu0 %v4593
        %4830 = vmatpush.bf16.msra.mxu0 %v4591
        %4831 = vmatpush.bf16.msra.mxu0 %v4589
        %4832 = vmatmul.bf16.gmra.mxu0 %v3958
        %v4833 = vpop.f32.mrf.mxu0
        %v4834 = vadd.f32 %v4821, %v4833
        %v4835 = vpop.f32.mrf.mxu0
        %4836 = vdwg.mxu0
        %4837 = vmatpush.bf16.msra.mxu0 %v4492
        %4838 = vmatpush.bf16.msra.mxu0 %v4490
        %4839 = vmatpush.bf16.msra.mxu0 %v4488
        %4840 = vmatpush.bf16.msra.mxu0 %v4486
        %4841 = vmatpush.bf16.msra.mxu0 %v4484
        %4842 = vmatpush.bf16.msra.mxu0 %v4482
        %4843 = vmatpush.bf16.msra.mxu0 %v4480
        %4844 = vmatpush.bf16.msra.mxu0 %v4478
        %4845 = vmatmul.bf16.gmra.mxu0 %v3951
        %v4846 = vpop.f32.mrf.mxu0
        %v4847 = vadd.f32 %v4090, %v4846
        %v4848 = vpop.f32.mrf.mxu0
        %4849 = vdwg.mxu0
        %4850 = vmatpush.bf16.msra.mxu0 %v4508
        %4851 = vmatpush.bf16.msra.mxu0 %v4506
        %4852 = vmatpush.bf16.msra.mxu0 %v4504
        %4853 = vmatpush.bf16.msra.mxu0 %v4502
        %4854 = vmatpush.bf16.msra.mxu0 %v4500
        %4855 = vmatpush.bf16.msra.mxu0 %v4498
        %4856 = vmatpush.bf16.msra.mxu0 %v4496
        %4857 = vmatpush.bf16.msra.mxu0 %v4494
        %4858 = vmatmul.bf16.gmra.mxu0 %v3952
        %v4859 = vpop.f32.mrf.mxu0
        %v4860 = vadd.f32 %v4847, %v4859
        %v4861 = vpop.f32.mrf.mxu0
        %4862 = vdwg.mxu0
        %4863 = vmatpush.bf16.msra.mxu0 %v4524
        %4864 = vmatpush.bf16.msra.mxu0 %v4522
        %4865 = vmatpush.bf16.msra.mxu0 %v4520
        %4866 = vmatpush.bf16.msra.mxu0 %v4518
        %4867 = vmatpush.bf16.msra.mxu0 %v4516
        %4868 = vmatpush.bf16.msra.mxu0 %v4514
        %4869 = vmatpush.bf16.msra.mxu0 %v4512
        %4870 = vmatpush.bf16.msra.mxu0 %v4510
        %4871 = vmatmul.bf16.gmra.mxu0 %v3953
        %v4872 = vpop.f32.mrf.mxu0
        %v4873 = vadd.f32 %v4860, %v4872
        %v4874 = vpop.f32.mrf.mxu0
        %4875 = vdwg.mxu0
        %4876 = vmatpush.bf16.msra.mxu0 %v4540
        %4877 = vmatpush.bf16.msra.mxu0 %v4538
        %4878 = vmatpush.bf16.msra.mxu0 %v4536
        %4879 = vmatpush.bf16.msra.mxu0 %v4534
        %4880 = vmatpush.bf16.msra.mxu0 %v4532
        %4881 = vmatpush.bf16.msra.mxu0 %v4530
        %4882 = vmatpush.bf16.msra.mxu0 %v4528
        %4883 = vmatpush.bf16.msra.mxu0 %v4526
        %4884 = vmatmul.bf16.gmra.mxu0 %v3954
        %v4885 = vpop.f32.mrf.mxu0
        %v4886 = vadd.f32 %v4873, %v4885
        %v4887 = vpop.f32.mrf.mxu0
        %4888 = vdwg.mxu0
        %4889 = vmatpush.bf16.msra.mxu0 %v4556
        %4890 = vmatpush.bf16.msra.mxu0 %v4554
        %4891 = vmatpush.bf16.msra.mxu0 %v4552
        %4892 = vmatpush.bf16.msra.mxu0 %v4550
        %4893 = vmatpush.bf16.msra.mxu0 %v4548
        %4894 = vmatpush.bf16.msra.mxu0 %v4546
        %4895 = vmatpush.bf16.msra.mxu0 %v4544
        %4896 = vmatpush.bf16.msra.mxu0 %v4542
        %4897 = vmatmul.bf16.gmra.mxu0 %v3955
        %v4898 = vpop.f32.mrf.mxu0
        %v4899 = vadd.f32 %v4886, %v4898
        %v4900 = vpop.f32.mrf.mxu0
        %4901 = vdwg.mxu0
        %4902 = vmatpush.bf16.msra.mxu0 %v4572
        %4903 = vmatpush.bf16.msra.mxu0 %v4570
        %4904 = vmatpush.bf16.msra.mxu0 %v4568
        %4905 = vmatpush.bf16.msra.mxu0 %v4566
        %4906 = vmatpush.bf16.msra.mxu0 %v4564
        %4907 = vmatpush.bf16.msra.mxu0 %v4562
        %4908 = vmatpush.bf16.msra.mxu0 %v4560
        %4909 = vmatpush.bf16.msra.mxu0 %v4558
        %4910 = vmatmul.bf16.gmra.mxu0 %v3956
        %v4911 = vpop.f32.mrf.mxu0
        %v4912 = vadd.f32 %v4899, %v4911
        %v4913 = vpop.f32.mrf.mxu0
        %4914 = vdwg.mxu0
        %4915 = vmatpush.bf16.msra.mxu0 %v4588
        %4916 = vmatpush.bf16.msra.mxu0 %v4586
        %4917 = vmatpush.bf16.msra.mxu0 %v4584
        %4918 = vmatpush.bf16.msra.mxu0 %v4582
        %4919 = vmatpush.bf16.msra.mxu0 %v4580
        %4920 = vmatpush.bf16.msra.mxu0 %v4578
        %4921 = vmatpush.bf16.msra.mxu0 %v4576
        %4922 = vmatpush.bf16.msra.mxu0 %v4574
        %4923 = vmatmul.bf16.gmra.mxu0 %v3957
        %v4924 = vpop.f32.mrf.mxu0
        %v4925 = vadd.f32 %v4912, %v4924
        %v4926 = vpop.f32.mrf.mxu0
        %4927 = vdwg.mxu0
        %4928 = vmatpush.bf16.msra.mxu0 %v4604
        %4929 = vmatpush.bf16.msra.mxu0 %v4602
        %4930 = vmatpush.bf16.msra.mxu0 %v4600
        %4931 = vmatpush.bf16.msra.mxu0 %v4598
        %4932 = vmatpush.bf16.msra.mxu0 %v4596
        %4933 = vmatpush.bf16.msra.mxu0 %v4594
        %4934 = vmatpush.bf16.msra.mxu0 %v4592
        %4935 = vmatpush.bf16.msra.mxu0 %v4590
        %4936 = vmatmul.bf16.gmra.mxu0 %v3958
        %v4937 = vpop.f32.mrf.mxu0
        %v4938 = vadd.f32 %v4925, %v4937
        %v4939 = vpop.f32.mrf.mxu0
        %4940 = vdwg.mxu0
        %v4941 = vadd.f32 %v2601, %v4834
        %v4942 = vadd.f32 %v2602, %v4938
        %v4943 = vld [vmem:[%s857] sm:$0x3]
        %v4944 = vld [vmem:[%s867] sm:$0x3]
        %v4945 = vadd.f32 %v4941, %v4942
        %4946 = vadd.xlane.f32.xlu0 %v4945
        %v4947 = vpop.xlane.xlu0 %4946
        %v4948 = vmul.f32 %v4947, %v2566
        %v4949 = vsub.f32 %v4941, %v4948
        %v4950 = vsub.f32 %v4942, %v4948
        %v4951 = vmul.f32 %v4949, %v4949
        %v4952 = vmul.f32 %v4950, %v4950
        %v4953 = vadd.f32 %v4951, %v4952
        %4954 = vadd.xlane.f32.xlu0 %v4953
        %v4955 = vpop.xlane.xlu0 %4954
        %v4956 = vmul.f32 %v4955, %v2566
        %v4957 = vadd.f32 %v4956, 1e-05
        %v4958 = vrsqrt.pop %v4957
        %v4959 = vmul.f32 %v4958, %v4957
        %v4960 = vmul.f32 %v4959, %v4958
        %v4961 = vmul.f32 0.5, %v4960
        %v4962 = vsub.f32 1.5, %v4961
        %v4963 = vmul.f32 %v4958, %v4962
        %vm4964 = vweird.f32 %v4957
        %vm4965 = vweird.f32 %v4958
        %vm4966 = vmor %vm4964, %vm4965
        %v4967 = vsel %vm4966, %v4958, %v4963
        %v4968 = vmul.f32 %v4949, %v4967
        %v4969 = vmul.f32 %v4950, %v4967
        %v4971 = vperm.slane %v4943, 0
        %v4972 = vperm.slane %v4943, 1
        %v4975 = vmul.f32 %v4968, %v4971
        %v4976 = vmul.f32 %v4969, %v4972
        %v4978 = vperm.slane %v4944, 0
        %v4979 = vperm.slane %v4944, 1
        %v4982 = vadd.f32 %v4975, %v4978
        %v4983 = vadd.f32 %v4976, %v4979
        %4984 = vst [vmem:[#allocation2] sm:$0xff] %v4982
        %4985 = vst [vmem:[#allocation2 + $0x8] sm:$0xff] %v4983
        %p4986 = scmp.eq.s32.totalorder %s52, 5
        // Predicated region
        $region125: #{stacked_transformers_forward.2} parent=71 // pred_check
          %p4987 = pneg %p4986
        $region126: #{stacked_transformers_forward.2} parent=71 // pred_check_branch
          %4989 = sbr.rel (%p4987) target = $region128
        $region127: #{stacked_transformers_forward.2} parent=71 // pred_region
          %v4990 = vrot.slane %v4982, 4
          %v4991 = vadd.f32 %v4982, %v4990
          %v4992 = vrot.slane %v4991, 2
          %v4993 = vadd.f32 %v4991, %v4992
          %v4994 = vrot.slane %v4993, 1
          %v4995 = vadd.f32 %v4993, %v4994
          %v4996 = vrot.slane %v4983, 4
          %v4997 = vadd.f32 %v4983, %v4996
          %v4998 = vrot.slane %v4997, 2
          %v4999 = vadd.f32 %v4997, %v4998
          %v5000 = vrot.slane %v4999, 1
          %v5001 = vadd.f32 %v4999, %v5000
          %v5002 = vrcp.pop 8.0
          %v5003 = vmul.f32 8.0, %v5002
          %v5004 = vsub.f32 1.0, %v5003
          %v5005 = vmul.f32 %v5002, %v5004
          %v5006 = vadd.f32 %v5002, %v5005
          %vm5007 = vweird.f32 %v5002
          %v5008 = vsel %vm5007, %v5002, %v5006
          %v5009 = vmul.f32 %v4995, %v5008
          %v5010 = vmul.f32 %v5001, %v5008
          %v5013 = vrot.slane %v5010, 7
          %vm5014 = vcmask 1040384
          %v5015 = vsel %vm5014, %v5009, %v5013
          %v5017 = vlaneseq
          %vm5018 = vcmp.ge.s32.totalorder %v5017, 0
          %vm5019 = vcmp.lt.s32.totalorder %v5017, 256
          %vm5020 = vmand %vm5018, %vm5019
          %5021 = vst.msk [vmem:[%s994] sm:$0x3] %vm5020, %v5015
        $region128: #{stacked_transformers_forward.2} parent=71 // pred_fallthru
          _
        %p5022 = scmp.lt.s32.totalorder %s50, 1
        %s5023 = scalar_select %p5022, %s50, 1
        %p5024 = scmp.lt.s32.totalorder %s51, 1
        %s5025 = scalar_select %p5024, %s51, 1
        %s5026 = smul.addr %s5025, 2
        %s5027 = smul.addr %s5023, 4
        %s5028 = sadd.s32 %s5026, %s5027
        %s5029 = scalar_lea.vmem %s13, %s5028
        // Predicated region
        $region129: #{stacked_transformers_forward.2} parent=71 // pred_check
          %p5030 = pneg %p448
        $region130: #{stacked_transformers_forward.2} parent=71 // pred_check_branch
          %5032 = sbr.rel (%p5030) target = $region132
        $region131: #{stacked_transformers_forward.2} parent=71 // pred_region
          _
        $region132: #{stacked_transformers_forward.2} parent=71 // pred_fallthru
          _
      $region72: #{stacked_transformers_forward.2} parent=5 // pred_fallthru
        _
      %p5033 = scmp.le.s32.totalorder 2, %s40
      // Predicated region
      $region133: #{stacked_transformers_forward.2} parent=5 // pred_check
        %p5034 = pneg %p5033
      $region134: #{stacked_transformers_forward.2} parent=5 // pred_check_branch
        %5036 = sbr.rel (%p5034) target = $region136
      $region135: #{stacked_transformers_forward.2} parent=5 // pred_region
        %s5037 = ssub.s32 %s40, 2
        // Predicated region
        $region137: #{stacked_transformers_forward.2} parent=135 // pred_check
          %p5038 = pneg %p454
        $region138: #{stacked_transformers_forward.2} parent=135 // pred_check_branch
          %5040 = sbr.rel (%p5038) target = $region140
        $region139: #{stacked_transformers_forward.2} parent=135 // pred_region
          %p5041 = scmp.lt.s32.totalorder %s53, 1
          %s5042 = scalar_select %p5041, %s53, 1
          %p5043 = scmp.lt.s32.totalorder %s54, 1
          %s5044 = scalar_select %p5043, %s54, 1
          %s5045 = smul.addr %s5044, 2
          %s5046 = smul.addr %s5042, 4
          %s5047 = sadd.s32 %s5045, %s5046
          %s5048 = scalar_lea.vmem %s13, %s5047
        $region140: #{stacked_transformers_forward.2} parent=135 // pred_fallthru
          _
      $region136: #{stacked_transformers_forward.2} parent=5 // pred_fallthru
        _
    $region6: #{stacked_transformers_forward.2} parent=1 // loop_footer
      %s44 = sadd.s32 1, %s40
    $region7: #{stacked_transformers_forward.2} parent=1 // loop_footer_branch
      %39 = sbr.rel target = $region3
    $region8: #{stacked_transformers_forward.2} parent=1 // loop_exit
      _
    %5049 = vsyncpa [#allocation4], 1
    %s5050 = scalar_lea.sflag [#allocation4], 1
    %5051 = vsyncpa %s5050, 1
    %5052 = vsyncpa [#allocation6], 1
    %s5053 = scalar_lea.sflag [#allocation6], 1
    %5054 = vsyncpa %s5053, 1
    %5055 = vsyncpa [#allocation9], 1
    %s5056 = scalar_lea.sflag [#allocation9], 1
    %5057 = vsyncpa %s5056, 1
    %5058 = vsyncpa [#allocation12], 1
    %s5059 = scalar_lea.sflag [#allocation12], 1
    %5060 = vsyncpa %s5059, 1
    %5061 = vsyncpa [#allocation15], 1
    %s5062 = scalar_lea.sflag [#allocation15], 1
    %5063 = vsyncpa %s5062, 1
    %5064 = vsyncpa [#allocation18], 1
    %s5065 = scalar_lea.sflag [#allocation18], 1
    %5066 = vsyncpa %s5065, 1
    %5067 = vsyncpa [#allocation21], 1
    %s5068 = scalar_lea.sflag [#allocation21], 1
    %5069 = vsyncpa %s5068, 1

</llo_original>
